<compile_context>
chip_gen: v5e
topology: v5e:2x2
jax: 0.10.0
libtpu: 0.0.40
codegen_flags: <defaults>
</compile_context>

<pallas_src>
import jax
import jax.numpy as jnp
from jax.experimental import pallas as pl
from jax.experimental.pallas import tpu as pltpu


def mlp_probing_kernel(x_ref, w1_ref, b1_ref, w2_ref, b2_ref, o_ref, acc_ref):
    """One (batch-tile, hidden-chunk) grid step of fc1 -> relu -> fc2."""
    j = pl.program_id(1)

    @pl.when(j == 0)
    def _():
        acc_ref[...] = jnp.zeros_like(acc_ref)

    # fc1 chunk on the MXU: bf16 operands, f32 accumulate.
    h = jnp.dot(x_ref[...], w1_ref[...], preferred_element_type=jnp.float32)
    # Bias add + ReLU stay in f32 on the VPU.
    h = jnp.maximum(h + b1_ref[...], 0.0)
    # fc2 chunk: explicit bf16 cast of the f32 activation for the MXU,
    # accumulated across hidden chunks in f32 VMEM scratch.
    acc_ref[...] += jnp.dot(h.astype(jnp.bfloat16), w2_ref[...],
                            preferred_element_type=jnp.float32)

    @pl.when(j == pl.num_programs(1) - 1)
    def _():
        o_ref[...] = (acc_ref[...] + b2_ref[...]).astype(o_ref.dtype)


def _vmem_limit_bytes():
    """Generation-aware scoped VMEM limit."""
    cap = None
    try:
        cap = pltpu.get_tpu_info().vmem_capacity_bytes
    except Exception:
        cap = None
    if cap is None:
        return 48 * 1024 * 1024
    if cap >= 100 * 1024 * 1024:            # 128 MiB parts (v5e / v6e)
        return 96 * 1024 * 1024
    return int(min(48 * 1024 * 1024, (cap * 3) // 4))   # v7x 64 MiB part


def _estimate_vmem_bytes(tb, F, th, Cp, weight_bufs):
    """Rough per-core VMEM residency for one tile configuration."""
    x_b = 2 * tb * F * 2                    # bf16 x, double-buffered
    out_b = 2 * tb * Cp * 4                 # f32 out, double-buffered
    w1_b = weight_bufs * F * th * 2         # bf16 w1 chunk
    w2_b = weight_bufs * th * Cp * 2        # bf16 w2 chunk
    b1_b = weight_bufs * 8 * th * 4         # (1, th) pads to (8, th) sublanes
    b2_b = 8 * Cp * 4
    acc_b = tb * Cp * 4                     # f32 accumulator scratch
    h_b = tb * th * 4                       # f32 intermediate headroom
    return x_b + out_b + w1_b + w2_b + b1_b + b2_b + acc_b + h_b


def mlp_probing(x, w1, b1, w2, b2, *, tb=None, th=None):
    """x: (B, F) f32; w1: (F, F); b1: (1, F); w2: (F, C); b2: (1, C) -> (B, C) f32."""
    B, F = x.shape
    C = w2.shape[1]
    assert F % 128 == 0, "feature_dim must be a multiple of 128 for lane-dense tiles"

    vmem_limit = _vmem_limit_bytes()
    budget = (vmem_limit * 7) // 8          # leave headroom for the compiler

    # Lane-dense output: pad the class dim to a multiple of 128 lanes.
    Cp = ((C + 127) // 128) * 128

    # ---- Batch tile selection -------------------------------------------
    if tb is None:
        tb = 256 if B > 128 else 128
        # v7x: guarantee >= 2 grid steps over the batch (2 TensorCores) when
        # the batch is big enough to allow it.
        if B > 128 and pl.cdiv(B, tb) < 2:
            tb = 128
        # Shrink if the tile itself would blow the VMEM budget.
        while tb > 128 and _estimate_vmem_bytes(tb, F, min(F, 512), Cp, 1) > budget:
            tb //= 2

    # ---- Hidden-dim chunk selection -------------------------------------
    # Keep weights fully resident (single-buffered) if they fit; otherwise
    # stream hidden-dim chunks (double-buffered) and accumulate in scratch.
    if th is None:
        th = 128
        for cand in range(F, 127, -128):
            if F % cand:
                continue
            bufs = 1 if cand == F else 2
            if _estimate_vmem_bytes(tb, F, cand, Cp, bufs) <= budget:
                th = cand
                break
    assert F % th == 0 and th % 128 == 0
    n_chunks = F // th
    resident = (n_chunks == 1)

    # ---- Operand preparation ---------------------------------------------
    b1 = b1.reshape(1, F).astype(jnp.float32)
    b2p = jnp.pad(b2.reshape(1, C).astype(jnp.float32), ((0, 0), (0, Cp - C)))

    # Cast to bf16 BEFORE padding (halves the padded-copy HBM traffic).
    Bp = pl.cdiv(B, tb) * tb
    xp = jnp.pad(x.astype(jnp.bfloat16), ((0, Bp - B), (0, 0)))
    w1b = w1.astype(jnp.bfloat16)
    w2b = jnp.pad(w2.astype(jnp.bfloat16), ((0, 0), (0, Cp - C)))

    n_btiles = Bp // tb
    w_reads = 1 if resident else n_btiles
    cost = pl.CostEstimate(
        flops=2 * Bp * F * F + 2 * Bp * F * Cp,
        transcendentals=0,
        bytes_accessed=int(Bp * F * 2 + Bp * Cp * 4
                           + w_reads * (F * F * 2 + F * Cp * 2)
                           + F * 4 + Cp * 4),
    )

    def _call(single_buffer_resident_weights):
        w_mode = (pl.Buffered(1)
                  if (resident and single_buffer_resident_weights) else None)

        def spec(shape, index_map, mode=None):
            if mode is None:
                return pl.BlockSpec(shape, index_map)
            return pl.BlockSpec(shape, index_map, pipeline_mode=mode)

        grid_spec = pltpu.PrefetchScalarGridSpec(
            num_scalar_prefetch=0,
            grid=(n_btiles, n_chunks),
            in_specs=[
                spec((tb, F), lambda i, j: (i, 0)),                  # x (streamed over batch)
                spec((F, th), lambda i, j: (0, j), w_mode),          # w1 chunk
                spec((1, th), lambda i, j: (0, j), w_mode),          # b1 chunk
                spec((th, Cp), lambda i, j: (j, 0), w_mode),         # w2 chunk
                spec((1, Cp), lambda i, j: (0, 0), w_mode),          # b2 (constant)
            ],
            out_specs=pl.BlockSpec((tb, Cp), lambda i, j: (i, 0)),
            scratch_shapes=[pltpu.VMEM((tb, Cp), jnp.float32)],
        )
        return pl.pallas_call(
            mlp_probing_kernel,
            out_shape=jax.ShapeDtypeStruct((Bp, Cp), jnp.float32),
            grid_spec=grid_spec,
            compiler_params=pltpu.CompilerParams(
                dimension_semantics=("parallel", "arbitrary"),
                vmem_limit_bytes=vmem_limit,
            ),
            cost_estimate=cost,
        )(xp, w1b, b1, w2b, b2p)

    if resident:
        try:
            out = _call(True)
        except Exception:
            # Fallback if this jax build rejects Buffered(1) on the main
            # pallas_call pipeline: default double buffering (still correct,
            # just 2x weight VMEM residency).
            out = _call(False)
    else:
        out = _call(False)

    return out[:B, :C]


if __name__ == "__main__":
    # Batched so the "parallel" batch axis has >= 2 grid steps (both v7x TCs
    # get work) while staying small: batch=512 -> two tb=256 tiles,
    # feature_dim=256, num_classes=8 (padded to 128 lanes in the wrapper).
    B, FEATURE_DIM, NUM_CLASSES = 512, 256, 8

    key = jax.random.PRNGKey(0)
    kx, kw1, kb1, kw2, kb2 = jax.random.split(key, 5)

    # Deterministic parameter init (torch default Kaiming-uniform-like bounds).
    bound1 = 1.0 / (FEATURE_DIM ** 0.5)
    bound2 = 1.0 / (FEATURE_DIM ** 0.5)
    x = jax.random.normal(kx, (B, FEATURE_DIM), dtype=jnp.float32)
    # Stored already transposed: (in, out)
    w1 = jax.random.uniform(kw1, (FEATURE_DIM, FEATURE_DIM), jnp.float32,
                            -bound1, bound1)
    b1 = jax.random.uniform(kb1, (1, FEATURE_DIM), jnp.float32, -bound1, bound1)
    w2 = jax.random.uniform(kw2, (FEATURE_DIM, NUM_CLASSES), jnp.float32,
                            -bound2, bound2)
    b2 = jax.random.uniform(kb2, (1, NUM_CLASSES), jnp.float32, -bound2, bound2)

    out = mlp_probing(x, w1, b1, w2, b2)
    out = jax.block_until_ready(out)
    assert out.shape == (B, NUM_CLASSES)

    # Tight check: reference with the same bf16-operand / f32-accumulate recipe.
    xb16 = x.astype(jnp.bfloat16)
    w1b16 = w1.astype(jnp.bfloat16)
    w2b16 = w2.astype(jnp.bfloat16)
    h_ref = jnp.maximum(
        jnp.dot(xb16, w1b16, preferred_element_type=jnp.float32) + b1, 0.0)
    ref = jnp.dot(h_ref.astype(jnp.bfloat16), w2b16,
                  preferred_element_type=jnp.float32) + b2
    assert jnp.allclose(out, ref, atol=2e-3, rtol=2e-3)

    # Loose sanity check against the pure-f32 (torch-style) forward.
    ref32 = jnp.maximum(x @ w1 + b1, 0.0) @ w2 + b2
    rel_err = jnp.max(jnp.abs(out - ref32)) / (jnp.max(jnp.abs(ref32)) + 1e-6)
    assert rel_err < 0.05

    print("KERNEL_OK")
</pallas_src>

<mosaic_0001>
module attributes {stable_mosaic.version = 11 : i64} {
  func.func @mlp_probing_kernel(%arg0: i32, %arg1: i32, %arg2: memref<256x256xbf16, #tpu.memory_space<vmem>>, %arg3: memref<256x256xbf16, #tpu.memory_space<vmem>>, %arg4: memref<1x256xf32, #tpu.memory_space<vmem>>, %arg5: memref<256x128xbf16, #tpu.memory_space<vmem>>, %arg6: memref<1x128xf32, #tpu.memory_space<vmem>>, %arg7: memref<256x128xf32, #tpu.memory_space<vmem>>, %arg8: memref<256x128xf32, #tpu.memory_space<vmem>>) attributes {dimension_semantics = [#tpu.dimension_semantics<parallel>, #tpu.dimension_semantics<arbitrary>], iteration_bounds = array<i64: 2, 1>, scalar_prefetch = 0 : i64, scratch_operands = 1 : i64, tpu.core_type = #tpu.core_type<tc>, window_params = [{transform_indices = @transform_0, window_bounds = array<i64: 256, 256>}, {pipeline_mode = #tpu.pipeline_mode<synchronous>, transform_indices = @transform_1, window_bounds = array<i64: 256, 256>}, {pipeline_mode = #tpu.pipeline_mode<synchronous>, transform_indices = @transform_2, window_bounds = array<i64: 1, 256>}, {pipeline_mode = #tpu.pipeline_mode<synchronous>, transform_indices = @transform_3, window_bounds = array<i64: 256, 128>}, {pipeline_mode = #tpu.pipeline_mode<synchronous>, transform_indices = @transform_4, window_bounds = array<i64: 1, 128>}, {transform_indices = @transform_5, window_bounds = array<i64: 256, 128>}]} {
    %c0_i32 = arith.constant 0 : i32
    %0 = arith.cmpi eq, %arg1, %c0_i32 : i32
    %1 = arith.extui %0 : i1 to i32
    %c0_i32_0 = arith.constant 0 : i32
    %2 = arith.cmpi ne, %1, %c0_i32_0 : i32
    scf.if %2 {
      %cst_16 = arith.constant 0.000000e+00 : f32
      %20 = vector.broadcast %cst_16 : f32 to vector<256x128xf32>
      %c0_17 = arith.constant 0 : index
      %c0_18 = arith.constant 0 : index
      %21 = vector.load %arg8[%c0_17, %c0_18] : memref<256x128xf32, #tpu.memory_space<vmem>>, vector<256x128xf32>
      tpu.vector_store %arg8[%c0_17, %c0_18], %20 {strides = array<i32>} : memref<256x128xf32, #tpu.memory_space<vmem>>, vector<256x128xf32>,
    } else {
    }
    %c0 = arith.constant 0 : index
    %c0_1 = arith.constant 0 : index
    %3 = vector.load %arg2[%c0, %c0_1] : memref<256x256xbf16, #tpu.memory_space<vmem>>, vector<256x256xbf16>
    %c0_2 = arith.constant 0 : index
    %c0_3 = arith.constant 0 : index
    %4 = vector.load %arg3[%c0_2, %c0_3] : memref<256x256xbf16, #tpu.memory_space<vmem>>, vector<256x256xbf16>
    %cst = arith.constant dense<0.000000e+00> : vector<256x256xf32>
    %5 = tpu.matmul %3, %4, %cst {dimension_numbers = #tpu.dot_dimension_numbers<[1], [0], [0], [1], [0, 0, 1, 1], [], []>} : vector<256x256xbf16>, vector<256x256xbf16>, vector<256x256xf32> -> vector<256x256xf32>
    %c0_4 = arith.constant 0 : index
    %c0_5 = arith.constant 0 : index
    %6 = vector.load %arg4[%c0_4, %c0_5] : memref<1x256xf32, #tpu.memory_space<vmem>>, vector<1x256xf32>
    %7 = vector.broadcast %6 : vector<1x256xf32> to vector<256x256xf32>
    %8 = arith.addf %5, %7 : vector<256x256xf32>
    %cst_6 = arith.constant 0.000000e+00 : f32
    %9 = vector.broadcast %cst_6 : f32 to vector<256x256xf32>
    %10 = arith.maximumf %8, %9 : vector<256x256xf32>
    %c0_7 = arith.constant 0 : index
    %c0_8 = arith.constant 0 : index
    %11 = vector.load %arg8[%c0_7, %c0_8] : memref<256x128xf32, #tpu.memory_space<vmem>>, vector<256x128xf32>
    %12 = arith.truncf %10 : vector<256x256xf32> to vector<256x256xbf16>
    %c0_9 = arith.constant 0 : index
    %c0_10 = arith.constant 0 : index
    %13 = vector.load %arg5[%c0_9, %c0_10] : memref<256x128xbf16, #tpu.memory_space<vmem>>, vector<256x128xbf16>
    %cst_11 = arith.constant dense<0.000000e+00> : vector<256x128xf32>
    %14 = tpu.matmul %12, %13, %cst_11 {dimension_numbers = #tpu.dot_dimension_numbers<[1], [0], [0], [1], [0, 0, 1, 1], [], []>} : vector<256x256xbf16>, vector<256x128xbf16>, vector<256x128xf32> -> vector<256x128xf32>
    %15 = arith.addf %11, %14 : vector<256x128xf32>
    %c0_12 = arith.constant 0 : index
    %c0_13 = arith.constant 0 : index
    %16 = vector.load %arg8[%c0_12, %c0_13] : memref<256x128xf32, #tpu.memory_space<vmem>>, vector<256x128xf32>
    tpu.vector_store %arg8[%c0_12, %c0_13], %15 {strides = array<i32>} : memref<256x128xf32, #tpu.memory_space<vmem>>, vector<256x128xf32>,
    %c0_i32_14 = arith.constant 0 : i32
    %17 = arith.cmpi eq, %arg1, %c0_i32_14 : i32
    %18 = arith.extui %17 : i1 to i32
    %c0_i32_15 = arith.constant 0 : i32
    %19 = arith.cmpi ne, %18, %c0_i32_15 : i32
    scf.if %19 {
      %c0_16 = arith.constant 0 : index
      %c0_17 = arith.constant 0 : index
      %20 = vector.load %arg8[%c0_16, %c0_17] : memref<256x128xf32, #tpu.memory_space<vmem>>, vector<256x128xf32>
      %c0_18 = arith.constant 0 : index
      %c0_19 = arith.constant 0 : index
      %21 = vector.load %arg6[%c0_18, %c0_19] : memref<1x128xf32, #tpu.memory_space<vmem>>, vector<1x128xf32>
      %22 = vector.broadcast %21 : vector<1x128xf32> to vector<256x128xf32>
      %23 = arith.addf %20, %22 : vector<256x128xf32>
      %c0_20 = arith.constant 0 : index
      %c0_21 = arith.constant 0 : index
      %24 = vector.load %arg7[%c0_20, %c0_21] : memref<256x128xf32, #tpu.memory_space<vmem>>, vector<256x128xf32>
      tpu.vector_store %arg7[%c0_20, %c0_21], %23 {strides = array<i32>} : memref<256x128xf32, #tpu.memory_space<vmem>>, vector<256x128xf32>,
    } else {
    }
    return
  }
  func.func @transform_0(%arg0: i32, %arg1: i32) -> (i32, i32) {
    %c0_i32 = arith.constant 0 : i32
    %c0_i32_0 = arith.constant 0 : i32
    return %arg0, %c0_i32 : i32, i32
  }
  func.func @transform_1(%arg0: i32, %arg1: i32) -> (i32, i32) {
    %c0_i32 = arith.constant 0 : i32
    %c0_i32_0 = arith.constant 0 : i32
    return %c0_i32, %arg1 : i32, i32
  }
  func.func @transform_2(%arg0: i32, %arg1: i32) -> (i32, i32) {
    %c0_i32 = arith.constant 0 : i32
    %c0_i32_0 = arith.constant 0 : i32
    return %c0_i32, %arg1 : i32, i32
  }
  func.func @transform_3(%arg0: i32, %arg1: i32) -> (i32, i32) {
    %c0_i32 = arith.constant 0 : i32
    %c0_i32_0 = arith.constant 0 : i32
    return %arg1, %c0_i32 : i32, i32
  }
  func.func @transform_4(%arg0: i32, %arg1: i32) -> (i32, i32) {
    %c0_i32 = arith.constant 0 : i32
    %c0_i32_0 = arith.constant 0 : i32
    %c0_i32_1 = arith.constant 0 : i32
    return %c0_i32, %c0_i32_0 : i32, i32
  }
  func.func @transform_5(%arg0: i32, %arg1: i32) -> (i32, i32) {
    %c0_i32 = arith.constant 0 : i32
    %c0_i32_0 = arith.constant 0 : i32
    return %arg0, %c0_i32 : i32, i32
  }
}

module attributes {stable_mosaic.version = 11 : i64} {
  func.func @mlp_probing_kernel(%arg0: i32, %arg1: i32, %arg2: memref<256x256xbf16, #tpu.memory_space<vmem>>, %arg3: memref<256x256xbf16, #tpu.memory_space<vmem>>, %arg4: memref<1x256xf32, #tpu.memory_space<vmem>>, %arg5: memref<256x128xbf16, #tpu.memory_space<vmem>>, %arg6: memref<1x128xf32, #tpu.memory_space<vmem>>, %arg7: memref<256x128xf32, #tpu.memory_space<vmem>>, %arg8: memref<256x128xf32, #tpu.memory_space<vmem>>) attributes {dimension_semantics = [#tpu.dimension_semantics<parallel>, #tpu.dimension_semantics<arbitrary>], iteration_bounds = array<i64: 2, 1>, scalar_prefetch = 0 : i64, scratch_operands = 1 : i64, tpu.core_type = #tpu.core_type<tc>, window_params = [{transform_indices = @transform_0, window_bounds = array<i64: 256, 256>}, {transform_indices = @transform_1, window_bounds = array<i64: 256, 256>}, {transform_indices = @transform_2, window_bounds = array<i64: 1, 256>}, {transform_indices = @transform_3, window_bounds = array<i64: 256, 128>}, {pipeline_mode = #tpu.pipeline_mode<synchronous>, transform_indices = @transform_4, window_bounds = array<i64: 1, 128>}, {transform_indices = @transform_5, window_bounds = array<i64: 256, 128>}]} {
    %c0_i32 = arith.constant 0 : i32
    %0 = arith.cmpi eq, %arg1, %c0_i32 : i32
    %1 = arith.extui %0 : i1 to i32
    %c0_i32_0 = arith.constant 0 : i32
    %2 = arith.cmpi ne, %1, %c0_i32_0 : i32
    scf.if %2 {
      %cst_16 = arith.constant 0.000000e+00 : f32
      %20 = vector.broadcast %cst_16 : f32 to vector<256x128xf32>
      %c0_17 = arith.constant 0 : index
      %c0_18 = arith.constant 0 : index
      %21 = vector.load %arg8[%c0_17, %c0_18] : memref<256x128xf32, #tpu.memory_space<vmem>>, vector<256x128xf32>
      tpu.vector_store %arg8[%c0_17, %c0_18], %20 {strides = array<i32>} : memref<256x128xf32, #tpu.memory_space<vmem>>, vector<256x128xf32>,
    } else {
    }
    %c0 = arith.constant 0 : index
    %c0_1 = arith.constant 0 : index
    %3 = vector.load %arg2[%c0, %c0_1] : memref<256x256xbf16, #tpu.memory_space<vmem>>, vector<256x256xbf16>
    %c0_2 = arith.constant 0 : index
    %c0_3 = arith.constant 0 : index
    %4 = vector.load %arg3[%c0_2, %c0_3] : memref<256x256xbf16, #tpu.memory_space<vmem>>, vector<256x256xbf16>
    %cst = arith.constant dense<0.000000e+00> : vector<256x256xf32>
    %5 = tpu.matmul %3, %4, %cst {dimension_numbers = #tpu.dot_dimension_numbers<[1], [0], [0], [1], [0, 0, 1, 1], [], []>} : vector<256x256xbf16>, vector<256x256xbf16>, vector<256x256xf32> -> vector<256x256xf32>
    %c0_4 = arith.constant 0 : index
    %c0_5 = arith.constant 0 : index
    %6 = vector.load %arg4[%c0_4, %c0_5] : memref<1x256xf32, #tpu.memory_space<vmem>>, vector<1x256xf32>
    %7 = vector.broadcast %6 : vector<1x256xf32> to vector<256x256xf32>
    %8 = arith.addf %5, %7 : vector<256x256xf32>
    %cst_6 = arith.constant 0.000000e+00 : f32
    %9 = vector.broadcast %cst_6 : f32 to vector<256x256xf32>
    %10 = arith.maximumf %8, %9 : vector<256x256xf32>
    %c0_7 = arith.constant 0 : index
    %c0_8 = arith.constant 0 : index
    %11 = vector.load %arg8[%c0_7, %c0_8] : memref<256x128xf32, #tpu.memory_space<vmem>>, vector<256x128xf32>
    %12 = arith.truncf %10 : vector<256x256xf32> to vector<256x256xbf16>
    %c0_9 = arith.constant 0 : index
    %c0_10 = arith.constant 0 : index
    %13 = vector.load %arg5[%c0_9, %c0_10] : memref<256x128xbf16, #tpu.memory_space<vmem>>, vector<256x128xbf16>
    %cst_11 = arith.constant dense<0.000000e+00> : vector<256x128xf32>
    %14 = tpu.matmul %12, %13, %cst_11 {dimension_numbers = #tpu.dot_dimension_numbers<[1], [0], [0], [1], [0, 0, 1, 1], [], []>} : vector<256x256xbf16>, vector<256x128xbf16>, vector<256x128xf32> -> vector<256x128xf32>
    %15 = arith.addf %11, %14 : vector<256x128xf32>
    %c0_12 = arith.constant 0 : index
    %c0_13 = arith.constant 0 : index
    %16 = vector.load %arg8[%c0_12, %c0_13] : memref<256x128xf32, #tpu.memory_space<vmem>>, vector<256x128xf32>
    tpu.vector_store %arg8[%c0_12, %c0_13], %15 {strides = array<i32>} : memref<256x128xf32, #tpu.memory_space<vmem>>, vector<256x128xf32>,
    %c0_i32_14 = arith.constant 0 : i32
    %17 = arith.cmpi eq, %arg1, %c0_i32_14 : i32
    %18 = arith.extui %17 : i1 to i32
    %c0_i32_15 = arith.constant 0 : i32
    %19 = arith.cmpi ne, %18, %c0_i32_15 : i32
    scf.if %19 {
      %c0_16 = arith.constant 0 : index
      %c0_17 = arith.constant 0 : index
      %20 = vector.load %arg8[%c0_16, %c0_17] : memref<256x128xf32, #tpu.memory_space<vmem>>, vector<256x128xf32>
      %c0_18 = arith.constant 0 : index
      %c0_19 = arith.constant 0 : index
      %21 = vector.load %arg6[%c0_18, %c0_19] : memref<1x128xf32, #tpu.memory_space<vmem>>, vector<1x128xf32>
      %22 = vector.broadcast %21 : vector<1x128xf32> to vector<256x128xf32>
      %23 = arith.addf %20, %22 : vector<256x128xf32>
      %c0_20 = arith.constant 0 : index
      %c0_21 = arith.constant 0 : index
      %24 = vector.load %arg7[%c0_20, %c0_21] : memref<256x128xf32, #tpu.memory_space<vmem>>, vector<256x128xf32>
      tpu.vector_store %arg7[%c0_20, %c0_21], %23 {strides = array<i32>} : memref<256x128xf32, #tpu.memory_space<vmem>>, vector<256x128xf32>,
    } else {
    }
    return
  }
  func.func @transform_0(%arg0: i32, %arg1: i32) -> (i32, i32) {
    %c0_i32 = arith.constant 0 : i32
    %c0_i32_0 = arith.constant 0 : i32
    return %arg0, %c0_i32 : i32, i32
  }
  func.func @transform_1(%arg0: i32, %arg1: i32) -> (i32, i32) {
    %c0_i32 = arith.constant 0 : i32
    %c0_i32_0 = arith.constant 0 : i32
    return %c0_i32, %arg1 : i32, i32
  }
  func.func @transform_2(%arg0: i32, %arg1: i32) -> (i32, i32) {
    %c0_i32 = arith.constant 0 : i32
    %c0_i32_0 = arith.constant 0 : i32
    return %c0_i32, %arg1 : i32, i32
  }
  func.func @transform_3(%arg0: i32, %arg1: i32) -> (i32, i32) {
    %c0_i32 = arith.constant 0 : i32
    %c0_i32_0 = arith.constant 0 : i32
    return %arg1, %c0_i32 : i32, i32
  }
  func.func @transform_4(%arg0: i32, %arg1: i32) -> (i32, i32) {
    %c0_i32 = arith.constant 0 : i32
    %c0_i32_0 = arith.constant 0 : i32
    %c0_i32_1 = arith.constant 0 : i32
    return %c0_i32, %c0_i32_0 : i32, i32
  }
  func.func @transform_5(%arg0: i32, %arg1: i32) -> (i32, i32) {
    %c0_i32 = arith.constant 0 : i32
    %c0_i32_0 = arith.constant 0 : i32
    return %arg0, %c0_i32 : i32, i32
  }
}

</mosaic_0001>

<llo_original>
// kernel: tpu_custom_call.1
$region0: #{tpu_custom_call.1}
  #allocation0 [shape = 'u32[]', space=smem, size = 0x4, offset = 0x4, fixed_abs, tag = 'smem constant byte address 0x4 - core index']
  #allocation1 [shape = 'u32[72,128]{1,0:T(1,128)}', space=vmem, size = 0x9000, scoped, tag = 'internal scratch']
  #allocation2 [shape = 'f32[256,128]{1,0:T(8,128)}', space=vmem, size = 0x20000, scoped, tag = 'scratch operand']
  %s0 = inlined_call_operand.hbm [shape: bf16[512,256], index: 0, kind: input, shape index: {}]
  %s1 = inlined_call_operand.hbm [shape: bf16[256,256], index: 1, kind: input, shape index: {}]
  %s2 = inlined_call_operand.hbm [shape: f32[1,256], index: 2, kind: input, shape index: {}]
  %s3 = inlined_call_operand.hbm [shape: bf16[256,128], index: 3, kind: input, shape index: {}]
  %s4 = inlined_call_operand.vmem [shape: f32[1,128], index: 4, kind: input, shape index: {}]
  %s5 = inlined_call_operand.hbm [shape: f32[512,128], index: 5, kind: output, shape index: {}]
  %s6 = sld [smem:[#allocation0]]
  $region77: #{tpu_custom_call.1} parent=0
    _
  %s8 = ssub.s32 1, %s6
  %s9 = scalar_select 0, %s8, %s6
  $region1: #{tpu_custom_call.1} parent=0
    #allocation3 [shape = 'u8[262144]{0}', space=vmem, size = 0x40000, scoped, tag = 'input window, operand 0']
    #allocation4 [shape = 's32[2]{0}', space=sflag, size = 0x8, scoped, tag = 'scoped memory for tpu_custom_call.1']
    #allocation5 [shape = 's32[2]{0}', space=sflag, size = 0x8, scoped, tag = 'scoped memory for tpu_custom_call.1']
    #allocation6 [shape = 'u8[131072]{0}', space=vmem, size = 0x20000, scoped, tag = 'input window, operand 1, single buffered']
    #allocation7 [shape = 's32[1]{0}', space=sflag, size = 0x4, scoped, tag = 'scoped memory for tpu_custom_call.1']
    #allocation8 [shape = 'u8[1024]{0}', space=vmem, size = 0x400, scoped, tag = 'input window, operand 2, single buffered']
    #allocation9 [shape = 'u8[65536]{0}', space=vmem, size = 0x10000, scoped, tag = 'input window, operand 3, single buffered']
    #allocation10 [shape = 's32[1]{0}', space=sflag, size = 0x4, scoped, tag = 'scoped memory for tpu_custom_call.1']
    #allocation11 [shape = 'u8[262144]{0}', space=vmem, size = 0x40000, scoped, tag = 'output window, operand 0']
    %10 = vsyncpa [#allocation4], 0
    %s11 = scalar_lea.sflag [#allocation4], 1
    %12 = vsyncpa %s11, 0
    %13 = vsyncpa [#allocation7], 0
    %14 = vsyncpa [#allocation10], 0
    %15 = vsyncpa [#allocation5], 0
    %s16 = scalar_lea.sflag [#allocation5], 1
    %17 = vsyncpa %s16, 0
    loop: start=0, step=1, limit=4
    $region2: #{tpu_custom_call.1} parent=1 // loop_pre_header
      _
    $region3: #{tpu_custom_call.1} parent=1 // loop_header
      %s19 = sphi 0, %s23
      %p20 = scmp.ge.s32.totalorder %s19, 4
      %s26 = sphi 0, %s38
      %s27 = sphi 0, %s34
      %s28 = sphi 0, %s26
      %s29 = sphi 0, %s27
      %s30 = sphi 0, %s28
      %s31 = sphi 0, %s29
      %s41 = sphi 0, %s43
      %s44 = sphi 0, %s41
      %s45 = sphi 0, %s44
      %s61 = sphi 0, %s45
      %s67 = sphi 0, %s69
      %s70 = sphi 0, %s67
      %s71 = sphi 0, %s70
      %s87 = sphi 0, %s71
      %s93 = sphi 0, %s95
      %s96 = sphi 0, %s93
      %s97 = sphi 0, %s96
      %s113 = sphi 0, %s97
      %s119 = sphi 0, %s121
      %s122 = sphi 0, %s119
      %s123 = sphi 0, %s122
      %s139 = sphi 0, %s123
      %s143 = sphi 0, %s143
      %s145 = sphi 0, %s143
      %s146 = sphi 0, %s145
      %s160 = sphi 0, %s146
      %s166 = sphi 0, %s168
      %s169 = sphi 0, %s166
      %s170 = sphi 0, %s169
      %s186 = sphi 0, %s170
    $region4: #{tpu_custom_call.1} parent=1 // loop_header_branch
      %22 = sbr.rel (%p20) target = $region8
    $region5: #{tpu_custom_call.1} parent=1 // loop_body
      %s24 = ssub.s32 %s19, 1
      %s25 = ssub.s32 %s19, 2
      %s32 = sadd.s32 1, %s27
      %p33 = scmp.ge.s32.totalorder %s32, 1
      %s34 = scalar_select %p33, 0, %s32
      %s35 = sadd.s32 1, %s26
      %s36 = scalar_select %p33, %s35, %s26
      %p37 = scmp.ge.s32.totalorder %s36, 2
      %s38 = scalar_select %p37, 0, %s36
      %s39 = ssub.s32 %s26, %s38
      %p40 = scmp.eq.s32.totalorder %s39, 0
      %s42 = sadd.s32 %s41, 1
      %s43 = scalar_select %p40, %s41, %s42
      %p46 = pneg %p40
      %p47 = scmp.eq.s32.totalorder %s19, 1
      %p48 = por %p46, %p47
      %p49 = scmp.ne.s32.totalorder %s41, %s44
      %p50 = scmp.eq.s32.totalorder %s19, 0
      %p51 = por %p49, %p50
      %p52 = scmp.ne.s32.totalorder %s41, %s44
      %p53 = scmp.eq.s32.totalorder %s24, 1
      %p54 = por %p52, %p53
      %p55 = scmp.ne.s32.totalorder %s44, %s45
      %p56 = scmp.eq.s32.totalorder %s24, 0
      %p57 = por %p55, %p56
      %p58 = scmp.ne.s32.totalorder %s44, %s45
      %p59 = scmp.eq.s32.totalorder %s25, 1
      %p60 = por %p58, %p59
      %p62 = scmp.ne.s32.totalorder %s45, %s61
      %p63 = scmp.eq.s32.totalorder %s25, 0
      %p64 = por %p62, %p63
      %s65 = ssub.s32 %s27, %s34
      %p66 = scmp.eq.s32.totalorder %s65, 0
      %s68 = sadd.s32 %s67, 1
      %s69 = scalar_select %p66, %s67, %s68
      %p72 = pneg %p66
      %p73 = scmp.eq.s32.totalorder %s19, 1
      %p74 = por %p72, %p73
      %p75 = scmp.ne.s32.totalorder %s67, %s70
      %p76 = scmp.eq.s32.totalorder %s19, 0
      %p77 = por %p75, %p76
      %p78 = scmp.ne.s32.totalorder %s67, %s70
      %p79 = scmp.eq.s32.totalorder %s24, 1
      %p80 = por %p78, %p79
      %p81 = scmp.ne.s32.totalorder %s70, %s71
      %p82 = scmp.eq.s32.totalorder %s24, 0
      %p83 = por %p81, %p82
      %p84 = scmp.ne.s32.totalorder %s70, %s71
      %p85 = scmp.eq.s32.totalorder %s25, 1
      %p86 = por %p84, %p85
      %p88 = scmp.ne.s32.totalorder %s71, %s87
      %p89 = scmp.eq.s32.totalorder %s25, 0
      %p90 = por %p88, %p89
      %s91 = ssub.s32 %s27, %s34
      %p92 = scmp.eq.s32.totalorder %s91, 0
      %s94 = sadd.s32 %s93, 1
      %s95 = scalar_select %p92, %s93, %s94
      %p98 = pneg %p92
      %p99 = scmp.eq.s32.totalorder %s19, 1
      %p100 = por %p98, %p99
      %p101 = scmp.ne.s32.totalorder %s93, %s96
      %p102 = scmp.eq.s32.totalorder %s19, 0
      %p103 = por %p101, %p102
      %p104 = scmp.ne.s32.totalorder %s93, %s96
      %p105 = scmp.eq.s32.totalorder %s24, 1
      %p106 = por %p104, %p105
      %p107 = scmp.ne.s32.totalorder %s96, %s97
      %p108 = scmp.eq.s32.totalorder %s24, 0
      %p109 = por %p107, %p108
      %p110 = scmp.ne.s32.totalorder %s96, %s97
      %p111 = scmp.eq.s32.totalorder %s25, 1
      %p112 = por %p110, %p111
      %p114 = scmp.ne.s32.totalorder %s97, %s113
      %p115 = scmp.eq.s32.totalorder %s25, 0
      %p116 = por %p114, %p115
      %s117 = ssub.s32 %s27, %s34
      %p118 = scmp.eq.s32.totalorder %s117, 0
      %s120 = sadd.s32 %s119, 1
      %s121 = scalar_select %p118, %s119, %s120
      %p124 = pneg %p118
      %p125 = scmp.eq.s32.totalorder %s19, 1
      %p126 = por %p124, %p125
      %p127 = scmp.ne.s32.totalorder %s119, %s122
      %p128 = scmp.eq.s32.totalorder %s19, 0
      %p129 = por %p127, %p128
      %p130 = scmp.ne.s32.totalorder %s119, %s122
      %p131 = scmp.eq.s32.totalorder %s24, 1
      %p132 = por %p130, %p131
      %p133 = scmp.ne.s32.totalorder %s122, %s123
      %p134 = scmp.eq.s32.totalorder %s24, 0
      %p135 = por %p133, %p134
      %p136 = scmp.ne.s32.totalorder %s122, %s123
      %p137 = scmp.eq.s32.totalorder %s25, 1
      %p138 = por %p136, %p137
      %p140 = scmp.ne.s32.totalorder %s123, %s139
      %p141 = scmp.eq.s32.totalorder %s25, 0
      %p142 = por %p140, %p141
      %s144 = sadd.s32 %s143, 1
      %p147 = scmp.eq.s32.totalorder %s19, 1
      %p148 = scmp.ne.s32.totalorder %s143, %s145
      %p149 = scmp.eq.s32.totalorder %s19, 0
      %p150 = por %p148, %p149
      %p151 = scmp.ne.s32.totalorder %s143, %s145
      %p152 = scmp.eq.s32.totalorder %s24, 1
      %p153 = por %p151, %p152
      %p154 = scmp.ne.s32.totalorder %s145, %s146
      %p155 = scmp.eq.s32.totalorder %s24, 0
      %p156 = por %p154, %p155
      %p157 = scmp.ne.s32.totalorder %s145, %s146
      %p158 = scmp.eq.s32.totalorder %s25, 1
      %p159 = por %p157, %p158
      %p161 = scmp.ne.s32.totalorder %s146, %s160
      %p162 = scmp.eq.s32.totalorder %s25, 0
      %p163 = por %p161, %p162
      %s164 = ssub.s32 %s26, %s38
      %p165 = scmp.eq.s32.totalorder %s164, 0
      %s167 = sadd.s32 %s166, 1
      %s168 = scalar_select %p165, %s166, %s167
      %p171 = pneg %p165
      %p172 = scmp.eq.s32.totalorder %s19, 1
      %p173 = por %p171, %p172
      %p174 = scmp.ne.s32.totalorder %s166, %s169
      %p175 = scmp.eq.s32.totalorder %s19, 0
      %p176 = por %p174, %p175
      %p177 = scmp.ne.s32.totalorder %s166, %s169
      %p178 = scmp.eq.s32.totalorder %s24, 1
      %p179 = por %p177, %p178
      %p180 = scmp.ne.s32.totalorder %s169, %s170
      %p181 = scmp.eq.s32.totalorder %s24, 0
      %p182 = por %p180, %p181
      %p183 = scmp.ne.s32.totalorder %s169, %s170
      %p184 = scmp.eq.s32.totalorder %s25, 1
      %p185 = por %p183, %p184
      %p187 = scmp.ne.s32.totalorder %s170, %s186
      %p188 = scmp.eq.s32.totalorder %s25, 0
      %p189 = por %p187, %p188
      %p190 = scmp.le.s32.totalorder 1, %s19
      %p191 = scmp.lt.s32.totalorder %s19, 3
      %p192 = pnand %p190, %p191
      %p193 = pneg %p192
      // Predicated region
      $region9: #{tpu_custom_call.1} parent=5 // pred_check
        _
      $region10: #{tpu_custom_call.1} parent=5 // pred_check_branch
        %195 = sbr.rel (%p192) target = $region12
      $region11: #{tpu_custom_call.1} parent=5 // pred_region
        %s196 = ssub.s32 %s19, 1
        // Predicated region
        $region13: #{tpu_custom_call.1} parent=11 // pred_check
          %p197 = pneg %p83
        $region14: #{tpu_custom_call.1} parent=11 // pred_check_branch
          %199 = sbr.rel (%p197) target = $region16
        $region15: #{tpu_custom_call.1} parent=11 // pred_region
          %s200 = smul.u32 2, %s29
          %202 = vsyncadd [#allocation7], 0
          %s203 = smul.addr %s200, 4
          %s204 = scalar_lea.hbm %s1, %s203
          %s205 = sshll.u32 %s204, 4
          %s206 = int_to_ptr.hbm [resolvable:$true] %s205
          %s207 = sshll.u32 [#allocation6], 4
          %s208 = int_to_ptr.vmem [resolvable:$true] %s207
          %213 = dma.hbm_to_vmem [thread:$0]  %s206, 4096, %s208, [#allocation7], 128, 128, 8
        $region16: #{tpu_custom_call.1} parent=11 // pred_fallthru
          _
        // Predicated region
        $region17: #{tpu_custom_call.1} parent=11 // pred_check
          %p214 = pneg %p109
        $region18: #{tpu_custom_call.1} parent=11 // pred_check_branch
          %216 = sbr.rel (%p214) target = $region20
        $region19: #{tpu_custom_call.1} parent=11 // pred_region
          %s217 = smul.u32 2, %s29
          %219 = vsyncadd [#allocation7], 0
          %s220 = scalar_lea.hbm %s2, %s217
          %s222 = sshll.u32 %s220, 4
          %s223 = int_to_ptr.hbm [resolvable:$true] %s222
          %s224 = sshll.u32 [#allocation8], 4
          %s225 = int_to_ptr.vmem [resolvable:$true] %s224
          %227 = dma.hbm_to_vmem [thread:$0]  %s223, 32, %s225, [#allocation7]
        $region20: #{tpu_custom_call.1} parent=11 // pred_fallthru
          _
        // Predicated region
        $region21: #{tpu_custom_call.1} parent=11 // pred_check
          %p228 = pneg %p135
        $region22: #{tpu_custom_call.1} parent=11 // pred_check_branch
          %230 = sbr.rel (%p228) target = $region24
        $region23: #{tpu_custom_call.1} parent=11 // pred_region
          %s231 = smul.u32 32, %s29
          %233 = vsyncadd [#allocation10], 0
          %s234 = smul.addr %s231, 4
          %s235 = scalar_lea.hbm %s3, %s234
          %s236 = sshll.u32 %s235, 4
          %s237 = int_to_ptr.hbm [resolvable:$true] %s236
          %s238 = sshll.u32 [#allocation9], 4
          %s239 = int_to_ptr.vmem [resolvable:$true] %s238
          %244 = dma.hbm_to_vmem [thread:$0]  %s237, 2048, %s239, [#allocation10], 64, 64, 4
        $region24: #{tpu_custom_call.1} parent=11 // pred_fallthru
          _
        // Predicated region
        $region25: #{tpu_custom_call.1} parent=11 // pred_check
          %p245 = pneg %p156
        $region26: #{tpu_custom_call.1} parent=11 // pred_check_branch
          %247 = sbr.rel (%p245) target = $region28
        $region27: #{tpu_custom_call.1} parent=11 // pred_region
          _
        $region28: #{tpu_custom_call.1} parent=11 // pred_fallthru
          _
      $region12: #{tpu_custom_call.1} parent=5 // pred_fallthru
        _
      %p248 = scmp.lt.s32.totalorder %s19, 2
      // Predicated region
      $region29: #{tpu_custom_call.1} parent=5 // pred_check
        %p249 = pneg %p248
      $region30: #{tpu_custom_call.1} parent=5 // pred_check_branch
        %251 = sbr.rel (%p249) target = $region32
      $region31: #{tpu_custom_call.1} parent=5 // pred_region
        // Predicated region
        $region33: #{tpu_custom_call.1} parent=31 // pred_check
          %p252 = pneg %p51
        $region34: #{tpu_custom_call.1} parent=31 // pred_check_branch
          %254 = sbr.rel (%p252) target = $region36
        $region35: #{tpu_custom_call.1} parent=31 // pred_region
          %s255 = sand.u32 %s41, 1
          %s256 = scalar_lea.sflag [#allocation4], %s255
          %s257 = sand.u32 %s41, 1
          %s258 = smul.addr %s257, 256
          %s259 = scalar_lea.vmem [#allocation3], %s258
          %s260 = smul.u32 32, %s26
          %262 = vsyncadd %s256, 0
          %s263 = smul.addr %s260, 2
          %s264 = smul.addr %s263, 4
          %s265 = scalar_lea.hbm %s0, %s264
          %s266 = sshll.u32 %s265, 4
          %s267 = int_to_ptr.hbm [resolvable:$true] %s266
          %s268 = sshll.u32 %s259, 4
          %s269 = int_to_ptr.vmem [resolvable:$true] %s268
          %274 = dma.hbm_to_vmem [thread:$0]  %s267, 4096, %s269, %s256, 128, 128, 8
        $region36: #{tpu_custom_call.1} parent=31 // pred_fallthru
          _
      $region32: #{tpu_custom_call.1} parent=5 // pred_fallthru
        _
      %p275 = scmp.le.s32.totalorder 1, %s19
      %p276 = scmp.lt.s32.totalorder %s19, 3
      %p277 = pnand %p275, %p276
      %p278 = pneg %p277
      // Predicated region
      $region37: #{tpu_custom_call.1} parent=5 // pred_check
        _
      $region38: #{tpu_custom_call.1} parent=5 // pred_check_branch
        %280 = sbr.rel (%p277) target = $region40
      $region39: #{tpu_custom_call.1} parent=5 // pred_region
        %s281 = ssub.s32 %s19, 1
        %s282 = sand.u32 %s44, 1
        %s283 = scalar_lea.sflag [#allocation4], %s282
        %s284 = sand.u32 %s44, 1
        %s285 = smul.addr %s284, 256
        %s286 = scalar_lea.vmem [#allocation3], %s285
        // Predicated region
        $region41: #{tpu_custom_call.1} parent=39 // pred_check
          %p287 = pneg %p57
        $region42: #{tpu_custom_call.1} parent=39 // pred_check_branch
          %289 = sbr.rel (%p287) target = $region44
        $region43: #{tpu_custom_call.1} parent=39 // pred_region
          %291 = dma.done %s283, 4096
        $region44: #{tpu_custom_call.1} parent=39 // pred_fallthru
          _
        // Predicated region
        $region45: #{tpu_custom_call.1} parent=39 // pred_check
          %p292 = pneg %p83
        $region46: #{tpu_custom_call.1} parent=39 // pred_check_branch
          %294 = sbr.rel (%p292) target = $region48
        $region47: #{tpu_custom_call.1} parent=39 // pred_region
          %296 = dma.done [#allocation7], 4096
        $region48: #{tpu_custom_call.1} parent=39 // pred_fallthru
          _
        // Predicated region
        $region49: #{tpu_custom_call.1} parent=39 // pred_check
          %p297 = pneg %p109
        $region50: #{tpu_custom_call.1} parent=39 // pred_check_branch
          %299 = sbr.rel (%p297) target = $region52
        $region51: #{tpu_custom_call.1} parent=39 // pred_region
          %301 = dma.done [#allocation7], 32
        $region52: #{tpu_custom_call.1} parent=39 // pred_fallthru
          _
        // Predicated region
        $region53: #{tpu_custom_call.1} parent=39 // pred_check
          %p302 = pneg %p135
        $region54: #{tpu_custom_call.1} parent=39 // pred_check_branch
          %304 = sbr.rel (%p302) target = $region56
        $region55: #{tpu_custom_call.1} parent=39 // pred_region
          %306 = dma.done [#allocation10], 2048
        $region56: #{tpu_custom_call.1} parent=39 // pred_fallthru
          _
        %s307 = sand.u32 %s44, 1
        %s308 = scalar_lea.sflag [#allocation4], %s307
        %s309 = sand.u32 %s44, 1
        %s310 = smul.addr %s309, 256
        %s311 = scalar_lea.vmem [#allocation3], %s310
        %p312 = pneg %p57
        %p313 = pneg %p54
        %p314 = pneg %p83
        %p315 = pneg %p80
        %p316 = pneg %p109
        %p317 = pneg %p106
        %p318 = pneg %p135
        %p319 = pneg %p132
        %p320 = pneg %p156
        %p321 = pneg %p153
        %p322 = pneg %p182
        %p323 = pneg %p179
        %s324 = sand.u32 %s169, 1
        %s325 = scalar_lea.sflag [#allocation5], %s324
        %s326 = sand.u32 %s169, 1
        %s327 = smul.addr %s326, 256
        %s328 = scalar_lea.vmem [#allocation11], %s327
        %s329 = smul.u32 32, %s28
        %s330 = smul.u32 2, %s29
        %s331 = smul.u32 2, %s29
        %s332 = smul.u32 32, %s29
        %s333 = smul.u32 32, %s28
        %p334 = scmp.eq.s32.totalorder %s29, 0
        // Predicated region
        $region57: #{tpu_custom_call.1} parent=39 // pred_check
          %p335 = pneg %p334
        $region58: #{tpu_custom_call.1} parent=39 // pred_check_branch
          %337 = sbr.rel (%p335) target = $region60
        $region59: #{tpu_custom_call.1} parent=39 // pred_region
          %338 = vst [vmem:[#allocation2] sm:$0xff] 0.0
          %339 = vst [vmem:[#allocation2 + $0x8] sm:$0xff] 0.0
          %340 = vst [vmem:[#allocation2 + $0x10] sm:$0xff] 0.0
          %341 = vst [vmem:[#allocation2 + $0x18] sm:$0xff] 0.0
          %342 = vst [vmem:[#allocation2 + $0x20] sm:$0xff] 0.0
          %343 = vst [vmem:[#allocation2 + $0x28] sm:$0xff] 0.0
          %344 = vst [vmem:[#allocation2 + $0x30] sm:$0xff] 0.0
          %345 = vst [vmem:[#allocation2 + $0x38] sm:$0xff] 0.0
          %346 = vst [vmem:[#allocation2 + $0x40] sm:$0xff] 0.0
          %347 = vst [vmem:[#allocation2 + $0x48] sm:$0xff] 0.0
          %348 = vst [vmem:[#allocation2 + $0x50] sm:$0xff] 0.0
          %349 = vst [vmem:[#allocation2 + $0x58] sm:$0xff] 0.0
          %350 = vst [vmem:[#allocation2 + $0x60] sm:$0xff] 0.0
          %351 = vst [vmem:[#allocation2 + $0x68] sm:$0xff] 0.0
          %352 = vst [vmem:[#allocation2 + $0x70] sm:$0xff] 0.0
          %353 = vst [vmem:[#allocation2 + $0x78] sm:$0xff] 0.0
          %354 = vst [vmem:[#allocation2 + $0x80] sm:$0xff] 0.0
          %355 = vst [vmem:[#allocation2 + $0x88] sm:$0xff] 0.0
          %356 = vst [vmem:[#allocation2 + $0x90] sm:$0xff] 0.0
          %357 = vst [vmem:[#allocation2 + $0x98] sm:$0xff] 0.0
          %358 = vst [vmem:[#allocation2 + $0xa0] sm:$0xff] 0.0
          %359 = vst [vmem:[#allocation2 + $0xa8] sm:$0xff] 0.0
          %360 = vst [vmem:[#allocation2 + $0xb0] sm:$0xff] 0.0
          %361 = vst [vmem:[#allocation2 + $0xb8] sm:$0xff] 0.0
          %362 = vst [vmem:[#allocation2 + $0xc0] sm:$0xff] 0.0
          %363 = vst [vmem:[#allocation2 + $0xc8] sm:$0xff] 0.0
          %364 = vst [vmem:[#allocation2 + $0xd0] sm:$0xff] 0.0
          %365 = vst [vmem:[#allocation2 + $0xd8] sm:$0xff] 0.0
          %366 = vst [vmem:[#allocation2 + $0xe0] sm:$0xff] 0.0
          %367 = vst [vmem:[#allocation2 + $0xe8] sm:$0xff] 0.0
          %368 = vst [vmem:[#allocation2 + $0xf0] sm:$0xff] 0.0
          %369 = vst [vmem:[#allocation2 + $0xf8] sm:$0xff] 0.0
        $region60: #{tpu_custom_call.1} parent=39 // pred_fallthru
          _
        %v370 = vld [vmem:[%s286] sm:$0xff]
        %v371 = vld [vmem:[%s286 + $0x8] sm:$0xff]
        %v372 = vld [vmem:[%s286 + $0x10] sm:$0xff]
        %v373 = vld [vmem:[%s286 + $0x18] sm:$0xff]
        %v374 = vld [vmem:[%s286 + $0x20] sm:$0xff]
        %v375 = vld [vmem:[%s286 + $0x28] sm:$0xff]
        %v376 = vld [vmem:[%s286 + $0x30] sm:$0xff]
        %v377 = vld [vmem:[%s286 + $0x38] sm:$0xff]
        %v378 = vld [vmem:[%s286 + $0x40] sm:$0xff]
        %v379 = vld [vmem:[%s286 + $0x48] sm:$0xff]
        %v380 = vld [vmem:[%s286 + $0x50] sm:$0xff]
        %v381 = vld [vmem:[%s286 + $0x58] sm:$0xff]
        %v382 = vld [vmem:[%s286 + $0x60] sm:$0xff]
        %v383 = vld [vmem:[%s286 + $0x68] sm:$0xff]
        %v384 = vld [vmem:[%s286 + $0x70] sm:$0xff]
        %v385 = vld [vmem:[%s286 + $0x78] sm:$0xff]
        %v386 = vld [vmem:[%s286 + $0x80] sm:$0xff]
        %v387 = vld [vmem:[%s286 + $0x88] sm:$0xff]
        %v388 = vld [vmem:[%s286 + $0x90] sm:$0xff]
        %v389 = vld [vmem:[%s286 + $0x98] sm:$0xff]
        %v390 = vld [vmem:[%s286 + $0xa0] sm:$0xff]
        %v391 = vld [vmem:[%s286 + $0xa8] sm:$0xff]
        %v392 = vld [vmem:[%s286 + $0xb0] sm:$0xff]
        %v393 = vld [vmem:[%s286 + $0xb8] sm:$0xff]
        %v394 = vld [vmem:[%s286 + $0xc0] sm:$0xff]
        %v395 = vld [vmem:[%s286 + $0xc8] sm:$0xff]
        %v396 = vld [vmem:[%s286 + $0xd0] sm:$0xff]
        %v397 = vld [vmem:[%s286 + $0xd8] sm:$0xff]
        %v398 = vld [vmem:[%s286 + $0xe0] sm:$0xff]
        %v399 = vld [vmem:[%s286 + $0xe8] sm:$0xff]
        %v400 = vld [vmem:[%s286 + $0xf0] sm:$0xff]
        %v401 = vld [vmem:[%s286 + $0xf8] sm:$0xff]
        %v402 = vld [vmem:[#allocation6] sm:$0xff]
        %v403 = vld [vmem:[#allocation6 + $0x8] sm:$0xff]
        %v404 = vld [vmem:[#allocation6 + $0x10] sm:$0xff]
        %v405 = vld [vmem:[#allocation6 + $0x18] sm:$0xff]
        %v406 = vld [vmem:[#allocation6 + $0x20] sm:$0xff]
        %v407 = vld [vmem:[#allocation6 + $0x28] sm:$0xff]
        %v408 = vld [vmem:[#allocation6 + $0x30] sm:$0xff]
        %v409 = vld [vmem:[#allocation6 + $0x38] sm:$0xff]
        %v410 = vld [vmem:[#allocation6 + $0x40] sm:$0xff]
        %v411 = vld [vmem:[#allocation6 + $0x48] sm:$0xff]
        %v412 = vld [vmem:[#allocation6 + $0x50] sm:$0xff]
        %v413 = vld [vmem:[#allocation6 + $0x58] sm:$0xff]
        %v414 = vld [vmem:[#allocation6 + $0x60] sm:$0xff]
        %v415 = vld [vmem:[#allocation6 + $0x68] sm:$0xff]
        %v416 = vld [vmem:[#allocation6 + $0x70] sm:$0xff]
        %v417 = vld [vmem:[#allocation6 + $0x78] sm:$0xff]
        %v418 = vld [vmem:[#allocation6 + $0x80] sm:$0xff]
        %v419 = vld [vmem:[#allocation6 + $0x88] sm:$0xff]
        %v420 = vld [vmem:[#allocation6 + $0x90] sm:$0xff]
        %v421 = vld [vmem:[#allocation6 + $0x98] sm:$0xff]
        %v422 = vld [vmem:[#allocation6 + $0xa0] sm:$0xff]
        %v423 = vld [vmem:[#allocation6 + $0xa8] sm:$0xff]
        %v424 = vld [vmem:[#allocation6 + $0xb0] sm:$0xff]
        %v425 = vld [vmem:[#allocation6 + $0xb8] sm:$0xff]
        %v426 = vld [vmem:[#allocation6 + $0xc0] sm:$0xff]
        %v427 = vld [vmem:[#allocation6 + $0xc8] sm:$0xff]
        %v428 = vld [vmem:[#allocation6 + $0xd0] sm:$0xff]
        %v429 = vld [vmem:[#allocation6 + $0xd8] sm:$0xff]
        %v430 = vld [vmem:[#allocation6 + $0xe0] sm:$0xff]
        %v431 = vld [vmem:[#allocation6 + $0xe8] sm:$0xff]
        %v432 = vld [vmem:[#allocation6 + $0xf0] sm:$0xff]
        %v433 = vld [vmem:[#allocation6 + $0xf8] sm:$0xff]
        %v434 = vld [vmem:[#allocation8] sm:$0x3]
        %v436 = vperm.slane %v434, 0
        %v437 = vperm.slane %v434, 1
        %v472 = vunpack.c.l.b16 %v370
        %v473 = vunpack.c.h.b16 %v370
        %v474 = vunpack.c.l.b16 %v371
        %v475 = vunpack.c.h.b16 %v371
        %v476 = vunpack.c.l.b16 %v372
        %v477 = vunpack.c.h.b16 %v372
        %v478 = vunpack.c.l.b16 %v373
        %v479 = vunpack.c.h.b16 %v373
        %v480 = vunpack.c.l.b16 %v374
        %v481 = vunpack.c.h.b16 %v374
        %v482 = vunpack.c.l.b16 %v375
        %v483 = vunpack.c.h.b16 %v375
        %v484 = vunpack.c.l.b16 %v376
        %v485 = vunpack.c.h.b16 %v376
        %v486 = vunpack.c.l.b16 %v377
        %v487 = vunpack.c.h.b16 %v377
        %v488 = vunpack.c.l.b16 %v378
        %v489 = vunpack.c.h.b16 %v378
        %v490 = vunpack.c.l.b16 %v379
        %v491 = vunpack.c.h.b16 %v379
        %v492 = vunpack.c.l.b16 %v380
        %v493 = vunpack.c.h.b16 %v380
        %v494 = vunpack.c.l.b16 %v381
        %v495 = vunpack.c.h.b16 %v381
        %v496 = vunpack.c.l.b16 %v382
        %v497 = vunpack.c.h.b16 %v382
        %v498 = vunpack.c.l.b16 %v383
        %v499 = vunpack.c.h.b16 %v383
        %v500 = vunpack.c.l.b16 %v384
        %v501 = vunpack.c.h.b16 %v384
        %v502 = vunpack.c.l.b16 %v385
        %v503 = vunpack.c.h.b16 %v385
        %v504 = vunpack.c.l.b16 %v386
        %v505 = vunpack.c.h.b16 %v386
        %v506 = vunpack.c.l.b16 %v387
        %v507 = vunpack.c.h.b16 %v387
        %v508 = vunpack.c.l.b16 %v388
        %v509 = vunpack.c.h.b16 %v388
        %v510 = vunpack.c.l.b16 %v389
        %v511 = vunpack.c.h.b16 %v389
        %v512 = vunpack.c.l.b16 %v390
        %v513 = vunpack.c.h.b16 %v390
        %v514 = vunpack.c.l.b16 %v391
        %v515 = vunpack.c.h.b16 %v391
        %v516 = vunpack.c.l.b16 %v392
        %v517 = vunpack.c.h.b16 %v392
        %v518 = vunpack.c.l.b16 %v393
        %v519 = vunpack.c.h.b16 %v393
        %v520 = vunpack.c.l.b16 %v394
        %v521 = vunpack.c.h.b16 %v394
        %v522 = vunpack.c.l.b16 %v395
        %v523 = vunpack.c.h.b16 %v395
        %v524 = vunpack.c.l.b16 %v396
        %v525 = vunpack.c.h.b16 %v396
        %v526 = vunpack.c.l.b16 %v397
        %v527 = vunpack.c.h.b16 %v397
        %v528 = vunpack.c.l.b16 %v398
        %v529 = vunpack.c.h.b16 %v398
        %v530 = vunpack.c.l.b16 %v399
        %v531 = vunpack.c.h.b16 %v399
        %v532 = vunpack.c.l.b16 %v400
        %v533 = vunpack.c.h.b16 %v400
        %v534 = vunpack.c.l.b16 %v401
        %v535 = vunpack.c.h.b16 %v401
        %v536 = vpack.c.b16 %v474, %v472
        %v537 = vpack.c.b16 %v475, %v473
        %v538 = vpack.c.b16 %v478, %v476
        %v539 = vpack.c.b16 %v479, %v477
        %v540 = vpack.c.b16 %v482, %v480
        %v541 = vpack.c.b16 %v483, %v481
        %v542 = vpack.c.b16 %v486, %v484
        %v543 = vpack.c.b16 %v487, %v485
        %v544 = vpack.c.b16 %v490, %v488
        %v545 = vpack.c.b16 %v491, %v489
        %v546 = vpack.c.b16 %v494, %v492
        %v547 = vpack.c.b16 %v495, %v493
        %v548 = vpack.c.b16 %v498, %v496
        %v549 = vpack.c.b16 %v499, %v497
        %v550 = vpack.c.b16 %v502, %v500
        %v551 = vpack.c.b16 %v503, %v501
        %v552 = vpack.c.b16 %v506, %v504
        %v553 = vpack.c.b16 %v507, %v505
        %v554 = vpack.c.b16 %v510, %v508
        %v555 = vpack.c.b16 %v511, %v509
        %v556 = vpack.c.b16 %v514, %v512
        %v557 = vpack.c.b16 %v515, %v513
        %v558 = vpack.c.b16 %v518, %v516
        %v559 = vpack.c.b16 %v519, %v517
        %v560 = vpack.c.b16 %v522, %v520
        %v561 = vpack.c.b16 %v523, %v521
        %v562 = vpack.c.b16 %v526, %v524
        %v563 = vpack.c.b16 %v527, %v525
        %v564 = vpack.c.b16 %v530, %v528
        %v565 = vpack.c.b16 %v531, %v529
        %v566 = vpack.c.b16 %v534, %v532
        %v567 = vpack.c.b16 %v535, %v533
        %v632 = vunpack.c.l.b16 %v402
        %v633 = vunpack.c.h.b16 %v402
        %v634 = vunpack.c.l.b16 %v403
        %v635 = vunpack.c.h.b16 %v403
        %v636 = vunpack.c.l.b16 %v404
        %v637 = vunpack.c.h.b16 %v404
        %v638 = vunpack.c.l.b16 %v405
        %v639 = vunpack.c.h.b16 %v405
        %v640 = vunpack.c.l.b16 %v406
        %v641 = vunpack.c.h.b16 %v406
        %v642 = vunpack.c.l.b16 %v407
        %v643 = vunpack.c.h.b16 %v407
        %v644 = vunpack.c.l.b16 %v408
        %v645 = vunpack.c.h.b16 %v408
        %v646 = vunpack.c.l.b16 %v409
        %v647 = vunpack.c.h.b16 %v409
        %v648 = vunpack.c.l.b16 %v410
        %v649 = vunpack.c.h.b16 %v410
        %v650 = vunpack.c.l.b16 %v411
        %v651 = vunpack.c.h.b16 %v411
        %v652 = vunpack.c.l.b16 %v412
        %v653 = vunpack.c.h.b16 %v412
        %v654 = vunpack.c.l.b16 %v413
        %v655 = vunpack.c.h.b16 %v413
        %v656 = vunpack.c.l.b16 %v414
        %v657 = vunpack.c.h.b16 %v414
        %v658 = vunpack.c.l.b16 %v415
        %v659 = vunpack.c.h.b16 %v415
        %v660 = vunpack.c.l.b16 %v416
        %v661 = vunpack.c.h.b16 %v416
        %v662 = vunpack.c.l.b16 %v417
        %v663 = vunpack.c.h.b16 %v417
        %v664 = vunpack.c.l.b16 %v418
        %v665 = vunpack.c.h.b16 %v418
        %v666 = vunpack.c.l.b16 %v419
        %v667 = vunpack.c.h.b16 %v419
        %v668 = vunpack.c.l.b16 %v420
        %v669 = vunpack.c.h.b16 %v420
        %v670 = vunpack.c.l.b16 %v421
        %v671 = vunpack.c.h.b16 %v421
        %v672 = vunpack.c.l.b16 %v422
        %v673 = vunpack.c.h.b16 %v422
        %v674 = vunpack.c.l.b16 %v423
        %v675 = vunpack.c.h.b16 %v423
        %v676 = vunpack.c.l.b16 %v424
        %v677 = vunpack.c.h.b16 %v424
        %v678 = vunpack.c.l.b16 %v425
        %v679 = vunpack.c.h.b16 %v425
        %v680 = vunpack.c.l.b16 %v426
        %v681 = vunpack.c.h.b16 %v426
        %v682 = vunpack.c.l.b16 %v427
        %v683 = vunpack.c.h.b16 %v427
        %v684 = vunpack.c.l.b16 %v428
        %v685 = vunpack.c.h.b16 %v428
        %v686 = vunpack.c.l.b16 %v429
        %v687 = vunpack.c.h.b16 %v429
        %v688 = vunpack.c.l.b16 %v430
        %v689 = vunpack.c.h.b16 %v430
        %v690 = vunpack.c.l.b16 %v431
        %v691 = vunpack.c.h.b16 %v431
        %v692 = vunpack.c.l.b16 %v432
        %v693 = vunpack.c.h.b16 %v432
        %v694 = vunpack.c.l.b16 %v433
        %v695 = vunpack.c.h.b16 %v433
        %v696 = vpack.c.b16 %v634, %v632
        %v697 = vpack.c.b16 %v635, %v633
        %v698 = vpack.c.b16 %v638, %v636
        %v699 = vpack.c.b16 %v639, %v637
        %v700 = vpack.c.b16 %v642, %v640
        %v701 = vpack.c.b16 %v643, %v641
        %v702 = vpack.c.b16 %v646, %v644
        %v703 = vpack.c.b16 %v647, %v645
        %v704 = vpack.c.b16 %v650, %v648
        %v705 = vpack.c.b16 %v651, %v649
        %v706 = vpack.c.b16 %v654, %v652
        %v707 = vpack.c.b16 %v655, %v653
        %v708 = vpack.c.b16 %v658, %v656
        %v709 = vpack.c.b16 %v659, %v657
        %v710 = vpack.c.b16 %v662, %v660
        %v711 = vpack.c.b16 %v663, %v661
        %v712 = vpack.c.b16 %v666, %v664
        %v713 = vpack.c.b16 %v667, %v665
        %v714 = vpack.c.b16 %v670, %v668
        %v715 = vpack.c.b16 %v671, %v669
        %v716 = vpack.c.b16 %v674, %v672
        %v717 = vpack.c.b16 %v675, %v673
        %v718 = vpack.c.b16 %v678, %v676
        %v719 = vpack.c.b16 %v679, %v677
        %v720 = vpack.c.b16 %v682, %v680
        %v721 = vpack.c.b16 %v683, %v681
        %v722 = vpack.c.b16 %v686, %v684
        %v723 = vpack.c.b16 %v687, %v685
        %v724 = vpack.c.b16 %v690, %v688
        %v725 = vpack.c.b16 %v691, %v689
        %v726 = vpack.c.b16 %v694, %v692
        %v727 = vpack.c.b16 %v695, %v693
        %760 = vmatpush.bf16.msra.mxu0 %v710
        %761 = vmatpush.bf16.msra.mxu0 %v708
        %762 = vmatpush.bf16.msra.mxu0 %v706
        %763 = vmatpush.bf16.msra.mxu0 %v704
        %764 = vmatpush.bf16.msra.mxu0 %v702
        %765 = vmatpush.bf16.msra.mxu0 %v700
        %766 = vmatpush.bf16.msra.mxu0 %v698
        %767 = vmatpush.bf16.msra.mxu0 %v696
        %768 = vmatmul.bf16.gmra.mxu0 %v536
        %v769 = vpop.f32.mrf.mxu0
        %v770 = vadd.f32 %v436, %v769
        %v771 = vpop.f32.mrf.mxu0
        %v772 = vadd.f32 %v436, %v771
        %773 = vmatmul.bf16.gmra.mxu0 %v538
        %v774 = vpop.f32.mrf.mxu0
        %v775 = vadd.f32 %v436, %v774
        %v776 = vpop.f32.mrf.mxu0
        %v777 = vadd.f32 %v436, %v776
        %778 = vmatmul.bf16.gmra.mxu0 %v540
        %v779 = vpop.f32.mrf.mxu0
        %v780 = vadd.f32 %v436, %v779
        %v781 = vpop.f32.mrf.mxu0
        %v782 = vadd.f32 %v436, %v781
        %783 = vmatmul.bf16.gmra.mxu0 %v542
        %v784 = vpop.f32.mrf.mxu0
        %v785 = vadd.f32 %v436, %v784
        %v786 = vpop.f32.mrf.mxu0
        %v787 = vadd.f32 %v436, %v786
        %788 = vmatmul.bf16.gmra.mxu0 %v544
        %v789 = vpop.f32.mrf.mxu0
        %v790 = vadd.f32 %v436, %v789
        %v791 = vpop.f32.mrf.mxu0
        %v792 = vadd.f32 %v436, %v791
        %793 = vmatmul.bf16.gmra.mxu0 %v546
        %v794 = vpop.f32.mrf.mxu0
        %v795 = vadd.f32 %v436, %v794
        %v796 = vpop.f32.mrf.mxu0
        %v797 = vadd.f32 %v436, %v796
        %798 = vmatmul.bf16.gmra.mxu0 %v548
        %v799 = vpop.f32.mrf.mxu0
        %v800 = vadd.f32 %v436, %v799
        %v801 = vpop.f32.mrf.mxu0
        %v802 = vadd.f32 %v436, %v801
        %803 = vmatmul.bf16.gmra.mxu0 %v550
        %v804 = vpop.f32.mrf.mxu0
        %v805 = vadd.f32 %v436, %v804
        %v806 = vpop.f32.mrf.mxu0
        %v807 = vadd.f32 %v436, %v806
        %808 = vmatmul.bf16.gmra.mxu0 %v552
        %v809 = vpop.f32.mrf.mxu0
        %v810 = vadd.f32 %v436, %v809
        %v811 = vpop.f32.mrf.mxu0
        %v812 = vadd.f32 %v436, %v811
        %813 = vmatmul.bf16.gmra.mxu0 %v554
        %v814 = vpop.f32.mrf.mxu0
        %v815 = vadd.f32 %v436, %v814
        %v816 = vpop.f32.mrf.mxu0
        %v817 = vadd.f32 %v436, %v816
        %818 = vmatmul.bf16.gmra.mxu0 %v556
        %v819 = vpop.f32.mrf.mxu0
        %v820 = vadd.f32 %v436, %v819
        %v821 = vpop.f32.mrf.mxu0
        %v822 = vadd.f32 %v436, %v821
        %823 = vmatmul.bf16.gmra.mxu0 %v558
        %v824 = vpop.f32.mrf.mxu0
        %v825 = vadd.f32 %v436, %v824
        %v826 = vpop.f32.mrf.mxu0
        %v827 = vadd.f32 %v436, %v826
        %828 = vmatmul.bf16.gmra.mxu0 %v560
        %v829 = vpop.f32.mrf.mxu0
        %v830 = vadd.f32 %v436, %v829
        %v831 = vpop.f32.mrf.mxu0
        %v832 = vadd.f32 %v436, %v831
        %833 = vmatmul.bf16.gmra.mxu0 %v562
        %v834 = vpop.f32.mrf.mxu0
        %v835 = vadd.f32 %v436, %v834
        %v836 = vpop.f32.mrf.mxu0
        %v837 = vadd.f32 %v436, %v836
        %838 = vmatmul.bf16.gmra.mxu0 %v564
        %v839 = vpop.f32.mrf.mxu0
        %v840 = vadd.f32 %v436, %v839
        %v841 = vpop.f32.mrf.mxu0
        %v842 = vadd.f32 %v436, %v841
        %843 = vmatmul.bf16.gmra.mxu0 %v566
        %v844 = vpop.f32.mrf.mxu0
        %v845 = vadd.f32 %v436, %v844
        %v846 = vpop.f32.mrf.mxu0
        %v847 = vadd.f32 %v436, %v846
        %848 = vdwg.mxu0
        %849 = vmatpush.bf16.msra.mxu0 %v726
        %850 = vmatpush.bf16.msra.mxu0 %v724
        %851 = vmatpush.bf16.msra.mxu0 %v722
        %852 = vmatpush.bf16.msra.mxu0 %v720
        %853 = vmatpush.bf16.msra.mxu0 %v718
        %854 = vmatpush.bf16.msra.mxu0 %v716
        %855 = vmatpush.bf16.msra.mxu0 %v714
        %856 = vmatpush.bf16.msra.mxu0 %v712
        %857 = vmatmul.bf16.gmra.mxu0 %v537
        %v858 = vpop.f32.mrf.mxu0
        %v859 = vadd.f32 %v770, %v858
        %v860 = vpop.f32.mrf.mxu0
        %v861 = vadd.f32 %v772, %v860
        %862 = vmatmul.bf16.gmra.mxu0 %v539
        %v863 = vpop.f32.mrf.mxu0
        %v864 = vadd.f32 %v775, %v863
        %v865 = vpop.f32.mrf.mxu0
        %v866 = vadd.f32 %v777, %v865
        %867 = vmatmul.bf16.gmra.mxu0 %v541
        %v868 = vpop.f32.mrf.mxu0
        %v869 = vadd.f32 %v780, %v868
        %v870 = vpop.f32.mrf.mxu0
        %v871 = vadd.f32 %v782, %v870
        %872 = vmatmul.bf16.gmra.mxu0 %v543
        %v873 = vpop.f32.mrf.mxu0
        %v874 = vadd.f32 %v785, %v873
        %v875 = vpop.f32.mrf.mxu0
        %v876 = vadd.f32 %v787, %v875
        %877 = vmatmul.bf16.gmra.mxu0 %v545
        %v878 = vpop.f32.mrf.mxu0
        %v879 = vadd.f32 %v790, %v878
        %v880 = vpop.f32.mrf.mxu0
        %v881 = vadd.f32 %v792, %v880
        %882 = vmatmul.bf16.gmra.mxu0 %v547
        %v883 = vpop.f32.mrf.mxu0
        %v884 = vadd.f32 %v795, %v883
        %v885 = vpop.f32.mrf.mxu0
        %v886 = vadd.f32 %v797, %v885
        %887 = vmatmul.bf16.gmra.mxu0 %v549
        %v888 = vpop.f32.mrf.mxu0
        %v889 = vadd.f32 %v800, %v888
        %v890 = vpop.f32.mrf.mxu0
        %v891 = vadd.f32 %v802, %v890
        %892 = vmatmul.bf16.gmra.mxu0 %v551
        %v893 = vpop.f32.mrf.mxu0
        %v894 = vadd.f32 %v805, %v893
        %v895 = vpop.f32.mrf.mxu0
        %v896 = vadd.f32 %v807, %v895
        %897 = vmatmul.bf16.gmra.mxu0 %v553
        %v898 = vpop.f32.mrf.mxu0
        %v899 = vadd.f32 %v810, %v898
        %v900 = vpop.f32.mrf.mxu0
        %v901 = vadd.f32 %v812, %v900
        %902 = vmatmul.bf16.gmra.mxu0 %v555
        %v903 = vpop.f32.mrf.mxu0
        %v904 = vadd.f32 %v815, %v903
        %v905 = vpop.f32.mrf.mxu0
        %v906 = vadd.f32 %v817, %v905
        %907 = vmatmul.bf16.gmra.mxu0 %v557
        %v908 = vpop.f32.mrf.mxu0
        %v909 = vadd.f32 %v820, %v908
        %v910 = vpop.f32.mrf.mxu0
        %v911 = vadd.f32 %v822, %v910
        %912 = vmatmul.bf16.gmra.mxu0 %v559
        %v913 = vpop.f32.mrf.mxu0
        %v914 = vadd.f32 %v825, %v913
        %v915 = vpop.f32.mrf.mxu0
        %v916 = vadd.f32 %v827, %v915
        %917 = vmatmul.bf16.gmra.mxu0 %v561
        %v918 = vpop.f32.mrf.mxu0
        %v919 = vadd.f32 %v830, %v918
        %v920 = vpop.f32.mrf.mxu0
        %v921 = vadd.f32 %v832, %v920
        %922 = vmatmul.bf16.gmra.mxu0 %v563
        %v923 = vpop.f32.mrf.mxu0
        %v924 = vadd.f32 %v835, %v923
        %v925 = vpop.f32.mrf.mxu0
        %v926 = vadd.f32 %v837, %v925
        %927 = vmatmul.bf16.gmra.mxu0 %v565
        %v928 = vpop.f32.mrf.mxu0
        %v929 = vadd.f32 %v840, %v928
        %v930 = vpop.f32.mrf.mxu0
        %v931 = vadd.f32 %v842, %v930
        %932 = vmatmul.bf16.gmra.mxu0 %v567
        %v933 = vpop.f32.mrf.mxu0
        %v934 = vadd.f32 %v845, %v933
        %v935 = vpop.f32.mrf.mxu0
        %v936 = vadd.f32 %v847, %v935
        %937 = vdwg.mxu0
        %938 = vmatpush.bf16.msra.mxu0 %v711
        %939 = vmatpush.bf16.msra.mxu0 %v709
        %940 = vmatpush.bf16.msra.mxu0 %v707
        %941 = vmatpush.bf16.msra.mxu0 %v705
        %942 = vmatpush.bf16.msra.mxu0 %v703
        %943 = vmatpush.bf16.msra.mxu0 %v701
        %944 = vmatpush.bf16.msra.mxu0 %v699
        %945 = vmatpush.bf16.msra.mxu0 %v697
        %946 = vmatmul.bf16.gmra.mxu0 %v536
        %v947 = vpop.f32.mrf.mxu0
        %v948 = vadd.f32 %v437, %v947
        %v949 = vpop.f32.mrf.mxu0
        %v950 = vadd.f32 %v437, %v949
        %951 = vmatmul.bf16.gmra.mxu0 %v538
        %v952 = vpop.f32.mrf.mxu0
        %v953 = vadd.f32 %v437, %v952
        %v954 = vpop.f32.mrf.mxu0
        %v955 = vadd.f32 %v437, %v954
        %956 = vmatmul.bf16.gmra.mxu0 %v540
        %v957 = vpop.f32.mrf.mxu0
        %v958 = vadd.f32 %v437, %v957
        %v959 = vpop.f32.mrf.mxu0
        %v960 = vadd.f32 %v437, %v959
        %961 = vmatmul.bf16.gmra.mxu0 %v542
        %v962 = vpop.f32.mrf.mxu0
        %v963 = vadd.f32 %v437, %v962
        %v964 = vpop.f32.mrf.mxu0
        %v965 = vadd.f32 %v437, %v964
        %966 = vmatmul.bf16.gmra.mxu0 %v544
        %v967 = vpop.f32.mrf.mxu0
        %v968 = vadd.f32 %v437, %v967
        %v969 = vpop.f32.mrf.mxu0
        %v970 = vadd.f32 %v437, %v969
        %971 = vmatmul.bf16.gmra.mxu0 %v546
        %v972 = vpop.f32.mrf.mxu0
        %v973 = vadd.f32 %v437, %v972
        %v974 = vpop.f32.mrf.mxu0
        %v975 = vadd.f32 %v437, %v974
        %976 = vmatmul.bf16.gmra.mxu0 %v548
        %v977 = vpop.f32.mrf.mxu0
        %v978 = vadd.f32 %v437, %v977
        %v979 = vpop.f32.mrf.mxu0
        %v980 = vadd.f32 %v437, %v979
        %981 = vmatmul.bf16.gmra.mxu0 %v550
        %v982 = vpop.f32.mrf.mxu0
        %v983 = vadd.f32 %v437, %v982
        %v984 = vpop.f32.mrf.mxu0
        %v985 = vadd.f32 %v437, %v984
        %986 = vmatmul.bf16.gmra.mxu0 %v552
        %v987 = vpop.f32.mrf.mxu0
        %v988 = vadd.f32 %v437, %v987
        %v989 = vpop.f32.mrf.mxu0
        %v990 = vadd.f32 %v437, %v989
        %991 = vmatmul.bf16.gmra.mxu0 %v554
        %v992 = vpop.f32.mrf.mxu0
        %v993 = vadd.f32 %v437, %v992
        %v994 = vpop.f32.mrf.mxu0
        %v995 = vadd.f32 %v437, %v994
        %996 = vmatmul.bf16.gmra.mxu0 %v556
        %v997 = vpop.f32.mrf.mxu0
        %v998 = vadd.f32 %v437, %v997
        %v999 = vpop.f32.mrf.mxu0
        %v1000 = vadd.f32 %v437, %v999
        %1001 = vmatmul.bf16.gmra.mxu0 %v558
        %v1002 = vpop.f32.mrf.mxu0
        %v1003 = vadd.f32 %v437, %v1002
        %v1004 = vpop.f32.mrf.mxu0
        %v1005 = vadd.f32 %v437, %v1004
        %1006 = vmatmul.bf16.gmra.mxu0 %v560
        %v1007 = vpop.f32.mrf.mxu0
        %v1008 = vadd.f32 %v437, %v1007
        %v1009 = vpop.f32.mrf.mxu0
        %v1010 = vadd.f32 %v437, %v1009
        %1011 = vmatmul.bf16.gmra.mxu0 %v562
        %v1012 = vpop.f32.mrf.mxu0
        %v1013 = vadd.f32 %v437, %v1012
        %v1014 = vpop.f32.mrf.mxu0
        %v1015 = vadd.f32 %v437, %v1014
        %1016 = vmatmul.bf16.gmra.mxu0 %v564
        %v1017 = vpop.f32.mrf.mxu0
        %v1018 = vadd.f32 %v437, %v1017
        %v1019 = vpop.f32.mrf.mxu0
        %v1020 = vadd.f32 %v437, %v1019
        %1021 = vmatmul.bf16.gmra.mxu0 %v566
        %v1022 = vpop.f32.mrf.mxu0
        %v1023 = vadd.f32 %v437, %v1022
        %v1024 = vpop.f32.mrf.mxu0
        %v1025 = vadd.f32 %v437, %v1024
        %1026 = vdwg.mxu0
        %1027 = vmatpush.bf16.msra.mxu0 %v727
        %1028 = vmatpush.bf16.msra.mxu0 %v725
        %1029 = vmatpush.bf16.msra.mxu0 %v723
        %1030 = vmatpush.bf16.msra.mxu0 %v721
        %1031 = vmatpush.bf16.msra.mxu0 %v719
        %1032 = vmatpush.bf16.msra.mxu0 %v717
        %1033 = vmatpush.bf16.msra.mxu0 %v715
        %1034 = vmatpush.bf16.msra.mxu0 %v713
        %1035 = vmatmul.bf16.gmra.mxu0 %v537
        %v1036 = vpop.f32.mrf.mxu0
        %v1037 = vadd.f32 %v948, %v1036
        %v1038 = vpop.f32.mrf.mxu0
        %v1039 = vadd.f32 %v950, %v1038
        %1040 = vmatmul.bf16.gmra.mxu0 %v539
        %v1041 = vpop.f32.mrf.mxu0
        %v1042 = vadd.f32 %v953, %v1041
        %v1043 = vpop.f32.mrf.mxu0
        %v1044 = vadd.f32 %v955, %v1043
        %1045 = vmatmul.bf16.gmra.mxu0 %v541
        %v1046 = vpop.f32.mrf.mxu0
        %v1047 = vadd.f32 %v958, %v1046
        %v1048 = vpop.f32.mrf.mxu0
        %v1049 = vadd.f32 %v960, %v1048
        %1050 = vmatmul.bf16.gmra.mxu0 %v543
        %v1051 = vpop.f32.mrf.mxu0
        %v1052 = vadd.f32 %v963, %v1051
        %v1053 = vpop.f32.mrf.mxu0
        %v1054 = vadd.f32 %v965, %v1053
        %1055 = vmatmul.bf16.gmra.mxu0 %v545
        %v1056 = vpop.f32.mrf.mxu0
        %v1057 = vadd.f32 %v968, %v1056
        %v1058 = vpop.f32.mrf.mxu0
        %v1059 = vadd.f32 %v970, %v1058
        %1060 = vmatmul.bf16.gmra.mxu0 %v547
        %v1061 = vpop.f32.mrf.mxu0
        %v1062 = vadd.f32 %v973, %v1061
        %v1063 = vpop.f32.mrf.mxu0
        %v1064 = vadd.f32 %v975, %v1063
        %1065 = vmatmul.bf16.gmra.mxu0 %v549
        %v1066 = vpop.f32.mrf.mxu0
        %v1067 = vadd.f32 %v978, %v1066
        %v1068 = vpop.f32.mrf.mxu0
        %v1069 = vadd.f32 %v980, %v1068
        %1070 = vmatmul.bf16.gmra.mxu0 %v551
        %v1071 = vpop.f32.mrf.mxu0
        %v1072 = vadd.f32 %v983, %v1071
        %v1073 = vpop.f32.mrf.mxu0
        %v1074 = vadd.f32 %v985, %v1073
        %1075 = vmatmul.bf16.gmra.mxu0 %v553
        %v1076 = vpop.f32.mrf.mxu0
        %v1077 = vadd.f32 %v988, %v1076
        %v1078 = vpop.f32.mrf.mxu0
        %v1079 = vadd.f32 %v990, %v1078
        %1080 = vmatmul.bf16.gmra.mxu0 %v555
        %v1081 = vpop.f32.mrf.mxu0
        %v1082 = vadd.f32 %v993, %v1081
        %v1083 = vpop.f32.mrf.mxu0
        %v1084 = vadd.f32 %v995, %v1083
        %1085 = vmatmul.bf16.gmra.mxu0 %v557
        %v1086 = vpop.f32.mrf.mxu0
        %v1087 = vadd.f32 %v998, %v1086
        %v1088 = vpop.f32.mrf.mxu0
        %v1089 = vadd.f32 %v1000, %v1088
        %1090 = vmatmul.bf16.gmra.mxu0 %v559
        %v1091 = vpop.f32.mrf.mxu0
        %v1092 = vadd.f32 %v1003, %v1091
        %v1093 = vpop.f32.mrf.mxu0
        %v1094 = vadd.f32 %v1005, %v1093
        %1095 = vmatmul.bf16.gmra.mxu0 %v561
        %v1096 = vpop.f32.mrf.mxu0
        %v1097 = vadd.f32 %v1008, %v1096
        %v1098 = vpop.f32.mrf.mxu0
        %v1099 = vadd.f32 %v1010, %v1098
        %1100 = vmatmul.bf16.gmra.mxu0 %v563
        %v1101 = vpop.f32.mrf.mxu0
        %v1102 = vadd.f32 %v1013, %v1101
        %v1103 = vpop.f32.mrf.mxu0
        %v1104 = vadd.f32 %v1015, %v1103
        %1105 = vmatmul.bf16.gmra.mxu0 %v565
        %v1106 = vpop.f32.mrf.mxu0
        %v1107 = vadd.f32 %v1018, %v1106
        %v1108 = vpop.f32.mrf.mxu0
        %v1109 = vadd.f32 %v1020, %v1108
        %1110 = vmatmul.bf16.gmra.mxu0 %v567
        %v1111 = vpop.f32.mrf.mxu0
        %v1112 = vadd.f32 %v1023, %v1111
        %v1113 = vpop.f32.mrf.mxu0
        %v1114 = vadd.f32 %v1025, %v1113
        %1115 = vdwg.mxu0
        %v1116 = vmax.f32 %v859, 0.0
        %v1117 = vmax.f32 %v1037, 0.0
        %v1118 = vmax.f32 %v861, 0.0
        %v1119 = vmax.f32 %v1039, 0.0
        %v1120 = vmax.f32 %v864, 0.0
        %v1121 = vmax.f32 %v1042, 0.0
        %v1122 = vmax.f32 %v866, 0.0
        %v1123 = vmax.f32 %v1044, 0.0
        %v1124 = vmax.f32 %v869, 0.0
        %v1125 = vmax.f32 %v1047, 0.0
        %v1126 = vmax.f32 %v871, 0.0
        %v1127 = vmax.f32 %v1049, 0.0
        %v1128 = vmax.f32 %v874, 0.0
        %v1129 = vmax.f32 %v1052, 0.0
        %v1130 = vmax.f32 %v876, 0.0
        %v1131 = vmax.f32 %v1054, 0.0
        %v1132 = vmax.f32 %v879, 0.0
        %v1133 = vmax.f32 %v1057, 0.0
        %v1134 = vmax.f32 %v881, 0.0
        %v1135 = vmax.f32 %v1059, 0.0
        %v1136 = vmax.f32 %v884, 0.0
        %v1137 = vmax.f32 %v1062, 0.0
        %v1138 = vmax.f32 %v886, 0.0
        %v1139 = vmax.f32 %v1064, 0.0
        %v1140 = vmax.f32 %v889, 0.0
        %v1141 = vmax.f32 %v1067, 0.0
        %v1142 = vmax.f32 %v891, 0.0
        %v1143 = vmax.f32 %v1069, 0.0
        %v1144 = vmax.f32 %v894, 0.0
        %v1145 = vmax.f32 %v1072, 0.0
        %v1146 = vmax.f32 %v896, 0.0
        %v1147 = vmax.f32 %v1074, 0.0
        %v1148 = vmax.f32 %v899, 0.0
        %v1149 = vmax.f32 %v1077, 0.0
        %v1150 = vmax.f32 %v901, 0.0
        %v1151 = vmax.f32 %v1079, 0.0
        %v1152 = vmax.f32 %v904, 0.0
        %v1153 = vmax.f32 %v1082, 0.0
        %v1154 = vmax.f32 %v906, 0.0
        %v1155 = vmax.f32 %v1084, 0.0
        %v1156 = vmax.f32 %v909, 0.0
        %v1157 = vmax.f32 %v1087, 0.0
        %v1158 = vmax.f32 %v911, 0.0
        %v1159 = vmax.f32 %v1089, 0.0
        %v1160 = vmax.f32 %v914, 0.0
        %v1161 = vmax.f32 %v1092, 0.0
        %v1162 = vmax.f32 %v916, 0.0
        %v1163 = vmax.f32 %v1094, 0.0
        %v1164 = vmax.f32 %v919, 0.0
        %v1165 = vmax.f32 %v1097, 0.0
        %v1166 = vmax.f32 %v921, 0.0
        %v1167 = vmax.f32 %v1099, 0.0
        %v1168 = vmax.f32 %v924, 0.0
        %v1169 = vmax.f32 %v1102, 0.0
        %v1170 = vmax.f32 %v926, 0.0
        %v1171 = vmax.f32 %v1104, 0.0
        %v1172 = vmax.f32 %v929, 0.0
        %v1173 = vmax.f32 %v1107, 0.0
        %v1174 = vmax.f32 %v931, 0.0
        %v1175 = vmax.f32 %v1109, 0.0
        %v1176 = vmax.f32 %v934, 0.0
        %v1177 = vmax.f32 %v1112, 0.0
        %v1178 = vmax.f32 %v936, 0.0
        %v1179 = vmax.f32 %v1114, 0.0
        %v1180 = vld [vmem:[#allocation2] sm:$0xff]
        %v1181 = vld [vmem:[#allocation2 + $0x8] sm:$0xff]
        %v1182 = vld [vmem:[#allocation2 + $0x10] sm:$0xff]
        %v1183 = vld [vmem:[#allocation2 + $0x18] sm:$0xff]
        %v1184 = vld [vmem:[#allocation2 + $0x20] sm:$0xff]
        %v1185 = vld [vmem:[#allocation2 + $0x28] sm:$0xff]
        %v1186 = vld [vmem:[#allocation2 + $0x30] sm:$0xff]
        %v1187 = vld [vmem:[#allocation2 + $0x38] sm:$0xff]
        %v1188 = vld [vmem:[#allocation2 + $0x40] sm:$0xff]
        %v1189 = vld [vmem:[#allocation2 + $0x48] sm:$0xff]
        %v1190 = vld [vmem:[#allocation2 + $0x50] sm:$0xff]
        %v1191 = vld [vmem:[#allocation2 + $0x58] sm:$0xff]
        %v1192 = vld [vmem:[#allocation2 + $0x60] sm:$0xff]
        %v1193 = vld [vmem:[#allocation2 + $0x68] sm:$0xff]
        %v1194 = vld [vmem:[#allocation2 + $0x70] sm:$0xff]
        %v1195 = vld [vmem:[#allocation2 + $0x78] sm:$0xff]
        %v1196 = vld [vmem:[#allocation2 + $0x80] sm:$0xff]
        %v1197 = vld [vmem:[#allocation2 + $0x88] sm:$0xff]
        %v1198 = vld [vmem:[#allocation2 + $0x90] sm:$0xff]
        %v1199 = vld [vmem:[#allocation2 + $0x98] sm:$0xff]
        %v1200 = vld [vmem:[#allocation2 + $0xa0] sm:$0xff]
        %v1201 = vld [vmem:[#allocation2 + $0xa8] sm:$0xff]
        %v1202 = vld [vmem:[#allocation2 + $0xb0] sm:$0xff]
        %v1203 = vld [vmem:[#allocation2 + $0xb8] sm:$0xff]
        %v1204 = vld [vmem:[#allocation2 + $0xc0] sm:$0xff]
        %v1205 = vld [vmem:[#allocation2 + $0xc8] sm:$0xff]
        %v1206 = vld [vmem:[#allocation2 + $0xd0] sm:$0xff]
        %v1207 = vld [vmem:[#allocation2 + $0xd8] sm:$0xff]
        %v1208 = vld [vmem:[#allocation2 + $0xe0] sm:$0xff]
        %v1209 = vld [vmem:[#allocation2 + $0xe8] sm:$0xff]
        %v1210 = vld [vmem:[#allocation2 + $0xf0] sm:$0xff]
        %v1211 = vld [vmem:[#allocation2 + $0xf8] sm:$0xff]
        %v1212 = vpack.c.bf16 %v1118, %v1116
        %v1213 = vpack.c.bf16 %v1119, %v1117
        %v1214 = vpack.c.bf16 %v1122, %v1120
        %v1215 = vpack.c.bf16 %v1123, %v1121
        %v1216 = vpack.c.bf16 %v1126, %v1124
        %v1217 = vpack.c.bf16 %v1127, %v1125
        %v1218 = vpack.c.bf16 %v1130, %v1128
        %v1219 = vpack.c.bf16 %v1131, %v1129
        %v1220 = vpack.c.bf16 %v1134, %v1132
        %v1221 = vpack.c.bf16 %v1135, %v1133
        %v1222 = vpack.c.bf16 %v1138, %v1136
        %v1223 = vpack.c.bf16 %v1139, %v1137
        %v1224 = vpack.c.bf16 %v1142, %v1140
        %v1225 = vpack.c.bf16 %v1143, %v1141
        %v1226 = vpack.c.bf16 %v1146, %v1144
        %v1227 = vpack.c.bf16 %v1147, %v1145
        %v1228 = vpack.c.bf16 %v1150, %v1148
        %v1229 = vpack.c.bf16 %v1151, %v1149
        %v1230 = vpack.c.bf16 %v1154, %v1152
        %v1231 = vpack.c.bf16 %v1155, %v1153
        %v1232 = vpack.c.bf16 %v1158, %v1156
        %v1233 = vpack.c.bf16 %v1159, %v1157
        %v1234 = vpack.c.bf16 %v1162, %v1160
        %v1235 = vpack.c.bf16 %v1163, %v1161
        %v1236 = vpack.c.bf16 %v1166, %v1164
        %v1237 = vpack.c.bf16 %v1167, %v1165
        %v1238 = vpack.c.bf16 %v1170, %v1168
        %v1239 = vpack.c.bf16 %v1171, %v1169
        %v1240 = vpack.c.bf16 %v1174, %v1172
        %v1241 = vpack.c.bf16 %v1175, %v1173
        %v1242 = vpack.c.bf16 %v1178, %v1176
        %v1243 = vpack.c.bf16 %v1179, %v1177
        %v1244 = vld [vmem:[#allocation9] sm:$0xf]
        %v1245 = vld [vmem:[#allocation9 + $0x4] sm:$0xf]
        %v1246 = vld [vmem:[#allocation9 + $0x8] sm:$0xf]
        %v1247 = vld [vmem:[#allocation9 + $0xc] sm:$0xf]
        %v1248 = vld [vmem:[#allocation9 + $0x10] sm:$0xf]
        %v1249 = vld [vmem:[#allocation9 + $0x14] sm:$0xf]
        %v1250 = vld [vmem:[#allocation9 + $0x18] sm:$0xf]
        %v1251 = vld [vmem:[#allocation9 + $0x1c] sm:$0xf]
        %v1252 = vld [vmem:[#allocation9 + $0x20] sm:$0xf]
        %v1253 = vld [vmem:[#allocation9 + $0x24] sm:$0xf]
        %v1254 = vld [vmem:[#allocation9 + $0x28] sm:$0xf]
        %v1255 = vld [vmem:[#allocation9 + $0x2c] sm:$0xf]
        %v1256 = vld [vmem:[#allocation9 + $0x30] sm:$0xf]
        %v1257 = vld [vmem:[#allocation9 + $0x34] sm:$0xf]
        %v1258 = vld [vmem:[#allocation9 + $0x38] sm:$0xf]
        %v1259 = vld [vmem:[#allocation9 + $0x3c] sm:$0xf]
        %v1260 = vld [vmem:[#allocation9 + $0x40] sm:$0xf]
        %v1261 = vld [vmem:[#allocation9 + $0x44] sm:$0xf]
        %v1262 = vld [vmem:[#allocation9 + $0x48] sm:$0xf]
        %v1263 = vld [vmem:[#allocation9 + $0x4c] sm:$0xf]
        %v1264 = vld [vmem:[#allocation9 + $0x50] sm:$0xf]
        %v1265 = vld [vmem:[#allocation9 + $0x54] sm:$0xf]
        %v1266 = vld [vmem:[#allocation9 + $0x58] sm:$0xf]
        %v1267 = vld [vmem:[#allocation9 + $0x5c] sm:$0xf]
        %v1268 = vld [vmem:[#allocation9 + $0x60] sm:$0xf]
        %v1269 = vld [vmem:[#allocation9 + $0x64] sm:$0xf]
        %v1270 = vld [vmem:[#allocation9 + $0x68] sm:$0xf]
        %v1271 = vld [vmem:[#allocation9 + $0x6c] sm:$0xf]
        %v1272 = vld [vmem:[#allocation9 + $0x70] sm:$0xf]
        %v1273 = vld [vmem:[#allocation9 + $0x74] sm:$0xf]
        %v1274 = vld [vmem:[#allocation9 + $0x78] sm:$0xf]
        %v1275 = vld [vmem:[#allocation9 + $0x7c] sm:$0xf]
        %v1308 = vunpack.c.l.b16 %v1244
        %v1309 = vunpack.c.l.b16 %v1245
        %v1310 = vunpack.c.l.b16 %v1246
        %v1311 = vunpack.c.l.b16 %v1247
        %v1312 = vunpack.c.l.b16 %v1248
        %v1313 = vunpack.c.l.b16 %v1249
        %v1314 = vunpack.c.l.b16 %v1250
        %v1315 = vunpack.c.l.b16 %v1251
        %v1316 = vunpack.c.l.b16 %v1252
        %v1317 = vunpack.c.l.b16 %v1253
        %v1318 = vunpack.c.l.b16 %v1254
        %v1319 = vunpack.c.l.b16 %v1255
        %v1320 = vunpack.c.l.b16 %v1256
        %v1321 = vunpack.c.l.b16 %v1257
        %v1322 = vunpack.c.l.b16 %v1258
        %v1323 = vunpack.c.l.b16 %v1259
        %v1324 = vunpack.c.l.b16 %v1260
        %v1325 = vunpack.c.l.b16 %v1261
        %v1326 = vunpack.c.l.b16 %v1262
        %v1327 = vunpack.c.l.b16 %v1263
        %v1328 = vunpack.c.l.b16 %v1264
        %v1329 = vunpack.c.l.b16 %v1265
        %v1330 = vunpack.c.l.b16 %v1266
        %v1331 = vunpack.c.l.b16 %v1267
        %v1332 = vunpack.c.l.b16 %v1268
        %v1333 = vunpack.c.l.b16 %v1269
        %v1334 = vunpack.c.l.b16 %v1270
        %v1335 = vunpack.c.l.b16 %v1271
        %v1336 = vunpack.c.l.b16 %v1272
        %v1337 = vunpack.c.l.b16 %v1273
        %v1338 = vunpack.c.l.b16 %v1274
        %v1339 = vunpack.c.l.b16 %v1275
        %v1340 = vpack.c.b16 %v1309, %v1308
        %v1341 = vpack.c.b16 %v1311, %v1310
        %v1342 = vpack.c.b16 %v1313, %v1312
        %v1343 = vpack.c.b16 %v1315, %v1314
        %v1344 = vpack.c.b16 %v1317, %v1316
        %v1345 = vpack.c.b16 %v1319, %v1318
        %v1346 = vpack.c.b16 %v1321, %v1320
        %v1347 = vpack.c.b16 %v1323, %v1322
        %v1348 = vpack.c.b16 %v1325, %v1324
        %v1349 = vpack.c.b16 %v1327, %v1326
        %v1350 = vpack.c.b16 %v1329, %v1328
        %v1351 = vpack.c.b16 %v1331, %v1330
        %v1352 = vpack.c.b16 %v1333, %v1332
        %v1353 = vpack.c.b16 %v1335, %v1334
        %v1354 = vpack.c.b16 %v1337, %v1336
        %v1355 = vpack.c.b16 %v1339, %v1338
        %1372 = vmatpush.bf16.msra.mxu0 %v1347
        %1373 = vmatpush.bf16.msra.mxu0 %v1346
        %1374 = vmatpush.bf16.msra.mxu0 %v1345
        %1375 = vmatpush.bf16.msra.mxu0 %v1344
        %1376 = vmatpush.bf16.msra.mxu0 %v1343
        %1377 = vmatpush.bf16.msra.mxu0 %v1342
        %1378 = vmatpush.bf16.msra.mxu0 %v1341
        %1379 = vmatpush.bf16.msra.mxu0 %v1340
        %1380 = vmatmul.bf16.gmra.mxu0 %v1212
        %v1381 = vpop.f32.mrf.mxu0
        %v1382 = vadd.f32 0.0, %v1381
        %v1383 = vpop.f32.mrf.mxu0
        %v1384 = vadd.f32 0.0, %v1383
        %1385 = vmatmul.bf16.gmra.mxu0 %v1214
        %v1386 = vpop.f32.mrf.mxu0
        %v1387 = vadd.f32 0.0, %v1386
        %v1388 = vpop.f32.mrf.mxu0
        %v1389 = vadd.f32 0.0, %v1388
        %1390 = vmatmul.bf16.gmra.mxu0 %v1216
        %v1391 = vpop.f32.mrf.mxu0
        %v1392 = vadd.f32 0.0, %v1391
        %v1393 = vpop.f32.mrf.mxu0
        %v1394 = vadd.f32 0.0, %v1393
        %1395 = vmatmul.bf16.gmra.mxu0 %v1218
        %v1396 = vpop.f32.mrf.mxu0
        %v1397 = vadd.f32 0.0, %v1396
        %v1398 = vpop.f32.mrf.mxu0
        %v1399 = vadd.f32 0.0, %v1398
        %1400 = vmatmul.bf16.gmra.mxu0 %v1220
        %v1401 = vpop.f32.mrf.mxu0
        %v1402 = vadd.f32 0.0, %v1401
        %v1403 = vpop.f32.mrf.mxu0
        %v1404 = vadd.f32 0.0, %v1403
        %1405 = vmatmul.bf16.gmra.mxu0 %v1222
        %v1406 = vpop.f32.mrf.mxu0
        %v1407 = vadd.f32 0.0, %v1406
        %v1408 = vpop.f32.mrf.mxu0
        %v1409 = vadd.f32 0.0, %v1408
        %1410 = vmatmul.bf16.gmra.mxu0 %v1224
        %v1411 = vpop.f32.mrf.mxu0
        %v1412 = vadd.f32 0.0, %v1411
        %v1413 = vpop.f32.mrf.mxu0
        %v1414 = vadd.f32 0.0, %v1413
        %1415 = vmatmul.bf16.gmra.mxu0 %v1226
        %v1416 = vpop.f32.mrf.mxu0
        %v1417 = vadd.f32 0.0, %v1416
        %v1418 = vpop.f32.mrf.mxu0
        %v1419 = vadd.f32 0.0, %v1418
        %1420 = vmatmul.bf16.gmra.mxu0 %v1228
        %v1421 = vpop.f32.mrf.mxu0
        %v1422 = vadd.f32 0.0, %v1421
        %v1423 = vpop.f32.mrf.mxu0
        %v1424 = vadd.f32 0.0, %v1423
        %1425 = vmatmul.bf16.gmra.mxu0 %v1230
        %v1426 = vpop.f32.mrf.mxu0
        %v1427 = vadd.f32 0.0, %v1426
        %v1428 = vpop.f32.mrf.mxu0
        %v1429 = vadd.f32 0.0, %v1428
        %1430 = vmatmul.bf16.gmra.mxu0 %v1232
        %v1431 = vpop.f32.mrf.mxu0
        %v1432 = vadd.f32 0.0, %v1431
        %v1433 = vpop.f32.mrf.mxu0
        %v1434 = vadd.f32 0.0, %v1433
        %1435 = vmatmul.bf16.gmra.mxu0 %v1234
        %v1436 = vpop.f32.mrf.mxu0
        %v1437 = vadd.f32 0.0, %v1436
        %v1438 = vpop.f32.mrf.mxu0
        %v1439 = vadd.f32 0.0, %v1438
        %1440 = vmatmul.bf16.gmra.mxu0 %v1236
        %v1441 = vpop.f32.mrf.mxu0
        %v1442 = vadd.f32 0.0, %v1441
        %v1443 = vpop.f32.mrf.mxu0
        %v1444 = vadd.f32 0.0, %v1443
        %1445 = vmatmul.bf16.gmra.mxu0 %v1238
        %v1446 = vpop.f32.mrf.mxu0
        %v1447 = vadd.f32 0.0, %v1446
        %v1448 = vpop.f32.mrf.mxu0
        %v1449 = vadd.f32 0.0, %v1448
        %1450 = vmatmul.bf16.gmra.mxu0 %v1240
        %v1451 = vpop.f32.mrf.mxu0
        %v1452 = vadd.f32 0.0, %v1451
        %v1453 = vpop.f32.mrf.mxu0
        %v1454 = vadd.f32 0.0, %v1453
        %1455 = vmatmul.bf16.gmra.mxu0 %v1242
        %v1456 = vpop.f32.mrf.mxu0
        %v1457 = vadd.f32 0.0, %v1456
        %v1458 = vpop.f32.mrf.mxu0
        %v1459 = vadd.f32 0.0, %v1458
        %1460 = vdwg.mxu0
        %1461 = vmatpush.bf16.msra.mxu0 %v1355
        %1462 = vmatpush.bf16.msra.mxu0 %v1354
        %1463 = vmatpush.bf16.msra.mxu0 %v1353
        %1464 = vmatpush.bf16.msra.mxu0 %v1352
        %1465 = vmatpush.bf16.msra.mxu0 %v1351
        %1466 = vmatpush.bf16.msra.mxu0 %v1350
        %1467 = vmatpush.bf16.msra.mxu0 %v1349
        %1468 = vmatpush.bf16.msra.mxu0 %v1348
        %1469 = vmatmul.bf16.gmra.mxu0 %v1213
        %v1470 = vpop.f32.mrf.mxu0
        %v1471 = vadd.f32 %v1382, %v1470
        %v1472 = vpop.f32.mrf.mxu0
        %v1473 = vadd.f32 %v1384, %v1472
        %1474 = vmatmul.bf16.gmra.mxu0 %v1215
        %v1475 = vpop.f32.mrf.mxu0
        %v1476 = vadd.f32 %v1387, %v1475
        %v1477 = vpop.f32.mrf.mxu0
        %v1478 = vadd.f32 %v1389, %v1477
        %1479 = vmatmul.bf16.gmra.mxu0 %v1217
        %v1480 = vpop.f32.mrf.mxu0
        %v1481 = vadd.f32 %v1392, %v1480
        %v1482 = vpop.f32.mrf.mxu0
        %v1483 = vadd.f32 %v1394, %v1482
        %1484 = vmatmul.bf16.gmra.mxu0 %v1219
        %v1485 = vpop.f32.mrf.mxu0
        %v1486 = vadd.f32 %v1397, %v1485
        %v1487 = vpop.f32.mrf.mxu0
        %v1488 = vadd.f32 %v1399, %v1487
        %1489 = vmatmul.bf16.gmra.mxu0 %v1221
        %v1490 = vpop.f32.mrf.mxu0
        %v1491 = vadd.f32 %v1402, %v1490
        %v1492 = vpop.f32.mrf.mxu0
        %v1493 = vadd.f32 %v1404, %v1492
        %1494 = vmatmul.bf16.gmra.mxu0 %v1223
        %v1495 = vpop.f32.mrf.mxu0
        %v1496 = vadd.f32 %v1407, %v1495
        %v1497 = vpop.f32.mrf.mxu0
        %v1498 = vadd.f32 %v1409, %v1497
        %1499 = vmatmul.bf16.gmra.mxu0 %v1225
        %v1500 = vpop.f32.mrf.mxu0
        %v1501 = vadd.f32 %v1412, %v1500
        %v1502 = vpop.f32.mrf.mxu0
        %v1503 = vadd.f32 %v1414, %v1502
        %1504 = vmatmul.bf16.gmra.mxu0 %v1227
        %v1505 = vpop.f32.mrf.mxu0
        %v1506 = vadd.f32 %v1417, %v1505
        %v1507 = vpop.f32.mrf.mxu0
        %v1508 = vadd.f32 %v1419, %v1507
        %1509 = vmatmul.bf16.gmra.mxu0 %v1229
        %v1510 = vpop.f32.mrf.mxu0
        %v1511 = vadd.f32 %v1422, %v1510
        %v1512 = vpop.f32.mrf.mxu0
        %v1513 = vadd.f32 %v1424, %v1512
        %1514 = vmatmul.bf16.gmra.mxu0 %v1231
        %v1515 = vpop.f32.mrf.mxu0
        %v1516 = vadd.f32 %v1427, %v1515
        %v1517 = vpop.f32.mrf.mxu0
        %v1518 = vadd.f32 %v1429, %v1517
        %1519 = vmatmul.bf16.gmra.mxu0 %v1233
        %v1520 = vpop.f32.mrf.mxu0
        %v1521 = vadd.f32 %v1432, %v1520
        %v1522 = vpop.f32.mrf.mxu0
        %v1523 = vadd.f32 %v1434, %v1522
        %1524 = vmatmul.bf16.gmra.mxu0 %v1235
        %v1525 = vpop.f32.mrf.mxu0
        %v1526 = vadd.f32 %v1437, %v1525
        %v1527 = vpop.f32.mrf.mxu0
        %v1528 = vadd.f32 %v1439, %v1527
        %1529 = vmatmul.bf16.gmra.mxu0 %v1237
        %v1530 = vpop.f32.mrf.mxu0
        %v1531 = vadd.f32 %v1442, %v1530
        %v1532 = vpop.f32.mrf.mxu0
        %v1533 = vadd.f32 %v1444, %v1532
        %1534 = vmatmul.bf16.gmra.mxu0 %v1239
        %v1535 = vpop.f32.mrf.mxu0
        %v1536 = vadd.f32 %v1447, %v1535
        %v1537 = vpop.f32.mrf.mxu0
        %v1538 = vadd.f32 %v1449, %v1537
        %1539 = vmatmul.bf16.gmra.mxu0 %v1241
        %v1540 = vpop.f32.mrf.mxu0
        %v1541 = vadd.f32 %v1452, %v1540
        %v1542 = vpop.f32.mrf.mxu0
        %v1543 = vadd.f32 %v1454, %v1542
        %1544 = vmatmul.bf16.gmra.mxu0 %v1243
        %v1545 = vpop.f32.mrf.mxu0
        %v1546 = vadd.f32 %v1457, %v1545
        %v1547 = vpop.f32.mrf.mxu0
        %v1548 = vadd.f32 %v1459, %v1547
        %1549 = vdwg.mxu0
        %v1550 = vadd.f32 %v1180, %v1471
        %v1551 = vadd.f32 %v1181, %v1473
        %v1552 = vadd.f32 %v1182, %v1476
        %v1553 = vadd.f32 %v1183, %v1478
        %v1554 = vadd.f32 %v1184, %v1481
        %v1555 = vadd.f32 %v1185, %v1483
        %v1556 = vadd.f32 %v1186, %v1486
        %v1557 = vadd.f32 %v1187, %v1488
        %v1558 = vadd.f32 %v1188, %v1491
        %v1559 = vadd.f32 %v1189, %v1493
        %v1560 = vadd.f32 %v1190, %v1496
        %v1561 = vadd.f32 %v1191, %v1498
        %v1562 = vadd.f32 %v1192, %v1501
        %v1563 = vadd.f32 %v1193, %v1503
        %v1564 = vadd.f32 %v1194, %v1506
        %v1565 = vadd.f32 %v1195, %v1508
        %v1566 = vadd.f32 %v1196, %v1511
        %v1567 = vadd.f32 %v1197, %v1513
        %v1568 = vadd.f32 %v1198, %v1516
        %v1569 = vadd.f32 %v1199, %v1518
        %v1570 = vadd.f32 %v1200, %v1521
        %v1571 = vadd.f32 %v1201, %v1523
        %v1572 = vadd.f32 %v1202, %v1526
        %v1573 = vadd.f32 %v1203, %v1528
        %v1574 = vadd.f32 %v1204, %v1531
        %v1575 = vadd.f32 %v1205, %v1533
        %v1576 = vadd.f32 %v1206, %v1536
        %v1577 = vadd.f32 %v1207, %v1538
        %v1578 = vadd.f32 %v1208, %v1541
        %v1579 = vadd.f32 %v1209, %v1543
        %v1580 = vadd.f32 %v1210, %v1546
        %v1581 = vadd.f32 %v1211, %v1548
        %1582 = vst [vmem:[#allocation2] sm:$0xff] %v1550
        %1583 = vst [vmem:[#allocation2 + $0x8] sm:$0xff] %v1551
        %1584 = vst [vmem:[#allocation2 + $0x10] sm:$0xff] %v1552
        %1585 = vst [vmem:[#allocation2 + $0x18] sm:$0xff] %v1553
        %1586 = vst [vmem:[#allocation2 + $0x20] sm:$0xff] %v1554
        %1587 = vst [vmem:[#allocation2 + $0x28] sm:$0xff] %v1555
        %1588 = vst [vmem:[#allocation2 + $0x30] sm:$0xff] %v1556
        %1589 = vst [vmem:[#allocation2 + $0x38] sm:$0xff] %v1557
        %1590 = vst [vmem:[#allocation2 + $0x40] sm:$0xff] %v1558
        %1591 = vst [vmem:[#allocation2 + $0x48] sm:$0xff] %v1559
        %1592 = vst [vmem:[#allocation2 + $0x50] sm:$0xff] %v1560
        %1593 = vst [vmem:[#allocation2 + $0x58] sm:$0xff] %v1561
        %1594 = vst [vmem:[#allocation2 + $0x60] sm:$0xff] %v1562
        %1595 = vst [vmem:[#allocation2 + $0x68] sm:$0xff] %v1563
        %1596 = vst [vmem:[#allocation2 + $0x70] sm:$0xff] %v1564
        %1597 = vst [vmem:[#allocation2 + $0x78] sm:$0xff] %v1565
        %1598 = vst [vmem:[#allocation2 + $0x80] sm:$0xff] %v1566
        %1599 = vst [vmem:[#allocation2 + $0x88] sm:$0xff] %v1567
        %1600 = vst [vmem:[#allocation2 + $0x90] sm:$0xff] %v1568
        %1601 = vst [vmem:[#allocation2 + $0x98] sm:$0xff] %v1569
        %1602 = vst [vmem:[#allocation2 + $0xa0] sm:$0xff] %v1570
        %1603 = vst [vmem:[#allocation2 + $0xa8] sm:$0xff] %v1571
        %1604 = vst [vmem:[#allocation2 + $0xb0] sm:$0xff] %v1572
        %1605 = vst [vmem:[#allocation2 + $0xb8] sm:$0xff] %v1573
        %1606 = vst [vmem:[#allocation2 + $0xc0] sm:$0xff] %v1574
        %1607 = vst [vmem:[#allocation2 + $0xc8] sm:$0xff] %v1575
        %1608 = vst [vmem:[#allocation2 + $0xd0] sm:$0xff] %v1576
        %1609 = vst [vmem:[#allocation2 + $0xd8] sm:$0xff] %v1577
        %1610 = vst [vmem:[#allocation2 + $0xe0] sm:$0xff] %v1578
        %1611 = vst [vmem:[#allocation2 + $0xe8] sm:$0xff] %v1579
        %1612 = vst [vmem:[#allocation2 + $0xf0] sm:$0xff] %v1580
        %1613 = vst [vmem:[#allocation2 + $0xf8] sm:$0xff] %v1581
        // Predicated region
        $region61: #{tpu_custom_call.1} parent=39 // pred_check
          %p1614 = pneg %p334
        $region62: #{tpu_custom_call.1} parent=39 // pred_check_branch
          %1616 = sbr.rel (%p1614) target = $region64
        $region63: #{tpu_custom_call.1} parent=39 // pred_region
          %v1617 = vld [vmem:[#allocation2] sm:$0xff]
          %v1618 = vld [vmem:[#allocation2 + $0x8] sm:$0xff]
          %v1619 = vld [vmem:[#allocation2 + $0x10] sm:$0xff]
          %v1620 = vld [vmem:[#allocation2 + $0x18] sm:$0xff]
          %v1621 = vld [vmem:[#allocation2 + $0x20] sm:$0xff]
          %v1622 = vld [vmem:[#allocation2 + $0x28] sm:$0xff]
          %v1623 = vld [vmem:[#allocation2 + $0x30] sm:$0xff]
          %v1624 = vld [vmem:[#allocation2 + $0x38] sm:$0xff]
          %v1625 = vld [vmem:[#allocation2 + $0x40] sm:$0xff]
          %v1626 = vld [vmem:[#allocation2 + $0x48] sm:$0xff]
          %v1627 = vld [vmem:[#allocation2 + $0x50] sm:$0xff]
          %v1628 = vld [vmem:[#allocation2 + $0x58] sm:$0xff]
          %v1629 = vld [vmem:[#allocation2 + $0x60] sm:$0xff]
          %v1630 = vld [vmem:[#allocation2 + $0x68] sm:$0xff]
          %v1631 = vld [vmem:[#allocation2 + $0x70] sm:$0xff]
          %v1632 = vld [vmem:[#allocation2 + $0x78] sm:$0xff]
          %v1633 = vld [vmem:[#allocation2 + $0x80] sm:$0xff]
          %v1634 = vld [vmem:[#allocation2 + $0x88] sm:$0xff]
          %v1635 = vld [vmem:[#allocation2 + $0x90] sm:$0xff]
          %v1636 = vld [vmem:[#allocation2 + $0x98] sm:$0xff]
          %v1637 = vld [vmem:[#allocation2 + $0xa0] sm:$0xff]
          %v1638 = vld [vmem:[#allocation2 + $0xa8] sm:$0xff]
          %v1639 = vld [vmem:[#allocation2 + $0xb0] sm:$0xff]
          %v1640 = vld [vmem:[#allocation2 + $0xb8] sm:$0xff]
          %v1641 = vld [vmem:[#allocation2 + $0xc0] sm:$0xff]
          %v1642 = vld [vmem:[#allocation2 + $0xc8] sm:$0xff]
          %v1643 = vld [vmem:[#allocation2 + $0xd0] sm:$0xff]
          %v1644 = vld [vmem:[#allocation2 + $0xd8] sm:$0xff]
          %v1645 = vld [vmem:[#allocation2 + $0xe0] sm:$0xff]
          %v1646 = vld [vmem:[#allocation2 + $0xe8] sm:$0xff]
          %v1647 = vld [vmem:[#allocation2 + $0xf0] sm:$0xff]
          %v1648 = vld [vmem:[#allocation2 + $0xf8] sm:$0xff]
          %v1649 = vld [vmem:[%s4] sm:$0x1]
          %v1651 = vperm.slane %v1649, 0
          %v1653 = vadd.f32 %v1617, %v1651
          %v1654 = vadd.f32 %v1618, %v1651
          %v1655 = vadd.f32 %v1619, %v1651
          %v1656 = vadd.f32 %v1620, %v1651
          %v1657 = vadd.f32 %v1621, %v1651
          %v1658 = vadd.f32 %v1622, %v1651
          %v1659 = vadd.f32 %v1623, %v1651
          %v1660 = vadd.f32 %v1624, %v1651
          %v1661 = vadd.f32 %v1625, %v1651
          %v1662 = vadd.f32 %v1626, %v1651
          %v1663 = vadd.f32 %v1627, %v1651
          %v1664 = vadd.f32 %v1628, %v1651
          %v1665 = vadd.f32 %v1629, %v1651
          %v1666 = vadd.f32 %v1630, %v1651
          %v1667 = vadd.f32 %v1631, %v1651
          %v1668 = vadd.f32 %v1632, %v1651
          %v1669 = vadd.f32 %v1633, %v1651
          %v1670 = vadd.f32 %v1634, %v1651
          %v1671 = vadd.f32 %v1635, %v1651
          %v1672 = vadd.f32 %v1636, %v1651
          %v1673 = vadd.f32 %v1637, %v1651
          %v1674 = vadd.f32 %v1638, %v1651
          %v1675 = vadd.f32 %v1639, %v1651
          %v1676 = vadd.f32 %v1640, %v1651
          %v1677 = vadd.f32 %v1641, %v1651
          %v1678 = vadd.f32 %v1642, %v1651
          %v1679 = vadd.f32 %v1643, %v1651
          %v1680 = vadd.f32 %v1644, %v1651
          %v1681 = vadd.f32 %v1645, %v1651
          %v1682 = vadd.f32 %v1646, %v1651
          %v1683 = vadd.f32 %v1647, %v1651
          %v1684 = vadd.f32 %v1648, %v1651
          %1685 = vst [vmem:[%s328] sm:$0xff] %v1653
          %1686 = vst [vmem:[%s328 + $0x8] sm:$0xff] %v1654
          %1687 = vst [vmem:[%s328 + $0x10] sm:$0xff] %v1655
          %1688 = vst [vmem:[%s328 + $0x18] sm:$0xff] %v1656
          %1689 = vst [vmem:[%s328 + $0x20] sm:$0xff] %v1657
          %1690 = vst [vmem:[%s328 + $0x28] sm:$0xff] %v1658
          %1691 = vst [vmem:[%s328 + $0x30] sm:$0xff] %v1659
          %1692 = vst [vmem:[%s328 + $0x38] sm:$0xff] %v1660
          %1693 = vst [vmem:[%s328 + $0x40] sm:$0xff] %v1661
          %1694 = vst [vmem:[%s328 + $0x48] sm:$0xff] %v1662
          %1695 = vst [vmem:[%s328 + $0x50] sm:$0xff] %v1663
          %1696 = vst [vmem:[%s328 + $0x58] sm:$0xff] %v1664
          %1697 = vst [vmem:[%s328 + $0x60] sm:$0xff] %v1665
          %1698 = vst [vmem:[%s328 + $0x68] sm:$0xff] %v1666
          %1699 = vst [vmem:[%s328 + $0x70] sm:$0xff] %v1667
          %1700 = vst [vmem:[%s328 + $0x78] sm:$0xff] %v1668
          %1701 = vst [vmem:[%s328 + $0x80] sm:$0xff] %v1669
          %1702 = vst [vmem:[%s328 + $0x88] sm:$0xff] %v1670
          %1703 = vst [vmem:[%s328 + $0x90] sm:$0xff] %v1671
          %1704 = vst [vmem:[%s328 + $0x98] sm:$0xff] %v1672
          %1705 = vst [vmem:[%s328 + $0xa0] sm:$0xff] %v1673
          %1706 = vst [vmem:[%s328 + $0xa8] sm:$0xff] %v1674
          %1707 = vst [vmem:[%s328 + $0xb0] sm:$0xff] %v1675
          %1708 = vst [vmem:[%s328 + $0xb8] sm:$0xff] %v1676
          %1709 = vst [vmem:[%s328 + $0xc0] sm:$0xff] %v1677
          %1710 = vst [vmem:[%s328 + $0xc8] sm:$0xff] %v1678
          %1711 = vst [vmem:[%s328 + $0xd0] sm:$0xff] %v1679
          %1712 = vst [vmem:[%s328 + $0xd8] sm:$0xff] %v1680
          %1713 = vst [vmem:[%s328 + $0xe0] sm:$0xff] %v1681
          %1714 = vst [vmem:[%s328 + $0xe8] sm:$0xff] %v1682
          %1715 = vst [vmem:[%s328 + $0xf0] sm:$0xff] %v1683
          %1716 = vst [vmem:[%s328 + $0xf8] sm:$0xff] %v1684
        $region64: #{tpu_custom_call.1} parent=39 // pred_fallthru
          _
        %s1717 = sand.u32 %s169, 1
        %s1718 = scalar_lea.sflag [#allocation5], %s1717
        %s1719 = sand.u32 %s169, 1
        %s1720 = smul.addr %s1719, 256
        %s1721 = scalar_lea.vmem [#allocation11], %s1720
        // Predicated region
        $region65: #{tpu_custom_call.1} parent=39 // pred_check
          %p1722 = pneg %p179
        $region66: #{tpu_custom_call.1} parent=39 // pred_check_branch
          %1724 = sbr.rel (%p1722) target = $region68
        $region67: #{tpu_custom_call.1} parent=39 // pred_region
          %s1725 = smul.u32 32, %s28
          %1727 = vsyncadd %s1718, 0
          %s1728 = smul.addr %s1725, 8
          %s1729 = scalar_lea.hbm %s5, %s1728
          %s1730 = sshll.u32 %s1721, 4
          %s1731 = int_to_ptr.vmem [resolvable:$true] %s1730
          %s1732 = sshll.u32 %s1729, 4
          %s1733 = int_to_ptr.hbm [resolvable:$true] %s1732
          %1738 = dma.vmem_to_hbm [thread:$0]  %s1731, 4096, %s1733, %s1718, 128, 128, 8
        $region68: #{tpu_custom_call.1} parent=39 // pred_fallthru
          _
      $region40: #{tpu_custom_call.1} parent=5 // pred_fallthru
        _
      %p1739 = scmp.le.s32.totalorder 2, %s19
      // Predicated region
      $region69: #{tpu_custom_call.1} parent=5 // pred_check
        %p1740 = pneg %p1739
      $region70: #{tpu_custom_call.1} parent=5 // pred_check_branch
        %1742 = sbr.rel (%p1740) target = $region72
      $region71: #{tpu_custom_call.1} parent=5 // pred_region
        %s1743 = ssub.s32 %s19, 2
        // Predicated region
        $region73: #{tpu_custom_call.1} parent=71 // pred_check
          %p1744 = pneg %p185
        $region74: #{tpu_custom_call.1} parent=71 // pred_check_branch
          %1746 = sbr.rel (%p1744) target = $region76
        $region75: #{tpu_custom_call.1} parent=71 // pred_region
          %s1747 = sand.u32 %s170, 1
          %s1748 = scalar_lea.sflag [#allocation5], %s1747
          %s1749 = sand.u32 %s170, 1
          %s1750 = smul.addr %s1749, 256
          %s1751 = scalar_lea.vmem [#allocation11], %s1750
          %1753 = dma.done %s1748, 4096
        $region76: #{tpu_custom_call.1} parent=71 // pred_fallthru
          _
      $region72: #{tpu_custom_call.1} parent=5 // pred_fallthru
        _
    $region6: #{tpu_custom_call.1} parent=1 // loop_footer
      %s23 = sadd.s32 1, %s19
    $region7: #{tpu_custom_call.1} parent=1 // loop_footer_branch
      %18 = sbr.rel target = $region3
    $region8: #{tpu_custom_call.1} parent=1 // loop_exit
      _
    %1754 = vsyncpa [#allocation4], 1
    %s1755 = scalar_lea.sflag [#allocation4], 1
    %1756 = vsyncpa %s1755, 1
    %1757 = vsyncpa [#allocation7], 1
    %1758 = vsyncpa [#allocation10], 1
    %1759 = vsyncpa [#allocation5], 1
    %s1760 = scalar_lea.sflag [#allocation5], 1
    %1761 = vsyncpa %s1760, 1

// kernel: tpu_custom_call.1
$region0: #{tpu_custom_call.1}
  #allocation0 [shape = 'u32[]', space=smem, size = 0x4, offset = 0x4, fixed_abs, tag = 'smem constant byte address 0x4 - core index']
  #allocation1 [shape = 'u32[72,128]{1,0:T(1,128)}', space=vmem, size = 0x9000, scoped, tag = 'internal scratch']
  #allocation2 [shape = 'f32[256,128]{1,0:T(8,128)}', space=vmem, size = 0x20000, scoped, tag = 'scratch operand']
  %s0 = inlined_call_operand.hbm [shape: bf16[512,256], index: 0, kind: input, shape index: {}]
  %s1 = inlined_call_operand.hbm [shape: bf16[256,256], index: 1, kind: input, shape index: {}]
  %s2 = inlined_call_operand.hbm [shape: f32[1,256], index: 2, kind: input, shape index: {}]
  %s3 = inlined_call_operand.hbm [shape: bf16[256,128], index: 3, kind: input, shape index: {}]
  %s4 = inlined_call_operand.vmem [shape: f32[1,128], index: 4, kind: input, shape index: {}]
  %s5 = inlined_call_operand.hbm [shape: f32[512,128], index: 5, kind: output, shape index: {}]
  %s6 = sld [smem:[#allocation0]]
  $region77: #{tpu_custom_call.1} parent=0
    _
  %s8 = ssub.s32 1, %s6
  %s9 = scalar_select 0, %s8, %s6
  $region1: #{tpu_custom_call.1} parent=0
    #allocation3 [shape = 'u8[262144]{0}', space=vmem, size = 0x40000, scoped, tag = 'input window, operand 0']
    #allocation4 [shape = 's32[2]{0}', space=sflag, size = 0x8, scoped, tag = 'scoped memory for tpu_custom_call.1']
    #allocation5 [shape = 's32[2]{0}', space=sflag, size = 0x8, scoped, tag = 'scoped memory for tpu_custom_call.1']
    #allocation6 [shape = 'u8[131072]{0}', space=vmem, size = 0x20000, scoped, tag = 'input window, operand 1, single buffered']
    #allocation7 [shape = 's32[1]{0}', space=sflag, size = 0x4, scoped, tag = 'scoped memory for tpu_custom_call.1']
    #allocation8 [shape = 'u8[1024]{0}', space=vmem, size = 0x400, scoped, tag = 'input window, operand 2, single buffered']
    #allocation9 [shape = 'u8[65536]{0}', space=vmem, size = 0x10000, scoped, tag = 'input window, operand 3, single buffered']
    #allocation10 [shape = 's32[1]{0}', space=sflag, size = 0x4, scoped, tag = 'scoped memory for tpu_custom_call.1']
    #allocation11 [shape = 'u8[262144]{0}', space=vmem, size = 0x40000, scoped, tag = 'output window, operand 0']
    %10 = vsyncpa [#allocation4], 0
    %s11 = scalar_lea.sflag [#allocation4], 1
    %12 = vsyncpa %s11, 0
    %13 = vsyncpa [#allocation7], 0
    %14 = vsyncpa [#allocation10], 0
    %15 = vsyncpa [#allocation5], 0
    %s16 = scalar_lea.sflag [#allocation5], 1
    %17 = vsyncpa %s16, 0
    loop: start=0, step=1, limit=4
    $region2: #{tpu_custom_call.1} parent=1 // loop_pre_header
      _
    $region3: #{tpu_custom_call.1} parent=1 // loop_header
      %s19 = sphi 0, %s23
      %p20 = scmp.ge.s32.totalorder %s19, 4
      %s26 = sphi 0, %s38
      %s27 = sphi 0, %s34
      %s28 = sphi 0, %s26
      %s29 = sphi 0, %s27
      %s30 = sphi 0, %s28
      %s31 = sphi 0, %s29
      %s41 = sphi 0, %s43
      %s44 = sphi 0, %s41
      %s45 = sphi 0, %s44
      %s61 = sphi 0, %s45
      %s67 = sphi 0, %s69
      %s70 = sphi 0, %s67
      %s71 = sphi 0, %s70
      %s87 = sphi 0, %s71
      %s93 = sphi 0, %s95
      %s96 = sphi 0, %s93
      %s97 = sphi 0, %s96
      %s113 = sphi 0, %s97
      %s119 = sphi 0, %s121
      %s122 = sphi 0, %s119
      %s123 = sphi 0, %s122
      %s139 = sphi 0, %s123
      %s143 = sphi 0, %s143
      %s145 = sphi 0, %s143
      %s146 = sphi 0, %s145
      %s160 = sphi 0, %s146
      %s166 = sphi 0, %s168
      %s169 = sphi 0, %s166
      %s170 = sphi 0, %s169
      %s186 = sphi 0, %s170
    $region4: #{tpu_custom_call.1} parent=1 // loop_header_branch
      %22 = sbr.rel (%p20) target = $region8
    $region5: #{tpu_custom_call.1} parent=1 // loop_body
      %s24 = ssub.s32 %s19, 1
      %s25 = ssub.s32 %s19, 2
      %s32 = sadd.s32 1, %s27
      %p33 = scmp.ge.s32.totalorder %s32, 1
      %s34 = scalar_select %p33, 0, %s32
      %s35 = sadd.s32 1, %s26
      %s36 = scalar_select %p33, %s35, %s26
      %p37 = scmp.ge.s32.totalorder %s36, 2
      %s38 = scalar_select %p37, 0, %s36
      %s39 = ssub.s32 %s26, %s38
      %p40 = scmp.eq.s32.totalorder %s39, 0
      %s42 = sadd.s32 %s41, 1
      %s43 = scalar_select %p40, %s41, %s42
      %p46 = pneg %p40
      %p47 = scmp.eq.s32.totalorder %s19, 1
      %p48 = por %p46, %p47
      %p49 = scmp.ne.s32.totalorder %s41, %s44
      %p50 = scmp.eq.s32.totalorder %s19, 0
      %p51 = por %p49, %p50
      %p52 = scmp.ne.s32.totalorder %s41, %s44
      %p53 = scmp.eq.s32.totalorder %s24, 1
      %p54 = por %p52, %p53
      %p55 = scmp.ne.s32.totalorder %s44, %s45
      %p56 = scmp.eq.s32.totalorder %s24, 0
      %p57 = por %p55, %p56
      %p58 = scmp.ne.s32.totalorder %s44, %s45
      %p59 = scmp.eq.s32.totalorder %s25, 1
      %p60 = por %p58, %p59
      %p62 = scmp.ne.s32.totalorder %s45, %s61
      %p63 = scmp.eq.s32.totalorder %s25, 0
      %p64 = por %p62, %p63
      %s65 = ssub.s32 %s27, %s34
      %p66 = scmp.eq.s32.totalorder %s65, 0
      %s68 = sadd.s32 %s67, 1
      %s69 = scalar_select %p66, %s67, %s68
      %p72 = pneg %p66
      %p73 = scmp.eq.s32.totalorder %s19, 1
      %p74 = por %p72, %p73
      %p75 = scmp.ne.s32.totalorder %s67, %s70
      %p76 = scmp.eq.s32.totalorder %s19, 0
      %p77 = por %p75, %p76
      %p78 = scmp.ne.s32.totalorder %s67, %s70
      %p79 = scmp.eq.s32.totalorder %s24, 1
      %p80 = por %p78, %p79
      %p81 = scmp.ne.s32.totalorder %s70, %s71
      %p82 = scmp.eq.s32.totalorder %s24, 0
      %p83 = por %p81, %p82
      %p84 = scmp.ne.s32.totalorder %s70, %s71
      %p85 = scmp.eq.s32.totalorder %s25, 1
      %p86 = por %p84, %p85
      %p88 = scmp.ne.s32.totalorder %s71, %s87
      %p89 = scmp.eq.s32.totalorder %s25, 0
      %p90 = por %p88, %p89
      %s91 = ssub.s32 %s27, %s34
      %p92 = scmp.eq.s32.totalorder %s91, 0
      %s94 = sadd.s32 %s93, 1
      %s95 = scalar_select %p92, %s93, %s94
      %p98 = pneg %p92
      %p99 = scmp.eq.s32.totalorder %s19, 1
      %p100 = por %p98, %p99
      %p101 = scmp.ne.s32.totalorder %s93, %s96
      %p102 = scmp.eq.s32.totalorder %s19, 0
      %p103 = por %p101, %p102
      %p104 = scmp.ne.s32.totalorder %s93, %s96
      %p105 = scmp.eq.s32.totalorder %s24, 1
      %p106 = por %p104, %p105
      %p107 = scmp.ne.s32.totalorder %s96, %s97
      %p108 = scmp.eq.s32.totalorder %s24, 0
      %p109 = por %p107, %p108
      %p110 = scmp.ne.s32.totalorder %s96, %s97
      %p111 = scmp.eq.s32.totalorder %s25, 1
      %p112 = por %p110, %p111
      %p114 = scmp.ne.s32.totalorder %s97, %s113
      %p115 = scmp.eq.s32.totalorder %s25, 0
      %p116 = por %p114, %p115
      %s117 = ssub.s32 %s27, %s34
      %p118 = scmp.eq.s32.totalorder %s117, 0
      %s120 = sadd.s32 %s119, 1
      %s121 = scalar_select %p118, %s119, %s120
      %p124 = pneg %p118
      %p125 = scmp.eq.s32.totalorder %s19, 1
      %p126 = por %p124, %p125
      %p127 = scmp.ne.s32.totalorder %s119, %s122
      %p128 = scmp.eq.s32.totalorder %s19, 0
      %p129 = por %p127, %p128
      %p130 = scmp.ne.s32.totalorder %s119, %s122
      %p131 = scmp.eq.s32.totalorder %s24, 1
      %p132 = por %p130, %p131
      %p133 = scmp.ne.s32.totalorder %s122, %s123
      %p134 = scmp.eq.s32.totalorder %s24, 0
      %p135 = por %p133, %p134
      %p136 = scmp.ne.s32.totalorder %s122, %s123
      %p137 = scmp.eq.s32.totalorder %s25, 1
      %p138 = por %p136, %p137
      %p140 = scmp.ne.s32.totalorder %s123, %s139
      %p141 = scmp.eq.s32.totalorder %s25, 0
      %p142 = por %p140, %p141
      %s144 = sadd.s32 %s143, 1
      %p147 = scmp.eq.s32.totalorder %s19, 1
      %p148 = scmp.ne.s32.totalorder %s143, %s145
      %p149 = scmp.eq.s32.totalorder %s19, 0
      %p150 = por %p148, %p149
      %p151 = scmp.ne.s32.totalorder %s143, %s145
      %p152 = scmp.eq.s32.totalorder %s24, 1
      %p153 = por %p151, %p152
      %p154 = scmp.ne.s32.totalorder %s145, %s146
      %p155 = scmp.eq.s32.totalorder %s24, 0
      %p156 = por %p154, %p155
      %p157 = scmp.ne.s32.totalorder %s145, %s146
      %p158 = scmp.eq.s32.totalorder %s25, 1
      %p159 = por %p157, %p158
      %p161 = scmp.ne.s32.totalorder %s146, %s160
      %p162 = scmp.eq.s32.totalorder %s25, 0
      %p163 = por %p161, %p162
      %s164 = ssub.s32 %s26, %s38
      %p165 = scmp.eq.s32.totalorder %s164, 0
      %s167 = sadd.s32 %s166, 1
      %s168 = scalar_select %p165, %s166, %s167
      %p171 = pneg %p165
      %p172 = scmp.eq.s32.totalorder %s19, 1
      %p173 = por %p171, %p172
      %p174 = scmp.ne.s32.totalorder %s166, %s169
      %p175 = scmp.eq.s32.totalorder %s19, 0
      %p176 = por %p174, %p175
      %p177 = scmp.ne.s32.totalorder %s166, %s169
      %p178 = scmp.eq.s32.totalorder %s24, 1
      %p179 = por %p177, %p178
      %p180 = scmp.ne.s32.totalorder %s169, %s170
      %p181 = scmp.eq.s32.totalorder %s24, 0
      %p182 = por %p180, %p181
      %p183 = scmp.ne.s32.totalorder %s169, %s170
      %p184 = scmp.eq.s32.totalorder %s25, 1
      %p185 = por %p183, %p184
      %p187 = scmp.ne.s32.totalorder %s170, %s186
      %p188 = scmp.eq.s32.totalorder %s25, 0
      %p189 = por %p187, %p188
      %p190 = scmp.le.s32.totalorder 1, %s19
      %p191 = scmp.lt.s32.totalorder %s19, 3
      %p192 = pnand %p190, %p191
      %p193 = pneg %p192
      // Predicated region
      $region9: #{tpu_custom_call.1} parent=5 // pred_check
        _
      $region10: #{tpu_custom_call.1} parent=5 // pred_check_branch
        %195 = sbr.rel (%p192) target = $region12
      $region11: #{tpu_custom_call.1} parent=5 // pred_region
        %s196 = ssub.s32 %s19, 1
        // Predicated region
        $region13: #{tpu_custom_call.1} parent=11 // pred_check
          %p197 = pneg %p83
        $region14: #{tpu_custom_call.1} parent=11 // pred_check_branch
          %199 = sbr.rel (%p197) target = $region16
        $region15: #{tpu_custom_call.1} parent=11 // pred_region
          %s200 = smul.u32 2, %s29
          %202 = vsyncadd [#allocation7], 0
          %s203 = smul.addr %s200, 4
          %s204 = scalar_lea.hbm %s1, %s203
          %s205 = sshll.u32 %s204, 4
          %s206 = int_to_ptr.hbm [resolvable:$true] %s205
          %s207 = sshll.u32 [#allocation6], 4
          %s208 = int_to_ptr.vmem [resolvable:$true] %s207
          %213 = dma.hbm_to_vmem [thread:$0]  %s206, 4096, %s208, [#allocation7], 128, 128, 8
        $region16: #{tpu_custom_call.1} parent=11 // pred_fallthru
          _
        // Predicated region
        $region17: #{tpu_custom_call.1} parent=11 // pred_check
          %p214 = pneg %p109
        $region18: #{tpu_custom_call.1} parent=11 // pred_check_branch
          %216 = sbr.rel (%p214) target = $region20
        $region19: #{tpu_custom_call.1} parent=11 // pred_region
          %s217 = smul.u32 2, %s29
          %219 = vsyncadd [#allocation7], 0
          %s220 = scalar_lea.hbm %s2, %s217
          %s222 = sshll.u32 %s220, 4
          %s223 = int_to_ptr.hbm [resolvable:$true] %s222
          %s224 = sshll.u32 [#allocation8], 4
          %s225 = int_to_ptr.vmem [resolvable:$true] %s224
          %227 = dma.hbm_to_vmem [thread:$0]  %s223, 32, %s225, [#allocation7]
        $region20: #{tpu_custom_call.1} parent=11 // pred_fallthru
          _
        // Predicated region
        $region21: #{tpu_custom_call.1} parent=11 // pred_check
          %p228 = pneg %p135
        $region22: #{tpu_custom_call.1} parent=11 // pred_check_branch
          %230 = sbr.rel (%p228) target = $region24
        $region23: #{tpu_custom_call.1} parent=11 // pred_region
          %s231 = smul.u32 32, %s29
          %233 = vsyncadd [#allocation10], 0
          %s234 = smul.addr %s231, 4
          %s235 = scalar_lea.hbm %s3, %s234
          %s236 = sshll.u32 %s235, 4
          %s237 = int_to_ptr.hbm [resolvable:$true] %s236
          %s238 = sshll.u32 [#allocation9], 4
          %s239 = int_to_ptr.vmem [resolvable:$true] %s238
          %244 = dma.hbm_to_vmem [thread:$0]  %s237, 2048, %s239, [#allocation10], 64, 64, 4
        $region24: #{tpu_custom_call.1} parent=11 // pred_fallthru
          _
        // Predicated region
        $region25: #{tpu_custom_call.1} parent=11 // pred_check
          %p245 = pneg %p156
        $region26: #{tpu_custom_call.1} parent=11 // pred_check_branch
          %247 = sbr.rel (%p245) target = $region28
        $region27: #{tpu_custom_call.1} parent=11 // pred_region
          _
        $region28: #{tpu_custom_call.1} parent=11 // pred_fallthru
          _
      $region12: #{tpu_custom_call.1} parent=5 // pred_fallthru
        _
      %p248 = scmp.lt.s32.totalorder %s19, 2
      // Predicated region
      $region29: #{tpu_custom_call.1} parent=5 // pred_check
        %p249 = pneg %p248
      $region30: #{tpu_custom_call.1} parent=5 // pred_check_branch
        %251 = sbr.rel (%p249) target = $region32
      $region31: #{tpu_custom_call.1} parent=5 // pred_region
        // Predicated region
        $region33: #{tpu_custom_call.1} parent=31 // pred_check
          %p252 = pneg %p51
        $region34: #{tpu_custom_call.1} parent=31 // pred_check_branch
          %254 = sbr.rel (%p252) target = $region36
        $region35: #{tpu_custom_call.1} parent=31 // pred_region
          %s255 = sand.u32 %s41, 1
          %s256 = scalar_lea.sflag [#allocation4], %s255
          %s257 = sand.u32 %s41, 1
          %s258 = smul.addr %s257, 256
          %s259 = scalar_lea.vmem [#allocation3], %s258
          %s260 = smul.u32 32, %s26
          %262 = vsyncadd %s256, 0
          %s263 = smul.addr %s260, 2
          %s264 = smul.addr %s263, 4
          %s265 = scalar_lea.hbm %s0, %s264
          %s266 = sshll.u32 %s265, 4
          %s267 = int_to_ptr.hbm [resolvable:$true] %s266
          %s268 = sshll.u32 %s259, 4
          %s269 = int_to_ptr.vmem [resolvable:$true] %s268
          %274 = dma.hbm_to_vmem [thread:$0]  %s267, 4096, %s269, %s256, 128, 128, 8
        $region36: #{tpu_custom_call.1} parent=31 // pred_fallthru
          _
      $region32: #{tpu_custom_call.1} parent=5 // pred_fallthru
        _
      %p275 = scmp.le.s32.totalorder 1, %s19
      %p276 = scmp.lt.s32.totalorder %s19, 3
      %p277 = pnand %p275, %p276
      %p278 = pneg %p277
      // Predicated region
      $region37: #{tpu_custom_call.1} parent=5 // pred_check
        _
      $region38: #{tpu_custom_call.1} parent=5 // pred_check_branch
        %280 = sbr.rel (%p277) target = $region40
      $region39: #{tpu_custom_call.1} parent=5 // pred_region
        %s281 = ssub.s32 %s19, 1
        %s282 = sand.u32 %s44, 1
        %s283 = scalar_lea.sflag [#allocation4], %s282
        %s284 = sand.u32 %s44, 1
        %s285 = smul.addr %s284, 256
        %s286 = scalar_lea.vmem [#allocation3], %s285
        // Predicated region
        $region41: #{tpu_custom_call.1} parent=39 // pred_check
          %p287 = pneg %p57
        $region42: #{tpu_custom_call.1} parent=39 // pred_check_branch
          %289 = sbr.rel (%p287) target = $region44
        $region43: #{tpu_custom_call.1} parent=39 // pred_region
          %291 = dma.done %s283, 4096
        $region44: #{tpu_custom_call.1} parent=39 // pred_fallthru
          _
        // Predicated region
        $region45: #{tpu_custom_call.1} parent=39 // pred_check
          %p292 = pneg %p83
        $region46: #{tpu_custom_call.1} parent=39 // pred_check_branch
          %294 = sbr.rel (%p292) target = $region48
        $region47: #{tpu_custom_call.1} parent=39 // pred_region
          %296 = dma.done [#allocation7], 4096
        $region48: #{tpu_custom_call.1} parent=39 // pred_fallthru
          _
        // Predicated region
        $region49: #{tpu_custom_call.1} parent=39 // pred_check
          %p297 = pneg %p109
        $region50: #{tpu_custom_call.1} parent=39 // pred_check_branch
          %299 = sbr.rel (%p297) target = $region52
        $region51: #{tpu_custom_call.1} parent=39 // pred_region
          %301 = dma.done [#allocation7], 32
        $region52: #{tpu_custom_call.1} parent=39 // pred_fallthru
          _
        // Predicated region
        $region53: #{tpu_custom_call.1} parent=39 // pred_check
          %p302 = pneg %p135
        $region54: #{tpu_custom_call.1} parent=39 // pred_check_branch
          %304 = sbr.rel (%p302) target = $region56
        $region55: #{tpu_custom_call.1} parent=39 // pred_region
          %306 = dma.done [#allocation10], 2048
        $region56: #{tpu_custom_call.1} parent=39 // pred_fallthru
          _
        %s307 = sand.u32 %s44, 1
        %s308 = scalar_lea.sflag [#allocation4], %s307
        %s309 = sand.u32 %s44, 1
        %s310 = smul.addr %s309, 256
        %s311 = scalar_lea.vmem [#allocation3], %s310
        %p312 = pneg %p57
        %p313 = pneg %p54
        %p314 = pneg %p83
        %p315 = pneg %p80
        %p316 = pneg %p109
        %p317 = pneg %p106
        %p318 = pneg %p135
        %p319 = pneg %p132
        %p320 = pneg %p156
        %p321 = pneg %p153
        %p322 = pneg %p182
        %p323 = pneg %p179
        %s324 = sand.u32 %s169, 1
        %s325 = scalar_lea.sflag [#allocation5], %s324
        %s326 = sand.u32 %s169, 1
        %s327 = smul.addr %s326, 256
        %s328 = scalar_lea.vmem [#allocation11], %s327
        %s329 = smul.u32 32, %s28
        %s330 = smul.u32 2, %s29
        %s331 = smul.u32 2, %s29
        %s332 = smul.u32 32, %s29
        %s333 = smul.u32 32, %s28
        %p334 = scmp.eq.s32.totalorder %s29, 0
        // Predicated region
        $region57: #{tpu_custom_call.1} parent=39 // pred_check
          %p335 = pneg %p334
        $region58: #{tpu_custom_call.1} parent=39 // pred_check_branch
          %337 = sbr.rel (%p335) target = $region60
        $region59: #{tpu_custom_call.1} parent=39 // pred_region
          %338 = vst [vmem:[#allocation2] sm:$0xff] 0.0
          %339 = vst [vmem:[#allocation2 + $0x8] sm:$0xff] 0.0
          %340 = vst [vmem:[#allocation2 + $0x10] sm:$0xff] 0.0
          %341 = vst [vmem:[#allocation2 + $0x18] sm:$0xff] 0.0
          %342 = vst [vmem:[#allocation2 + $0x20] sm:$0xff] 0.0
          %343 = vst [vmem:[#allocation2 + $0x28] sm:$0xff] 0.0
          %344 = vst [vmem:[#allocation2 + $0x30] sm:$0xff] 0.0
          %345 = vst [vmem:[#allocation2 + $0x38] sm:$0xff] 0.0
          %346 = vst [vmem:[#allocation2 + $0x40] sm:$0xff] 0.0
          %347 = vst [vmem:[#allocation2 + $0x48] sm:$0xff] 0.0
          %348 = vst [vmem:[#allocation2 + $0x50] sm:$0xff] 0.0
          %349 = vst [vmem:[#allocation2 + $0x58] sm:$0xff] 0.0
          %350 = vst [vmem:[#allocation2 + $0x60] sm:$0xff] 0.0
          %351 = vst [vmem:[#allocation2 + $0x68] sm:$0xff] 0.0
          %352 = vst [vmem:[#allocation2 + $0x70] sm:$0xff] 0.0
          %353 = vst [vmem:[#allocation2 + $0x78] sm:$0xff] 0.0
          %354 = vst [vmem:[#allocation2 + $0x80] sm:$0xff] 0.0
          %355 = vst [vmem:[#allocation2 + $0x88] sm:$0xff] 0.0
          %356 = vst [vmem:[#allocation2 + $0x90] sm:$0xff] 0.0
          %357 = vst [vmem:[#allocation2 + $0x98] sm:$0xff] 0.0
          %358 = vst [vmem:[#allocation2 + $0xa0] sm:$0xff] 0.0
          %359 = vst [vmem:[#allocation2 + $0xa8] sm:$0xff] 0.0
          %360 = vst [vmem:[#allocation2 + $0xb0] sm:$0xff] 0.0
          %361 = vst [vmem:[#allocation2 + $0xb8] sm:$0xff] 0.0
          %362 = vst [vmem:[#allocation2 + $0xc0] sm:$0xff] 0.0
          %363 = vst [vmem:[#allocation2 + $0xc8] sm:$0xff] 0.0
          %364 = vst [vmem:[#allocation2 + $0xd0] sm:$0xff] 0.0
          %365 = vst [vmem:[#allocation2 + $0xd8] sm:$0xff] 0.0
          %366 = vst [vmem:[#allocation2 + $0xe0] sm:$0xff] 0.0
          %367 = vst [vmem:[#allocation2 + $0xe8] sm:$0xff] 0.0
          %368 = vst [vmem:[#allocation2 + $0xf0] sm:$0xff] 0.0
          %369 = vst [vmem:[#allocation2 + $0xf8] sm:$0xff] 0.0
        $region60: #{tpu_custom_call.1} parent=39 // pred_fallthru
          _
        %v370 = vld [vmem:[%s286] sm:$0xff]
        %v371 = vld [vmem:[%s286 + $0x8] sm:$0xff]
        %v372 = vld [vmem:[%s286 + $0x10] sm:$0xff]
        %v373 = vld [vmem:[%s286 + $0x18] sm:$0xff]
        %v374 = vld [vmem:[%s286 + $0x20] sm:$0xff]
        %v375 = vld [vmem:[%s286 + $0x28] sm:$0xff]
        %v376 = vld [vmem:[%s286 + $0x30] sm:$0xff]
        %v377 = vld [vmem:[%s286 + $0x38] sm:$0xff]
        %v378 = vld [vmem:[%s286 + $0x40] sm:$0xff]
        %v379 = vld [vmem:[%s286 + $0x48] sm:$0xff]
        %v380 = vld [vmem:[%s286 + $0x50] sm:$0xff]
        %v381 = vld [vmem:[%s286 + $0x58] sm:$0xff]
        %v382 = vld [vmem:[%s286 + $0x60] sm:$0xff]
        %v383 = vld [vmem:[%s286 + $0x68] sm:$0xff]
        %v384 = vld [vmem:[%s286 + $0x70] sm:$0xff]
        %v385 = vld [vmem:[%s286 + $0x78] sm:$0xff]
        %v386 = vld [vmem:[%s286 + $0x80] sm:$0xff]
        %v387 = vld [vmem:[%s286 + $0x88] sm:$0xff]
        %v388 = vld [vmem:[%s286 + $0x90] sm:$0xff]
        %v389 = vld [vmem:[%s286 + $0x98] sm:$0xff]
        %v390 = vld [vmem:[%s286 + $0xa0] sm:$0xff]
        %v391 = vld [vmem:[%s286 + $0xa8] sm:$0xff]
        %v392 = vld [vmem:[%s286 + $0xb0] sm:$0xff]
        %v393 = vld [vmem:[%s286 + $0xb8] sm:$0xff]
        %v394 = vld [vmem:[%s286 + $0xc0] sm:$0xff]
        %v395 = vld [vmem:[%s286 + $0xc8] sm:$0xff]
        %v396 = vld [vmem:[%s286 + $0xd0] sm:$0xff]
        %v397 = vld [vmem:[%s286 + $0xd8] sm:$0xff]
        %v398 = vld [vmem:[%s286 + $0xe0] sm:$0xff]
        %v399 = vld [vmem:[%s286 + $0xe8] sm:$0xff]
        %v400 = vld [vmem:[%s286 + $0xf0] sm:$0xff]
        %v401 = vld [vmem:[%s286 + $0xf8] sm:$0xff]
        %v402 = vld [vmem:[#allocation6] sm:$0xff]
        %v403 = vld [vmem:[#allocation6 + $0x8] sm:$0xff]
        %v404 = vld [vmem:[#allocation6 + $0x10] sm:$0xff]
        %v405 = vld [vmem:[#allocation6 + $0x18] sm:$0xff]
        %v406 = vld [vmem:[#allocation6 + $0x20] sm:$0xff]
        %v407 = vld [vmem:[#allocation6 + $0x28] sm:$0xff]
        %v408 = vld [vmem:[#allocation6 + $0x30] sm:$0xff]
        %v409 = vld [vmem:[#allocation6 + $0x38] sm:$0xff]
        %v410 = vld [vmem:[#allocation6 + $0x40] sm:$0xff]
        %v411 = vld [vmem:[#allocation6 + $0x48] sm:$0xff]
        %v412 = vld [vmem:[#allocation6 + $0x50] sm:$0xff]
        %v413 = vld [vmem:[#allocation6 + $0x58] sm:$0xff]
        %v414 = vld [vmem:[#allocation6 + $0x60] sm:$0xff]
        %v415 = vld [vmem:[#allocation6 + $0x68] sm:$0xff]
        %v416 = vld [vmem:[#allocation6 + $0x70] sm:$0xff]
        %v417 = vld [vmem:[#allocation6 + $0x78] sm:$0xff]
        %v418 = vld [vmem:[#allocation6 + $0x80] sm:$0xff]
        %v419 = vld [vmem:[#allocation6 + $0x88] sm:$0xff]
        %v420 = vld [vmem:[#allocation6 + $0x90] sm:$0xff]
        %v421 = vld [vmem:[#allocation6 + $0x98] sm:$0xff]
        %v422 = vld [vmem:[#allocation6 + $0xa0] sm:$0xff]
        %v423 = vld [vmem:[#allocation6 + $0xa8] sm:$0xff]
        %v424 = vld [vmem:[#allocation6 + $0xb0] sm:$0xff]
        %v425 = vld [vmem:[#allocation6 + $0xb8] sm:$0xff]
        %v426 = vld [vmem:[#allocation6 + $0xc0] sm:$0xff]
        %v427 = vld [vmem:[#allocation6 + $0xc8] sm:$0xff]
        %v428 = vld [vmem:[#allocation6 + $0xd0] sm:$0xff]
        %v429 = vld [vmem:[#allocation6 + $0xd8] sm:$0xff]
        %v430 = vld [vmem:[#allocation6 + $0xe0] sm:$0xff]
        %v431 = vld [vmem:[#allocation6 + $0xe8] sm:$0xff]
        %v432 = vld [vmem:[#allocation6 + $0xf0] sm:$0xff]
        %v433 = vld [vmem:[#allocation6 + $0xf8] sm:$0xff]
        %v434 = vld [vmem:[#allocation8] sm:$0x3]
        %v436 = vperm.slane %v434, 0
        %v437 = vperm.slane %v434, 1
        %v472 = vunpack.c.l.b16 %v370
        %v473 = vunpack.c.h.b16 %v370
        %v474 = vunpack.c.l.b16 %v371
        %v475 = vunpack.c.h.b16 %v371
        %v476 = vunpack.c.l.b16 %v372
        %v477 = vunpack.c.h.b16 %v372
        %v478 = vunpack.c.l.b16 %v373
        %v479 = vunpack.c.h.b16 %v373
        %v480 = vunpack.c.l.b16 %v374
        %v481 = vunpack.c.h.b16 %v374
        %v482 = vunpack.c.l.b16 %v375
        %v483 = vunpack.c.h.b16 %v375
        %v484 = vunpack.c.l.b16 %v376
        %v485 = vunpack.c.h.b16 %v376
        %v486 = vunpack.c.l.b16 %v377
        %v487 = vunpack.c.h.b16 %v377
        %v488 = vunpack.c.l.b16 %v378
        %v489 = vunpack.c.h.b16 %v378
        %v490 = vunpack.c.l.b16 %v379
        %v491 = vunpack.c.h.b16 %v379
        %v492 = vunpack.c.l.b16 %v380
        %v493 = vunpack.c.h.b16 %v380
        %v494 = vunpack.c.l.b16 %v381
        %v495 = vunpack.c.h.b16 %v381
        %v496 = vunpack.c.l.b16 %v382
        %v497 = vunpack.c.h.b16 %v382
        %v498 = vunpack.c.l.b16 %v383
        %v499 = vunpack.c.h.b16 %v383
        %v500 = vunpack.c.l.b16 %v384
        %v501 = vunpack.c.h.b16 %v384
        %v502 = vunpack.c.l.b16 %v385
        %v503 = vunpack.c.h.b16 %v385
        %v504 = vunpack.c.l.b16 %v386
        %v505 = vunpack.c.h.b16 %v386
        %v506 = vunpack.c.l.b16 %v387
        %v507 = vunpack.c.h.b16 %v387
        %v508 = vunpack.c.l.b16 %v388
        %v509 = vunpack.c.h.b16 %v388
        %v510 = vunpack.c.l.b16 %v389
        %v511 = vunpack.c.h.b16 %v389
        %v512 = vunpack.c.l.b16 %v390
        %v513 = vunpack.c.h.b16 %v390
        %v514 = vunpack.c.l.b16 %v391
        %v515 = vunpack.c.h.b16 %v391
        %v516 = vunpack.c.l.b16 %v392
        %v517 = vunpack.c.h.b16 %v392
        %v518 = vunpack.c.l.b16 %v393
        %v519 = vunpack.c.h.b16 %v393
        %v520 = vunpack.c.l.b16 %v394
        %v521 = vunpack.c.h.b16 %v394
        %v522 = vunpack.c.l.b16 %v395
        %v523 = vunpack.c.h.b16 %v395
        %v524 = vunpack.c.l.b16 %v396
        %v525 = vunpack.c.h.b16 %v396
        %v526 = vunpack.c.l.b16 %v397
        %v527 = vunpack.c.h.b16 %v397
        %v528 = vunpack.c.l.b16 %v398
        %v529 = vunpack.c.h.b16 %v398
        %v530 = vunpack.c.l.b16 %v399
        %v531 = vunpack.c.h.b16 %v399
        %v532 = vunpack.c.l.b16 %v400
        %v533 = vunpack.c.h.b16 %v400
        %v534 = vunpack.c.l.b16 %v401
        %v535 = vunpack.c.h.b16 %v401
        %v536 = vpack.c.b16 %v474, %v472
        %v537 = vpack.c.b16 %v475, %v473
        %v538 = vpack.c.b16 %v478, %v476
        %v539 = vpack.c.b16 %v479, %v477
        %v540 = vpack.c.b16 %v482, %v480
        %v541 = vpack.c.b16 %v483, %v481
        %v542 = vpack.c.b16 %v486, %v484
        %v543 = vpack.c.b16 %v487, %v485
        %v544 = vpack.c.b16 %v490, %v488
        %v545 = vpack.c.b16 %v491, %v489
        %v546 = vpack.c.b16 %v494, %v492
        %v547 = vpack.c.b16 %v495, %v493
        %v548 = vpack.c.b16 %v498, %v496
        %v549 = vpack.c.b16 %v499, %v497
        %v550 = vpack.c.b16 %v502, %v500
        %v551 = vpack.c.b16 %v503, %v501
        %v552 = vpack.c.b16 %v506, %v504
        %v553 = vpack.c.b16 %v507, %v505
        %v554 = vpack.c.b16 %v510, %v508
        %v555 = vpack.c.b16 %v511, %v509
        %v556 = vpack.c.b16 %v514, %v512
        %v557 = vpack.c.b16 %v515, %v513
        %v558 = vpack.c.b16 %v518, %v516
        %v559 = vpack.c.b16 %v519, %v517
        %v560 = vpack.c.b16 %v522, %v520
        %v561 = vpack.c.b16 %v523, %v521
        %v562 = vpack.c.b16 %v526, %v524
        %v563 = vpack.c.b16 %v527, %v525
        %v564 = vpack.c.b16 %v530, %v528
        %v565 = vpack.c.b16 %v531, %v529
        %v566 = vpack.c.b16 %v534, %v532
        %v567 = vpack.c.b16 %v535, %v533
        %v632 = vunpack.c.l.b16 %v402
        %v633 = vunpack.c.h.b16 %v402
        %v634 = vunpack.c.l.b16 %v403
        %v635 = vunpack.c.h.b16 %v403
        %v636 = vunpack.c.l.b16 %v404
        %v637 = vunpack.c.h.b16 %v404
        %v638 = vunpack.c.l.b16 %v405
        %v639 = vunpack.c.h.b16 %v405
        %v640 = vunpack.c.l.b16 %v406
        %v641 = vunpack.c.h.b16 %v406
        %v642 = vunpack.c.l.b16 %v407
        %v643 = vunpack.c.h.b16 %v407
        %v644 = vunpack.c.l.b16 %v408
        %v645 = vunpack.c.h.b16 %v408
        %v646 = vunpack.c.l.b16 %v409
        %v647 = vunpack.c.h.b16 %v409
        %v648 = vunpack.c.l.b16 %v410
        %v649 = vunpack.c.h.b16 %v410
        %v650 = vunpack.c.l.b16 %v411
        %v651 = vunpack.c.h.b16 %v411
        %v652 = vunpack.c.l.b16 %v412
        %v653 = vunpack.c.h.b16 %v412
        %v654 = vunpack.c.l.b16 %v413
        %v655 = vunpack.c.h.b16 %v413
        %v656 = vunpack.c.l.b16 %v414
        %v657 = vunpack.c.h.b16 %v414
        %v658 = vunpack.c.l.b16 %v415
        %v659 = vunpack.c.h.b16 %v415
        %v660 = vunpack.c.l.b16 %v416
        %v661 = vunpack.c.h.b16 %v416
        %v662 = vunpack.c.l.b16 %v417
        %v663 = vunpack.c.h.b16 %v417
        %v664 = vunpack.c.l.b16 %v418
        %v665 = vunpack.c.h.b16 %v418
        %v666 = vunpack.c.l.b16 %v419
        %v667 = vunpack.c.h.b16 %v419
        %v668 = vunpack.c.l.b16 %v420
        %v669 = vunpack.c.h.b16 %v420
        %v670 = vunpack.c.l.b16 %v421
        %v671 = vunpack.c.h.b16 %v421
        %v672 = vunpack.c.l.b16 %v422
        %v673 = vunpack.c.h.b16 %v422
        %v674 = vunpack.c.l.b16 %v423
        %v675 = vunpack.c.h.b16 %v423
        %v676 = vunpack.c.l.b16 %v424
        %v677 = vunpack.c.h.b16 %v424
        %v678 = vunpack.c.l.b16 %v425
        %v679 = vunpack.c.h.b16 %v425
        %v680 = vunpack.c.l.b16 %v426
        %v681 = vunpack.c.h.b16 %v426
        %v682 = vunpack.c.l.b16 %v427
        %v683 = vunpack.c.h.b16 %v427
        %v684 = vunpack.c.l.b16 %v428
        %v685 = vunpack.c.h.b16 %v428
        %v686 = vunpack.c.l.b16 %v429
        %v687 = vunpack.c.h.b16 %v429
        %v688 = vunpack.c.l.b16 %v430
        %v689 = vunpack.c.h.b16 %v430
        %v690 = vunpack.c.l.b16 %v431
        %v691 = vunpack.c.h.b16 %v431
        %v692 = vunpack.c.l.b16 %v432
        %v693 = vunpack.c.h.b16 %v432
        %v694 = vunpack.c.l.b16 %v433
        %v695 = vunpack.c.h.b16 %v433
        %v696 = vpack.c.b16 %v634, %v632
        %v697 = vpack.c.b16 %v635, %v633
        %v698 = vpack.c.b16 %v638, %v636
        %v699 = vpack.c.b16 %v639, %v637
        %v700 = vpack.c.b16 %v642, %v640
        %v701 = vpack.c.b16 %v643, %v641
        %v702 = vpack.c.b16 %v646, %v644
        %v703 = vpack.c.b16 %v647, %v645
        %v704 = vpack.c.b16 %v650, %v648
        %v705 = vpack.c.b16 %v651, %v649
        %v706 = vpack.c.b16 %v654, %v652
        %v707 = vpack.c.b16 %v655, %v653
        %v708 = vpack.c.b16 %v658, %v656
        %v709 = vpack.c.b16 %v659, %v657
        %v710 = vpack.c.b16 %v662, %v660
        %v711 = vpack.c.b16 %v663, %v661
        %v712 = vpack.c.b16 %v666, %v664
        %v713 = vpack.c.b16 %v667, %v665
        %v714 = vpack.c.b16 %v670, %v668
        %v715 = vpack.c.b16 %v671, %v669
        %v716 = vpack.c.b16 %v674, %v672
        %v717 = vpack.c.b16 %v675, %v673
        %v718 = vpack.c.b16 %v678, %v676
        %v719 = vpack.c.b16 %v679, %v677
        %v720 = vpack.c.b16 %v682, %v680
        %v721 = vpack.c.b16 %v683, %v681
        %v722 = vpack.c.b16 %v686, %v684
        %v723 = vpack.c.b16 %v687, %v685
        %v724 = vpack.c.b16 %v690, %v688
        %v725 = vpack.c.b16 %v691, %v689
        %v726 = vpack.c.b16 %v694, %v692
        %v727 = vpack.c.b16 %v695, %v693
        %760 = vmatpush.bf16.msra.mxu0 %v710
        %761 = vmatpush.bf16.msra.mxu0 %v708
        %762 = vmatpush.bf16.msra.mxu0 %v706
        %763 = vmatpush.bf16.msra.mxu0 %v704
        %764 = vmatpush.bf16.msra.mxu0 %v702
        %765 = vmatpush.bf16.msra.mxu0 %v700
        %766 = vmatpush.bf16.msra.mxu0 %v698
        %767 = vmatpush.bf16.msra.mxu0 %v696
        %768 = vmatmul.bf16.gmra.mxu0 %v536
        %v769 = vpop.f32.mrf.mxu0
        %v770 = vadd.f32 %v436, %v769
        %v771 = vpop.f32.mrf.mxu0
        %v772 = vadd.f32 %v436, %v771
        %773 = vmatmul.bf16.gmra.mxu0 %v538
        %v774 = vpop.f32.mrf.mxu0
        %v775 = vadd.f32 %v436, %v774
        %v776 = vpop.f32.mrf.mxu0
        %v777 = vadd.f32 %v436, %v776
        %778 = vmatmul.bf16.gmra.mxu0 %v540
        %v779 = vpop.f32.mrf.mxu0
        %v780 = vadd.f32 %v436, %v779
        %v781 = vpop.f32.mrf.mxu0
        %v782 = vadd.f32 %v436, %v781
        %783 = vmatmul.bf16.gmra.mxu0 %v542
        %v784 = vpop.f32.mrf.mxu0
        %v785 = vadd.f32 %v436, %v784
        %v786 = vpop.f32.mrf.mxu0
        %v787 = vadd.f32 %v436, %v786
        %788 = vmatmul.bf16.gmra.mxu0 %v544
        %v789 = vpop.f32.mrf.mxu0
        %v790 = vadd.f32 %v436, %v789
        %v791 = vpop.f32.mrf.mxu0
        %v792 = vadd.f32 %v436, %v791
        %793 = vmatmul.bf16.gmra.mxu0 %v546
        %v794 = vpop.f32.mrf.mxu0
        %v795 = vadd.f32 %v436, %v794
        %v796 = vpop.f32.mrf.mxu0
        %v797 = vadd.f32 %v436, %v796
        %798 = vmatmul.bf16.gmra.mxu0 %v548
        %v799 = vpop.f32.mrf.mxu0
        %v800 = vadd.f32 %v436, %v799
        %v801 = vpop.f32.mrf.mxu0
        %v802 = vadd.f32 %v436, %v801
        %803 = vmatmul.bf16.gmra.mxu0 %v550
        %v804 = vpop.f32.mrf.mxu0
        %v805 = vadd.f32 %v436, %v804
        %v806 = vpop.f32.mrf.mxu0
        %v807 = vadd.f32 %v436, %v806
        %808 = vmatmul.bf16.gmra.mxu0 %v552
        %v809 = vpop.f32.mrf.mxu0
        %v810 = vadd.f32 %v436, %v809
        %v811 = vpop.f32.mrf.mxu0
        %v812 = vadd.f32 %v436, %v811
        %813 = vmatmul.bf16.gmra.mxu0 %v554
        %v814 = vpop.f32.mrf.mxu0
        %v815 = vadd.f32 %v436, %v814
        %v816 = vpop.f32.mrf.mxu0
        %v817 = vadd.f32 %v436, %v816
        %818 = vmatmul.bf16.gmra.mxu0 %v556
        %v819 = vpop.f32.mrf.mxu0
        %v820 = vadd.f32 %v436, %v819
        %v821 = vpop.f32.mrf.mxu0
        %v822 = vadd.f32 %v436, %v821
        %823 = vmatmul.bf16.gmra.mxu0 %v558
        %v824 = vpop.f32.mrf.mxu0
        %v825 = vadd.f32 %v436, %v824
        %v826 = vpop.f32.mrf.mxu0
        %v827 = vadd.f32 %v436, %v826
        %828 = vmatmul.bf16.gmra.mxu0 %v560
        %v829 = vpop.f32.mrf.mxu0
        %v830 = vadd.f32 %v436, %v829
        %v831 = vpop.f32.mrf.mxu0
        %v832 = vadd.f32 %v436, %v831
        %833 = vmatmul.bf16.gmra.mxu0 %v562
        %v834 = vpop.f32.mrf.mxu0
        %v835 = vadd.f32 %v436, %v834
        %v836 = vpop.f32.mrf.mxu0
        %v837 = vadd.f32 %v436, %v836
        %838 = vmatmul.bf16.gmra.mxu0 %v564
        %v839 = vpop.f32.mrf.mxu0
        %v840 = vadd.f32 %v436, %v839
        %v841 = vpop.f32.mrf.mxu0
        %v842 = vadd.f32 %v436, %v841
        %843 = vmatmul.bf16.gmra.mxu0 %v566
        %v844 = vpop.f32.mrf.mxu0
        %v845 = vadd.f32 %v436, %v844
        %v846 = vpop.f32.mrf.mxu0
        %v847 = vadd.f32 %v436, %v846
        %848 = vdwg.mxu0
        %849 = vmatpush.bf16.msra.mxu0 %v726
        %850 = vmatpush.bf16.msra.mxu0 %v724
        %851 = vmatpush.bf16.msra.mxu0 %v722
        %852 = vmatpush.bf16.msra.mxu0 %v720
        %853 = vmatpush.bf16.msra.mxu0 %v718
        %854 = vmatpush.bf16.msra.mxu0 %v716
        %855 = vmatpush.bf16.msra.mxu0 %v714
        %856 = vmatpush.bf16.msra.mxu0 %v712
        %857 = vmatmul.bf16.gmra.mxu0 %v537
        %v858 = vpop.f32.mrf.mxu0
        %v859 = vadd.f32 %v770, %v858
        %v860 = vpop.f32.mrf.mxu0
        %v861 = vadd.f32 %v772, %v860
        %862 = vmatmul.bf16.gmra.mxu0 %v539
        %v863 = vpop.f32.mrf.mxu0
        %v864 = vadd.f32 %v775, %v863
        %v865 = vpop.f32.mrf.mxu0
        %v866 = vadd.f32 %v777, %v865
        %867 = vmatmul.bf16.gmra.mxu0 %v541
        %v868 = vpop.f32.mrf.mxu0
        %v869 = vadd.f32 %v780, %v868
        %v870 = vpop.f32.mrf.mxu0
        %v871 = vadd.f32 %v782, %v870
        %872 = vmatmul.bf16.gmra.mxu0 %v543
        %v873 = vpop.f32.mrf.mxu0
        %v874 = vadd.f32 %v785, %v873
        %v875 = vpop.f32.mrf.mxu0
        %v876 = vadd.f32 %v787, %v875
        %877 = vmatmul.bf16.gmra.mxu0 %v545
        %v878 = vpop.f32.mrf.mxu0
        %v879 = vadd.f32 %v790, %v878
        %v880 = vpop.f32.mrf.mxu0
        %v881 = vadd.f32 %v792, %v880
        %882 = vmatmul.bf16.gmra.mxu0 %v547
        %v883 = vpop.f32.mrf.mxu0
        %v884 = vadd.f32 %v795, %v883
        %v885 = vpop.f32.mrf.mxu0
        %v886 = vadd.f32 %v797, %v885
        %887 = vmatmul.bf16.gmra.mxu0 %v549
        %v888 = vpop.f32.mrf.mxu0
        %v889 = vadd.f32 %v800, %v888
        %v890 = vpop.f32.mrf.mxu0
        %v891 = vadd.f32 %v802, %v890
        %892 = vmatmul.bf16.gmra.mxu0 %v551
        %v893 = vpop.f32.mrf.mxu0
        %v894 = vadd.f32 %v805, %v893
        %v895 = vpop.f32.mrf.mxu0
        %v896 = vadd.f32 %v807, %v895
        %897 = vmatmul.bf16.gmra.mxu0 %v553
        %v898 = vpop.f32.mrf.mxu0
        %v899 = vadd.f32 %v810, %v898
        %v900 = vpop.f32.mrf.mxu0
        %v901 = vadd.f32 %v812, %v900
        %902 = vmatmul.bf16.gmra.mxu0 %v555
        %v903 = vpop.f32.mrf.mxu0
        %v904 = vadd.f32 %v815, %v903
        %v905 = vpop.f32.mrf.mxu0
        %v906 = vadd.f32 %v817, %v905
        %907 = vmatmul.bf16.gmra.mxu0 %v557
        %v908 = vpop.f32.mrf.mxu0
        %v909 = vadd.f32 %v820, %v908
        %v910 = vpop.f32.mrf.mxu0
        %v911 = vadd.f32 %v822, %v910
        %912 = vmatmul.bf16.gmra.mxu0 %v559
        %v913 = vpop.f32.mrf.mxu0
        %v914 = vadd.f32 %v825, %v913
        %v915 = vpop.f32.mrf.mxu0
        %v916 = vadd.f32 %v827, %v915
        %917 = vmatmul.bf16.gmra.mxu0 %v561
        %v918 = vpop.f32.mrf.mxu0
        %v919 = vadd.f32 %v830, %v918
        %v920 = vpop.f32.mrf.mxu0
        %v921 = vadd.f32 %v832, %v920
        %922 = vmatmul.bf16.gmra.mxu0 %v563
        %v923 = vpop.f32.mrf.mxu0
        %v924 = vadd.f32 %v835, %v923
        %v925 = vpop.f32.mrf.mxu0
        %v926 = vadd.f32 %v837, %v925
        %927 = vmatmul.bf16.gmra.mxu0 %v565
        %v928 = vpop.f32.mrf.mxu0
        %v929 = vadd.f32 %v840, %v928
        %v930 = vpop.f32.mrf.mxu0
        %v931 = vadd.f32 %v842, %v930
        %932 = vmatmul.bf16.gmra.mxu0 %v567
        %v933 = vpop.f32.mrf.mxu0
        %v934 = vadd.f32 %v845, %v933
        %v935 = vpop.f32.mrf.mxu0
        %v936 = vadd.f32 %v847, %v935
        %937 = vdwg.mxu0
        %938 = vmatpush.bf16.msra.mxu0 %v711
        %939 = vmatpush.bf16.msra.mxu0 %v709
        %940 = vmatpush.bf16.msra.mxu0 %v707
        %941 = vmatpush.bf16.msra.mxu0 %v705
        %942 = vmatpush.bf16.msra.mxu0 %v703
        %943 = vmatpush.bf16.msra.mxu0 %v701
        %944 = vmatpush.bf16.msra.mxu0 %v699
        %945 = vmatpush.bf16.msra.mxu0 %v697
        %946 = vmatmul.bf16.gmra.mxu0 %v536
        %v947 = vpop.f32.mrf.mxu0
        %v948 = vadd.f32 %v437, %v947
        %v949 = vpop.f32.mrf.mxu0
        %v950 = vadd.f32 %v437, %v949
        %951 = vmatmul.bf16.gmra.mxu0 %v538
        %v952 = vpop.f32.mrf.mxu0
        %v953 = vadd.f32 %v437, %v952
        %v954 = vpop.f32.mrf.mxu0
        %v955 = vadd.f32 %v437, %v954
        %956 = vmatmul.bf16.gmra.mxu0 %v540
        %v957 = vpop.f32.mrf.mxu0
        %v958 = vadd.f32 %v437, %v957
        %v959 = vpop.f32.mrf.mxu0
        %v960 = vadd.f32 %v437, %v959
        %961 = vmatmul.bf16.gmra.mxu0 %v542
        %v962 = vpop.f32.mrf.mxu0
        %v963 = vadd.f32 %v437, %v962
        %v964 = vpop.f32.mrf.mxu0
        %v965 = vadd.f32 %v437, %v964
        %966 = vmatmul.bf16.gmra.mxu0 %v544
        %v967 = vpop.f32.mrf.mxu0
        %v968 = vadd.f32 %v437, %v967
        %v969 = vpop.f32.mrf.mxu0
        %v970 = vadd.f32 %v437, %v969
        %971 = vmatmul.bf16.gmra.mxu0 %v546
        %v972 = vpop.f32.mrf.mxu0
        %v973 = vadd.f32 %v437, %v972
        %v974 = vpop.f32.mrf.mxu0
        %v975 = vadd.f32 %v437, %v974
        %976 = vmatmul.bf16.gmra.mxu0 %v548
        %v977 = vpop.f32.mrf.mxu0
        %v978 = vadd.f32 %v437, %v977
        %v979 = vpop.f32.mrf.mxu0
        %v980 = vadd.f32 %v437, %v979
        %981 = vmatmul.bf16.gmra.mxu0 %v550
        %v982 = vpop.f32.mrf.mxu0
        %v983 = vadd.f32 %v437, %v982
        %v984 = vpop.f32.mrf.mxu0
        %v985 = vadd.f32 %v437, %v984
        %986 = vmatmul.bf16.gmra.mxu0 %v552
        %v987 = vpop.f32.mrf.mxu0
        %v988 = vadd.f32 %v437, %v987
        %v989 = vpop.f32.mrf.mxu0
        %v990 = vadd.f32 %v437, %v989
        %991 = vmatmul.bf16.gmra.mxu0 %v554
        %v992 = vpop.f32.mrf.mxu0
        %v993 = vadd.f32 %v437, %v992
        %v994 = vpop.f32.mrf.mxu0
        %v995 = vadd.f32 %v437, %v994
        %996 = vmatmul.bf16.gmra.mxu0 %v556
        %v997 = vpop.f32.mrf.mxu0
        %v998 = vadd.f32 %v437, %v997
        %v999 = vpop.f32.mrf.mxu0
        %v1000 = vadd.f32 %v437, %v999
        %1001 = vmatmul.bf16.gmra.mxu0 %v558
        %v1002 = vpop.f32.mrf.mxu0
        %v1003 = vadd.f32 %v437, %v1002
        %v1004 = vpop.f32.mrf.mxu0
        %v1005 = vadd.f32 %v437, %v1004
        %1006 = vmatmul.bf16.gmra.mxu0 %v560
        %v1007 = vpop.f32.mrf.mxu0
        %v1008 = vadd.f32 %v437, %v1007
        %v1009 = vpop.f32.mrf.mxu0
        %v1010 = vadd.f32 %v437, %v1009
        %1011 = vmatmul.bf16.gmra.mxu0 %v562
        %v1012 = vpop.f32.mrf.mxu0
        %v1013 = vadd.f32 %v437, %v1012
        %v1014 = vpop.f32.mrf.mxu0
        %v1015 = vadd.f32 %v437, %v1014
        %1016 = vmatmul.bf16.gmra.mxu0 %v564
        %v1017 = vpop.f32.mrf.mxu0
        %v1018 = vadd.f32 %v437, %v1017
        %v1019 = vpop.f32.mrf.mxu0
        %v1020 = vadd.f32 %v437, %v1019
        %1021 = vmatmul.bf16.gmra.mxu0 %v566
        %v1022 = vpop.f32.mrf.mxu0
        %v1023 = vadd.f32 %v437, %v1022
        %v1024 = vpop.f32.mrf.mxu0
        %v1025 = vadd.f32 %v437, %v1024
        %1026 = vdwg.mxu0
        %1027 = vmatpush.bf16.msra.mxu0 %v727
        %1028 = vmatpush.bf16.msra.mxu0 %v725
        %1029 = vmatpush.bf16.msra.mxu0 %v723
        %1030 = vmatpush.bf16.msra.mxu0 %v721
        %1031 = vmatpush.bf16.msra.mxu0 %v719
        %1032 = vmatpush.bf16.msra.mxu0 %v717
        %1033 = vmatpush.bf16.msra.mxu0 %v715
        %1034 = vmatpush.bf16.msra.mxu0 %v713
        %1035 = vmatmul.bf16.gmra.mxu0 %v537
        %v1036 = vpop.f32.mrf.mxu0
        %v1037 = vadd.f32 %v948, %v1036
        %v1038 = vpop.f32.mrf.mxu0
        %v1039 = vadd.f32 %v950, %v1038
        %1040 = vmatmul.bf16.gmra.mxu0 %v539
        %v1041 = vpop.f32.mrf.mxu0
        %v1042 = vadd.f32 %v953, %v1041
        %v1043 = vpop.f32.mrf.mxu0
        %v1044 = vadd.f32 %v955, %v1043
        %1045 = vmatmul.bf16.gmra.mxu0 %v541
        %v1046 = vpop.f32.mrf.mxu0
        %v1047 = vadd.f32 %v958, %v1046
        %v1048 = vpop.f32.mrf.mxu0
        %v1049 = vadd.f32 %v960, %v1048
        %1050 = vmatmul.bf16.gmra.mxu0 %v543
        %v1051 = vpop.f32.mrf.mxu0
        %v1052 = vadd.f32 %v963, %v1051
        %v1053 = vpop.f32.mrf.mxu0
        %v1054 = vadd.f32 %v965, %v1053
        %1055 = vmatmul.bf16.gmra.mxu0 %v545
        %v1056 = vpop.f32.mrf.mxu0
        %v1057 = vadd.f32 %v968, %v1056
        %v1058 = vpop.f32.mrf.mxu0
        %v1059 = vadd.f32 %v970, %v1058
        %1060 = vmatmul.bf16.gmra.mxu0 %v547
        %v1061 = vpop.f32.mrf.mxu0
        %v1062 = vadd.f32 %v973, %v1061
        %v1063 = vpop.f32.mrf.mxu0
        %v1064 = vadd.f32 %v975, %v1063
        %1065 = vmatmul.bf16.gmra.mxu0 %v549
        %v1066 = vpop.f32.mrf.mxu0
        %v1067 = vadd.f32 %v978, %v1066
        %v1068 = vpop.f32.mrf.mxu0
        %v1069 = vadd.f32 %v980, %v1068
        %1070 = vmatmul.bf16.gmra.mxu0 %v551
        %v1071 = vpop.f32.mrf.mxu0
        %v1072 = vadd.f32 %v983, %v1071
        %v1073 = vpop.f32.mrf.mxu0
        %v1074 = vadd.f32 %v985, %v1073
        %1075 = vmatmul.bf16.gmra.mxu0 %v553
        %v1076 = vpop.f32.mrf.mxu0
        %v1077 = vadd.f32 %v988, %v1076
        %v1078 = vpop.f32.mrf.mxu0
        %v1079 = vadd.f32 %v990, %v1078
        %1080 = vmatmul.bf16.gmra.mxu0 %v555
        %v1081 = vpop.f32.mrf.mxu0
        %v1082 = vadd.f32 %v993, %v1081
        %v1083 = vpop.f32.mrf.mxu0
        %v1084 = vadd.f32 %v995, %v1083
        %1085 = vmatmul.bf16.gmra.mxu0 %v557
        %v1086 = vpop.f32.mrf.mxu0
        %v1087 = vadd.f32 %v998, %v1086
        %v1088 = vpop.f32.mrf.mxu0
        %v1089 = vadd.f32 %v1000, %v1088
        %1090 = vmatmul.bf16.gmra.mxu0 %v559
        %v1091 = vpop.f32.mrf.mxu0
        %v1092 = vadd.f32 %v1003, %v1091
        %v1093 = vpop.f32.mrf.mxu0
        %v1094 = vadd.f32 %v1005, %v1093
        %1095 = vmatmul.bf16.gmra.mxu0 %v561
        %v1096 = vpop.f32.mrf.mxu0
        %v1097 = vadd.f32 %v1008, %v1096
        %v1098 = vpop.f32.mrf.mxu0
        %v1099 = vadd.f32 %v1010, %v1098
        %1100 = vmatmul.bf16.gmra.mxu0 %v563
        %v1101 = vpop.f32.mrf.mxu0
        %v1102 = vadd.f32 %v1013, %v1101
        %v1103 = vpop.f32.mrf.mxu0
        %v1104 = vadd.f32 %v1015, %v1103
        %1105 = vmatmul.bf16.gmra.mxu0 %v565
        %v1106 = vpop.f32.mrf.mxu0
        %v1107 = vadd.f32 %v1018, %v1106
        %v1108 = vpop.f32.mrf.mxu0
        %v1109 = vadd.f32 %v1020, %v1108
        %1110 = vmatmul.bf16.gmra.mxu0 %v567
        %v1111 = vpop.f32.mrf.mxu0
        %v1112 = vadd.f32 %v1023, %v1111
        %v1113 = vpop.f32.mrf.mxu0
        %v1114 = vadd.f32 %v1025, %v1113
        %1115 = vdwg.mxu0
        %v1116 = vmax.f32 %v859, 0.0
        %v1117 = vmax.f32 %v1037, 0.0
        %v1118 = vmax.f32 %v861, 0.0
        %v1119 = vmax.f32 %v1039, 0.0
        %v1120 = vmax.f32 %v864, 0.0
        %v1121 = vmax.f32 %v1042, 0.0
        %v1122 = vmax.f32 %v866, 0.0
        %v1123 = vmax.f32 %v1044, 0.0
        %v1124 = vmax.f32 %v869, 0.0
        %v1125 = vmax.f32 %v1047, 0.0
        %v1126 = vmax.f32 %v871, 0.0
        %v1127 = vmax.f32 %v1049, 0.0
        %v1128 = vmax.f32 %v874, 0.0
        %v1129 = vmax.f32 %v1052, 0.0
        %v1130 = vmax.f32 %v876, 0.0
        %v1131 = vmax.f32 %v1054, 0.0
        %v1132 = vmax.f32 %v879, 0.0
        %v1133 = vmax.f32 %v1057, 0.0
        %v1134 = vmax.f32 %v881, 0.0
        %v1135 = vmax.f32 %v1059, 0.0
        %v1136 = vmax.f32 %v884, 0.0
        %v1137 = vmax.f32 %v1062, 0.0
        %v1138 = vmax.f32 %v886, 0.0
        %v1139 = vmax.f32 %v1064, 0.0
        %v1140 = vmax.f32 %v889, 0.0
        %v1141 = vmax.f32 %v1067, 0.0
        %v1142 = vmax.f32 %v891, 0.0
        %v1143 = vmax.f32 %v1069, 0.0
        %v1144 = vmax.f32 %v894, 0.0
        %v1145 = vmax.f32 %v1072, 0.0
        %v1146 = vmax.f32 %v896, 0.0
        %v1147 = vmax.f32 %v1074, 0.0
        %v1148 = vmax.f32 %v899, 0.0
        %v1149 = vmax.f32 %v1077, 0.0
        %v1150 = vmax.f32 %v901, 0.0
        %v1151 = vmax.f32 %v1079, 0.0
        %v1152 = vmax.f32 %v904, 0.0
        %v1153 = vmax.f32 %v1082, 0.0
        %v1154 = vmax.f32 %v906, 0.0
        %v1155 = vmax.f32 %v1084, 0.0
        %v1156 = vmax.f32 %v909, 0.0
        %v1157 = vmax.f32 %v1087, 0.0
        %v1158 = vmax.f32 %v911, 0.0
        %v1159 = vmax.f32 %v1089, 0.0
        %v1160 = vmax.f32 %v914, 0.0
        %v1161 = vmax.f32 %v1092, 0.0
        %v1162 = vmax.f32 %v916, 0.0
        %v1163 = vmax.f32 %v1094, 0.0
        %v1164 = vmax.f32 %v919, 0.0
        %v1165 = vmax.f32 %v1097, 0.0
        %v1166 = vmax.f32 %v921, 0.0
        %v1167 = vmax.f32 %v1099, 0.0
        %v1168 = vmax.f32 %v924, 0.0
        %v1169 = vmax.f32 %v1102, 0.0
        %v1170 = vmax.f32 %v926, 0.0
        %v1171 = vmax.f32 %v1104, 0.0
        %v1172 = vmax.f32 %v929, 0.0
        %v1173 = vmax.f32 %v1107, 0.0
        %v1174 = vmax.f32 %v931, 0.0
        %v1175 = vmax.f32 %v1109, 0.0
        %v1176 = vmax.f32 %v934, 0.0
        %v1177 = vmax.f32 %v1112, 0.0
        %v1178 = vmax.f32 %v936, 0.0
        %v1179 = vmax.f32 %v1114, 0.0
        %v1180 = vld [vmem:[#allocation2] sm:$0xff]
        %v1181 = vld [vmem:[#allocation2 + $0x8] sm:$0xff]
        %v1182 = vld [vmem:[#allocation2 + $0x10] sm:$0xff]
        %v1183 = vld [vmem:[#allocation2 + $0x18] sm:$0xff]
        %v1184 = vld [vmem:[#allocation2 + $0x20] sm:$0xff]
        %v1185 = vld [vmem:[#allocation2 + $0x28] sm:$0xff]
        %v1186 = vld [vmem:[#allocation2 + $0x30] sm:$0xff]
        %v1187 = vld [vmem:[#allocation2 + $0x38] sm:$0xff]
        %v1188 = vld [vmem:[#allocation2 + $0x40] sm:$0xff]
        %v1189 = vld [vmem:[#allocation2 + $0x48] sm:$0xff]
        %v1190 = vld [vmem:[#allocation2 + $0x50] sm:$0xff]
        %v1191 = vld [vmem:[#allocation2 + $0x58] sm:$0xff]
        %v1192 = vld [vmem:[#allocation2 + $0x60] sm:$0xff]
        %v1193 = vld [vmem:[#allocation2 + $0x68] sm:$0xff]
        %v1194 = vld [vmem:[#allocation2 + $0x70] sm:$0xff]
        %v1195 = vld [vmem:[#allocation2 + $0x78] sm:$0xff]
        %v1196 = vld [vmem:[#allocation2 + $0x80] sm:$0xff]
        %v1197 = vld [vmem:[#allocation2 + $0x88] sm:$0xff]
        %v1198 = vld [vmem:[#allocation2 + $0x90] sm:$0xff]
        %v1199 = vld [vmem:[#allocation2 + $0x98] sm:$0xff]
        %v1200 = vld [vmem:[#allocation2 + $0xa0] sm:$0xff]
        %v1201 = vld [vmem:[#allocation2 + $0xa8] sm:$0xff]
        %v1202 = vld [vmem:[#allocation2 + $0xb0] sm:$0xff]
        %v1203 = vld [vmem:[#allocation2 + $0xb8] sm:$0xff]
        %v1204 = vld [vmem:[#allocation2 + $0xc0] sm:$0xff]
        %v1205 = vld [vmem:[#allocation2 + $0xc8] sm:$0xff]
        %v1206 = vld [vmem:[#allocation2 + $0xd0] sm:$0xff]
        %v1207 = vld [vmem:[#allocation2 + $0xd8] sm:$0xff]
        %v1208 = vld [vmem:[#allocation2 + $0xe0] sm:$0xff]
        %v1209 = vld [vmem:[#allocation2 + $0xe8] sm:$0xff]
        %v1210 = vld [vmem:[#allocation2 + $0xf0] sm:$0xff]
        %v1211 = vld [vmem:[#allocation2 + $0xf8] sm:$0xff]
        %v1212 = vpack.c.bf16 %v1118, %v1116
        %v1213 = vpack.c.bf16 %v1119, %v1117
        %v1214 = vpack.c.bf16 %v1122, %v1120
        %v1215 = vpack.c.bf16 %v1123, %v1121
        %v1216 = vpack.c.bf16 %v1126, %v1124
        %v1217 = vpack.c.bf16 %v1127, %v1125
        %v1218 = vpack.c.bf16 %v1130, %v1128
        %v1219 = vpack.c.bf16 %v1131, %v1129
        %v1220 = vpack.c.bf16 %v1134, %v1132
        %v1221 = vpack.c.bf16 %v1135, %v1133
        %v1222 = vpack.c.bf16 %v1138, %v1136
        %v1223 = vpack.c.bf16 %v1139, %v1137
        %v1224 = vpack.c.bf16 %v1142, %v1140
        %v1225 = vpack.c.bf16 %v1143, %v1141
        %v1226 = vpack.c.bf16 %v1146, %v1144
        %v1227 = vpack.c.bf16 %v1147, %v1145
        %v1228 = vpack.c.bf16 %v1150, %v1148
        %v1229 = vpack.c.bf16 %v1151, %v1149
        %v1230 = vpack.c.bf16 %v1154, %v1152
        %v1231 = vpack.c.bf16 %v1155, %v1153
        %v1232 = vpack.c.bf16 %v1158, %v1156
        %v1233 = vpack.c.bf16 %v1159, %v1157
        %v1234 = vpack.c.bf16 %v1162, %v1160
        %v1235 = vpack.c.bf16 %v1163, %v1161
        %v1236 = vpack.c.bf16 %v1166, %v1164
        %v1237 = vpack.c.bf16 %v1167, %v1165
        %v1238 = vpack.c.bf16 %v1170, %v1168
        %v1239 = vpack.c.bf16 %v1171, %v1169
        %v1240 = vpack.c.bf16 %v1174, %v1172
        %v1241 = vpack.c.bf16 %v1175, %v1173
        %v1242 = vpack.c.bf16 %v1178, %v1176
        %v1243 = vpack.c.bf16 %v1179, %v1177
        %v1244 = vld [vmem:[#allocation9] sm:$0xf]
        %v1245 = vld [vmem:[#allocation9 + $0x4] sm:$0xf]
        %v1246 = vld [vmem:[#allocation9 + $0x8] sm:$0xf]
        %v1247 = vld [vmem:[#allocation9 + $0xc] sm:$0xf]
        %v1248 = vld [vmem:[#allocation9 + $0x10] sm:$0xf]
        %v1249 = vld [vmem:[#allocation9 + $0x14] sm:$0xf]
        %v1250 = vld [vmem:[#allocation9 + $0x18] sm:$0xf]
        %v1251 = vld [vmem:[#allocation9 + $0x1c] sm:$0xf]
        %v1252 = vld [vmem:[#allocation9 + $0x20] sm:$0xf]
        %v1253 = vld [vmem:[#allocation9 + $0x24] sm:$0xf]
        %v1254 = vld [vmem:[#allocation9 + $0x28] sm:$0xf]
        %v1255 = vld [vmem:[#allocation9 + $0x2c] sm:$0xf]
        %v1256 = vld [vmem:[#allocation9 + $0x30] sm:$0xf]
        %v1257 = vld [vmem:[#allocation9 + $0x34] sm:$0xf]
        %v1258 = vld [vmem:[#allocation9 + $0x38] sm:$0xf]
        %v1259 = vld [vmem:[#allocation9 + $0x3c] sm:$0xf]
        %v1260 = vld [vmem:[#allocation9 + $0x40] sm:$0xf]
        %v1261 = vld [vmem:[#allocation9 + $0x44] sm:$0xf]
        %v1262 = vld [vmem:[#allocation9 + $0x48] sm:$0xf]
        %v1263 = vld [vmem:[#allocation9 + $0x4c] sm:$0xf]
        %v1264 = vld [vmem:[#allocation9 + $0x50] sm:$0xf]
        %v1265 = vld [vmem:[#allocation9 + $0x54] sm:$0xf]
        %v1266 = vld [vmem:[#allocation9 + $0x58] sm:$0xf]
        %v1267 = vld [vmem:[#allocation9 + $0x5c] sm:$0xf]
        %v1268 = vld [vmem:[#allocation9 + $0x60] sm:$0xf]
        %v1269 = vld [vmem:[#allocation9 + $0x64] sm:$0xf]
        %v1270 = vld [vmem:[#allocation9 + $0x68] sm:$0xf]
        %v1271 = vld [vmem:[#allocation9 + $0x6c] sm:$0xf]
        %v1272 = vld [vmem:[#allocation9 + $0x70] sm:$0xf]
        %v1273 = vld [vmem:[#allocation9 + $0x74] sm:$0xf]
        %v1274 = vld [vmem:[#allocation9 + $0x78] sm:$0xf]
        %v1275 = vld [vmem:[#allocation9 + $0x7c] sm:$0xf]
        %v1308 = vunpack.c.l.b16 %v1244
        %v1309 = vunpack.c.l.b16 %v1245
        %v1310 = vunpack.c.l.b16 %v1246
        %v1311 = vunpack.c.l.b16 %v1247
        %v1312 = vunpack.c.l.b16 %v1248
        %v1313 = vunpack.c.l.b16 %v1249
        %v1314 = vunpack.c.l.b16 %v1250
        %v1315 = vunpack.c.l.b16 %v1251
        %v1316 = vunpack.c.l.b16 %v1252
        %v1317 = vunpack.c.l.b16 %v1253
        %v1318 = vunpack.c.l.b16 %v1254
        %v1319 = vunpack.c.l.b16 %v1255
        %v1320 = vunpack.c.l.b16 %v1256
        %v1321 = vunpack.c.l.b16 %v1257
        %v1322 = vunpack.c.l.b16 %v1258
        %v1323 = vunpack.c.l.b16 %v1259
        %v1324 = vunpack.c.l.b16 %v1260
        %v1325 = vunpack.c.l.b16 %v1261
        %v1326 = vunpack.c.l.b16 %v1262
        %v1327 = vunpack.c.l.b16 %v1263
        %v1328 = vunpack.c.l.b16 %v1264
        %v1329 = vunpack.c.l.b16 %v1265
        %v1330 = vunpack.c.l.b16 %v1266
        %v1331 = vunpack.c.l.b16 %v1267
        %v1332 = vunpack.c.l.b16 %v1268
        %v1333 = vunpack.c.l.b16 %v1269
        %v1334 = vunpack.c.l.b16 %v1270
        %v1335 = vunpack.c.l.b16 %v1271
        %v1336 = vunpack.c.l.b16 %v1272
        %v1337 = vunpack.c.l.b16 %v1273
        %v1338 = vunpack.c.l.b16 %v1274
        %v1339 = vunpack.c.l.b16 %v1275
        %v1340 = vpack.c.b16 %v1309, %v1308
        %v1341 = vpack.c.b16 %v1311, %v1310
        %v1342 = vpack.c.b16 %v1313, %v1312
        %v1343 = vpack.c.b16 %v1315, %v1314
        %v1344 = vpack.c.b16 %v1317, %v1316
        %v1345 = vpack.c.b16 %v1319, %v1318
        %v1346 = vpack.c.b16 %v1321, %v1320
        %v1347 = vpack.c.b16 %v1323, %v1322
        %v1348 = vpack.c.b16 %v1325, %v1324
        %v1349 = vpack.c.b16 %v1327, %v1326
        %v1350 = vpack.c.b16 %v1329, %v1328
        %v1351 = vpack.c.b16 %v1331, %v1330
        %v1352 = vpack.c.b16 %v1333, %v1332
        %v1353 = vpack.c.b16 %v1335, %v1334
        %v1354 = vpack.c.b16 %v1337, %v1336
        %v1355 = vpack.c.b16 %v1339, %v1338
        %1372 = vmatpush.bf16.msra.mxu0 %v1347
        %1373 = vmatpush.bf16.msra.mxu0 %v1346
        %1374 = vmatpush.bf16.msra.mxu0 %v1345
        %1375 = vmatpush.bf16.msra.mxu0 %v1344
        %1376 = vmatpush.bf16.msra.mxu0 %v1343
        %1377 = vmatpush.bf16.msra.mxu0 %v1342
        %1378 = vmatpush.bf16.msra.mxu0 %v1341
        %1379 = vmatpush.bf16.msra.mxu0 %v1340
        %1380 = vmatmul.bf16.gmra.mxu0 %v1212
        %v1381 = vpop.f32.mrf.mxu0
        %v1382 = vadd.f32 0.0, %v1381
        %v1383 = vpop.f32.mrf.mxu0
        %v1384 = vadd.f32 0.0, %v1383
        %1385 = vmatmul.bf16.gmra.mxu0 %v1214
        %v1386 = vpop.f32.mrf.mxu0
        %v1387 = vadd.f32 0.0, %v1386
        %v1388 = vpop.f32.mrf.mxu0
        %v1389 = vadd.f32 0.0, %v1388
        %1390 = vmatmul.bf16.gmra.mxu0 %v1216
        %v1391 = vpop.f32.mrf.mxu0
        %v1392 = vadd.f32 0.0, %v1391
        %v1393 = vpop.f32.mrf.mxu0
        %v1394 = vadd.f32 0.0, %v1393
        %1395 = vmatmul.bf16.gmra.mxu0 %v1218
        %v1396 = vpop.f32.mrf.mxu0
        %v1397 = vadd.f32 0.0, %v1396
        %v1398 = vpop.f32.mrf.mxu0
        %v1399 = vadd.f32 0.0, %v1398
        %1400 = vmatmul.bf16.gmra.mxu0 %v1220
        %v1401 = vpop.f32.mrf.mxu0
        %v1402 = vadd.f32 0.0, %v1401
        %v1403 = vpop.f32.mrf.mxu0
        %v1404 = vadd.f32 0.0, %v1403
        %1405 = vmatmul.bf16.gmra.mxu0 %v1222
        %v1406 = vpop.f32.mrf.mxu0
        %v1407 = vadd.f32 0.0, %v1406
        %v1408 = vpop.f32.mrf.mxu0
        %v1409 = vadd.f32 0.0, %v1408
        %1410 = vmatmul.bf16.gmra.mxu0 %v1224
        %v1411 = vpop.f32.mrf.mxu0
        %v1412 = vadd.f32 0.0, %v1411
        %v1413 = vpop.f32.mrf.mxu0
        %v1414 = vadd.f32 0.0, %v1413
        %1415 = vmatmul.bf16.gmra.mxu0 %v1226
        %v1416 = vpop.f32.mrf.mxu0
        %v1417 = vadd.f32 0.0, %v1416
        %v1418 = vpop.f32.mrf.mxu0
        %v1419 = vadd.f32 0.0, %v1418
        %1420 = vmatmul.bf16.gmra.mxu0 %v1228
        %v1421 = vpop.f32.mrf.mxu0
        %v1422 = vadd.f32 0.0, %v1421
        %v1423 = vpop.f32.mrf.mxu0
        %v1424 = vadd.f32 0.0, %v1423
        %1425 = vmatmul.bf16.gmra.mxu0 %v1230
        %v1426 = vpop.f32.mrf.mxu0
        %v1427 = vadd.f32 0.0, %v1426
        %v1428 = vpop.f32.mrf.mxu0
        %v1429 = vadd.f32 0.0, %v1428
        %1430 = vmatmul.bf16.gmra.mxu0 %v1232
        %v1431 = vpop.f32.mrf.mxu0
        %v1432 = vadd.f32 0.0, %v1431
        %v1433 = vpop.f32.mrf.mxu0
        %v1434 = vadd.f32 0.0, %v1433
        %1435 = vmatmul.bf16.gmra.mxu0 %v1234
        %v1436 = vpop.f32.mrf.mxu0
        %v1437 = vadd.f32 0.0, %v1436
        %v1438 = vpop.f32.mrf.mxu0
        %v1439 = vadd.f32 0.0, %v1438
        %1440 = vmatmul.bf16.gmra.mxu0 %v1236
        %v1441 = vpop.f32.mrf.mxu0
        %v1442 = vadd.f32 0.0, %v1441
        %v1443 = vpop.f32.mrf.mxu0
        %v1444 = vadd.f32 0.0, %v1443
        %1445 = vmatmul.bf16.gmra.mxu0 %v1238
        %v1446 = vpop.f32.mrf.mxu0
        %v1447 = vadd.f32 0.0, %v1446
        %v1448 = vpop.f32.mrf.mxu0
        %v1449 = vadd.f32 0.0, %v1448
        %1450 = vmatmul.bf16.gmra.mxu0 %v1240
        %v1451 = vpop.f32.mrf.mxu0
        %v1452 = vadd.f32 0.0, %v1451
        %v1453 = vpop.f32.mrf.mxu0
        %v1454 = vadd.f32 0.0, %v1453
        %1455 = vmatmul.bf16.gmra.mxu0 %v1242
        %v1456 = vpop.f32.mrf.mxu0
        %v1457 = vadd.f32 0.0, %v1456
        %v1458 = vpop.f32.mrf.mxu0
        %v1459 = vadd.f32 0.0, %v1458
        %1460 = vdwg.mxu0
        %1461 = vmatpush.bf16.msra.mxu0 %v1355
        %1462 = vmatpush.bf16.msra.mxu0 %v1354
        %1463 = vmatpush.bf16.msra.mxu0 %v1353
        %1464 = vmatpush.bf16.msra.mxu0 %v1352
        %1465 = vmatpush.bf16.msra.mxu0 %v1351
        %1466 = vmatpush.bf16.msra.mxu0 %v1350
        %1467 = vmatpush.bf16.msra.mxu0 %v1349
        %1468 = vmatpush.bf16.msra.mxu0 %v1348
        %1469 = vmatmul.bf16.gmra.mxu0 %v1213
        %v1470 = vpop.f32.mrf.mxu0
        %v1471 = vadd.f32 %v1382, %v1470
        %v1472 = vpop.f32.mrf.mxu0
        %v1473 = vadd.f32 %v1384, %v1472
        %1474 = vmatmul.bf16.gmra.mxu0 %v1215
        %v1475 = vpop.f32.mrf.mxu0
        %v1476 = vadd.f32 %v1387, %v1475
        %v1477 = vpop.f32.mrf.mxu0
        %v1478 = vadd.f32 %v1389, %v1477
        %1479 = vmatmul.bf16.gmra.mxu0 %v1217
        %v1480 = vpop.f32.mrf.mxu0
        %v1481 = vadd.f32 %v1392, %v1480
        %v1482 = vpop.f32.mrf.mxu0
        %v1483 = vadd.f32 %v1394, %v1482
        %1484 = vmatmul.bf16.gmra.mxu0 %v1219
        %v1485 = vpop.f32.mrf.mxu0
        %v1486 = vadd.f32 %v1397, %v1485
        %v1487 = vpop.f32.mrf.mxu0
        %v1488 = vadd.f32 %v1399, %v1487
        %1489 = vmatmul.bf16.gmra.mxu0 %v1221
        %v1490 = vpop.f32.mrf.mxu0
        %v1491 = vadd.f32 %v1402, %v1490
        %v1492 = vpop.f32.mrf.mxu0
        %v1493 = vadd.f32 %v1404, %v1492
        %1494 = vmatmul.bf16.gmra.mxu0 %v1223
        %v1495 = vpop.f32.mrf.mxu0
        %v1496 = vadd.f32 %v1407, %v1495
        %v1497 = vpop.f32.mrf.mxu0
        %v1498 = vadd.f32 %v1409, %v1497
        %1499 = vmatmul.bf16.gmra.mxu0 %v1225
        %v1500 = vpop.f32.mrf.mxu0
        %v1501 = vadd.f32 %v1412, %v1500
        %v1502 = vpop.f32.mrf.mxu0
        %v1503 = vadd.f32 %v1414, %v1502
        %1504 = vmatmul.bf16.gmra.mxu0 %v1227
        %v1505 = vpop.f32.mrf.mxu0
        %v1506 = vadd.f32 %v1417, %v1505
        %v1507 = vpop.f32.mrf.mxu0
        %v1508 = vadd.f32 %v1419, %v1507
        %1509 = vmatmul.bf16.gmra.mxu0 %v1229
        %v1510 = vpop.f32.mrf.mxu0
        %v1511 = vadd.f32 %v1422, %v1510
        %v1512 = vpop.f32.mrf.mxu0
        %v1513 = vadd.f32 %v1424, %v1512
        %1514 = vmatmul.bf16.gmra.mxu0 %v1231
        %v1515 = vpop.f32.mrf.mxu0
        %v1516 = vadd.f32 %v1427, %v1515
        %v1517 = vpop.f32.mrf.mxu0
        %v1518 = vadd.f32 %v1429, %v1517
        %1519 = vmatmul.bf16.gmra.mxu0 %v1233
        %v1520 = vpop.f32.mrf.mxu0
        %v1521 = vadd.f32 %v1432, %v1520
        %v1522 = vpop.f32.mrf.mxu0
        %v1523 = vadd.f32 %v1434, %v1522
        %1524 = vmatmul.bf16.gmra.mxu0 %v1235
        %v1525 = vpop.f32.mrf.mxu0
        %v1526 = vadd.f32 %v1437, %v1525
        %v1527 = vpop.f32.mrf.mxu0
        %v1528 = vadd.f32 %v1439, %v1527
        %1529 = vmatmul.bf16.gmra.mxu0 %v1237
        %v1530 = vpop.f32.mrf.mxu0
        %v1531 = vadd.f32 %v1442, %v1530
        %v1532 = vpop.f32.mrf.mxu0
        %v1533 = vadd.f32 %v1444, %v1532
        %1534 = vmatmul.bf16.gmra.mxu0 %v1239
        %v1535 = vpop.f32.mrf.mxu0
        %v1536 = vadd.f32 %v1447, %v1535
        %v1537 = vpop.f32.mrf.mxu0
        %v1538 = vadd.f32 %v1449, %v1537
        %1539 = vmatmul.bf16.gmra.mxu0 %v1241
        %v1540 = vpop.f32.mrf.mxu0
        %v1541 = vadd.f32 %v1452, %v1540
        %v1542 = vpop.f32.mrf.mxu0
        %v1543 = vadd.f32 %v1454, %v1542
        %1544 = vmatmul.bf16.gmra.mxu0 %v1243
        %v1545 = vpop.f32.mrf.mxu0
        %v1546 = vadd.f32 %v1457, %v1545
        %v1547 = vpop.f32.mrf.mxu0
        %v1548 = vadd.f32 %v1459, %v1547
        %1549 = vdwg.mxu0
        %v1550 = vadd.f32 %v1180, %v1471
        %v1551 = vadd.f32 %v1181, %v1473
        %v1552 = vadd.f32 %v1182, %v1476
        %v1553 = vadd.f32 %v1183, %v1478
        %v1554 = vadd.f32 %v1184, %v1481
        %v1555 = vadd.f32 %v1185, %v1483
        %v1556 = vadd.f32 %v1186, %v1486
        %v1557 = vadd.f32 %v1187, %v1488
        %v1558 = vadd.f32 %v1188, %v1491
        %v1559 = vadd.f32 %v1189, %v1493
        %v1560 = vadd.f32 %v1190, %v1496
        %v1561 = vadd.f32 %v1191, %v1498
        %v1562 = vadd.f32 %v1192, %v1501
        %v1563 = vadd.f32 %v1193, %v1503
        %v1564 = vadd.f32 %v1194, %v1506
        %v1565 = vadd.f32 %v1195, %v1508
        %v1566 = vadd.f32 %v1196, %v1511
        %v1567 = vadd.f32 %v1197, %v1513
        %v1568 = vadd.f32 %v1198, %v1516
        %v1569 = vadd.f32 %v1199, %v1518
        %v1570 = vadd.f32 %v1200, %v1521
        %v1571 = vadd.f32 %v1201, %v1523
        %v1572 = vadd.f32 %v1202, %v1526
        %v1573 = vadd.f32 %v1203, %v1528
        %v1574 = vadd.f32 %v1204, %v1531
        %v1575 = vadd.f32 %v1205, %v1533
        %v1576 = vadd.f32 %v1206, %v1536
        %v1577 = vadd.f32 %v1207, %v1538
        %v1578 = vadd.f32 %v1208, %v1541
        %v1579 = vadd.f32 %v1209, %v1543
        %v1580 = vadd.f32 %v1210, %v1546
        %v1581 = vadd.f32 %v1211, %v1548
        %1582 = vst [vmem:[#allocation2] sm:$0xff] %v1550
        %1583 = vst [vmem:[#allocation2 + $0x8] sm:$0xff] %v1551
        %1584 = vst [vmem:[#allocation2 + $0x10] sm:$0xff] %v1552
        %1585 = vst [vmem:[#allocation2 + $0x18] sm:$0xff] %v1553
        %1586 = vst [vmem:[#allocation2 + $0x20] sm:$0xff] %v1554
        %1587 = vst [vmem:[#allocation2 + $0x28] sm:$0xff] %v1555
        %1588 = vst [vmem:[#allocation2 + $0x30] sm:$0xff] %v1556
        %1589 = vst [vmem:[#allocation2 + $0x38] sm:$0xff] %v1557
        %1590 = vst [vmem:[#allocation2 + $0x40] sm:$0xff] %v1558
        %1591 = vst [vmem:[#allocation2 + $0x48] sm:$0xff] %v1559
        %1592 = vst [vmem:[#allocation2 + $0x50] sm:$0xff] %v1560
        %1593 = vst [vmem:[#allocation2 + $0x58] sm:$0xff] %v1561
        %1594 = vst [vmem:[#allocation2 + $0x60] sm:$0xff] %v1562
        %1595 = vst [vmem:[#allocation2 + $0x68] sm:$0xff] %v1563
        %1596 = vst [vmem:[#allocation2 + $0x70] sm:$0xff] %v1564
        %1597 = vst [vmem:[#allocation2 + $0x78] sm:$0xff] %v1565
        %1598 = vst [vmem:[#allocation2 + $0x80] sm:$0xff] %v1566
        %1599 = vst [vmem:[#allocation2 + $0x88] sm:$0xff] %v1567
        %1600 = vst [vmem:[#allocation2 + $0x90] sm:$0xff] %v1568
        %1601 = vst [vmem:[#allocation2 + $0x98] sm:$0xff] %v1569
        %1602 = vst [vmem:[#allocation2 + $0xa0] sm:$0xff] %v1570
        %1603 = vst [vmem:[#allocation2 + $0xa8] sm:$0xff] %v1571
        %1604 = vst [vmem:[#allocation2 + $0xb0] sm:$0xff] %v1572
        %1605 = vst [vmem:[#allocation2 + $0xb8] sm:$0xff] %v1573
        %1606 = vst [vmem:[#allocation2 + $0xc0] sm:$0xff] %v1574
        %1607 = vst [vmem:[#allocation2 + $0xc8] sm:$0xff] %v1575
        %1608 = vst [vmem:[#allocation2 + $0xd0] sm:$0xff] %v1576
        %1609 = vst [vmem:[#allocation2 + $0xd8] sm:$0xff] %v1577
        %1610 = vst [vmem:[#allocation2 + $0xe0] sm:$0xff] %v1578
        %1611 = vst [vmem:[#allocation2 + $0xe8] sm:$0xff] %v1579
        %1612 = vst [vmem:[#allocation2 + $0xf0] sm:$0xff] %v1580
        %1613 = vst [vmem:[#allocation2 + $0xf8] sm:$0xff] %v1581
        // Predicated region
        $region61: #{tpu_custom_call.1} parent=39 // pred_check
          %p1614 = pneg %p334
        $region62: #{tpu_custom_call.1} parent=39 // pred_check_branch
          %1616 = sbr.rel (%p1614) target = $region64
        $region63: #{tpu_custom_call.1} parent=39 // pred_region
          %v1617 = vld [vmem:[#allocation2] sm:$0xff]
          %v1618 = vld [vmem:[#allocation2 + $0x8] sm:$0xff]
          %v1619 = vld [vmem:[#allocation2 + $0x10] sm:$0xff]
          %v1620 = vld [vmem:[#allocation2 + $0x18] sm:$0xff]
          %v1621 = vld [vmem:[#allocation2 + $0x20] sm:$0xff]
          %v1622 = vld [vmem:[#allocation2 + $0x28] sm:$0xff]
          %v1623 = vld [vmem:[#allocation2 + $0x30] sm:$0xff]
          %v1624 = vld [vmem:[#allocation2 + $0x38] sm:$0xff]
          %v1625 = vld [vmem:[#allocation2 + $0x40] sm:$0xff]
          %v1626 = vld [vmem:[#allocation2 + $0x48] sm:$0xff]
          %v1627 = vld [vmem:[#allocation2 + $0x50] sm:$0xff]
          %v1628 = vld [vmem:[#allocation2 + $0x58] sm:$0xff]
          %v1629 = vld [vmem:[#allocation2 + $0x60] sm:$0xff]
          %v1630 = vld [vmem:[#allocation2 + $0x68] sm:$0xff]
          %v1631 = vld [vmem:[#allocation2 + $0x70] sm:$0xff]
          %v1632 = vld [vmem:[#allocation2 + $0x78] sm:$0xff]
          %v1633 = vld [vmem:[#allocation2 + $0x80] sm:$0xff]
          %v1634 = vld [vmem:[#allocation2 + $0x88] sm:$0xff]
          %v1635 = vld [vmem:[#allocation2 + $0x90] sm:$0xff]
          %v1636 = vld [vmem:[#allocation2 + $0x98] sm:$0xff]
          %v1637 = vld [vmem:[#allocation2 + $0xa0] sm:$0xff]
          %v1638 = vld [vmem:[#allocation2 + $0xa8] sm:$0xff]
          %v1639 = vld [vmem:[#allocation2 + $0xb0] sm:$0xff]
          %v1640 = vld [vmem:[#allocation2 + $0xb8] sm:$0xff]
          %v1641 = vld [vmem:[#allocation2 + $0xc0] sm:$0xff]
          %v1642 = vld [vmem:[#allocation2 + $0xc8] sm:$0xff]
          %v1643 = vld [vmem:[#allocation2 + $0xd0] sm:$0xff]
          %v1644 = vld [vmem:[#allocation2 + $0xd8] sm:$0xff]
          %v1645 = vld [vmem:[#allocation2 + $0xe0] sm:$0xff]
          %v1646 = vld [vmem:[#allocation2 + $0xe8] sm:$0xff]
          %v1647 = vld [vmem:[#allocation2 + $0xf0] sm:$0xff]
          %v1648 = vld [vmem:[#allocation2 + $0xf8] sm:$0xff]
          %v1649 = vld [vmem:[%s4] sm:$0x1]
          %v1651 = vperm.slane %v1649, 0
          %v1653 = vadd.f32 %v1617, %v1651
          %v1654 = vadd.f32 %v1618, %v1651
          %v1655 = vadd.f32 %v1619, %v1651
          %v1656 = vadd.f32 %v1620, %v1651
          %v1657 = vadd.f32 %v1621, %v1651
          %v1658 = vadd.f32 %v1622, %v1651
          %v1659 = vadd.f32 %v1623, %v1651
          %v1660 = vadd.f32 %v1624, %v1651
          %v1661 = vadd.f32 %v1625, %v1651
          %v1662 = vadd.f32 %v1626, %v1651
          %v1663 = vadd.f32 %v1627, %v1651
          %v1664 = vadd.f32 %v1628, %v1651
          %v1665 = vadd.f32 %v1629, %v1651
          %v1666 = vadd.f32 %v1630, %v1651
          %v1667 = vadd.f32 %v1631, %v1651
          %v1668 = vadd.f32 %v1632, %v1651
          %v1669 = vadd.f32 %v1633, %v1651
          %v1670 = vadd.f32 %v1634, %v1651
          %v1671 = vadd.f32 %v1635, %v1651
          %v1672 = vadd.f32 %v1636, %v1651
          %v1673 = vadd.f32 %v1637, %v1651
          %v1674 = vadd.f32 %v1638, %v1651
          %v1675 = vadd.f32 %v1639, %v1651
          %v1676 = vadd.f32 %v1640, %v1651
          %v1677 = vadd.f32 %v1641, %v1651
          %v1678 = vadd.f32 %v1642, %v1651
          %v1679 = vadd.f32 %v1643, %v1651
          %v1680 = vadd.f32 %v1644, %v1651
          %v1681 = vadd.f32 %v1645, %v1651
          %v1682 = vadd.f32 %v1646, %v1651
          %v1683 = vadd.f32 %v1647, %v1651
          %v1684 = vadd.f32 %v1648, %v1651
          %1685 = vst [vmem:[%s328] sm:$0xff] %v1653
          %1686 = vst [vmem:[%s328 + $0x8] sm:$0xff] %v1654
          %1687 = vst [vmem:[%s328 + $0x10] sm:$0xff] %v1655
          %1688 = vst [vmem:[%s328 + $0x18] sm:$0xff] %v1656
          %1689 = vst [vmem:[%s328 + $0x20] sm:$0xff] %v1657
          %1690 = vst [vmem:[%s328 + $0x28] sm:$0xff] %v1658
          %1691 = vst [vmem:[%s328 + $0x30] sm:$0xff] %v1659
          %1692 = vst [vmem:[%s328 + $0x38] sm:$0xff] %v1660
          %1693 = vst [vmem:[%s328 + $0x40] sm:$0xff] %v1661
          %1694 = vst [vmem:[%s328 + $0x48] sm:$0xff] %v1662
          %1695 = vst [vmem:[%s328 + $0x50] sm:$0xff] %v1663
          %1696 = vst [vmem:[%s328 + $0x58] sm:$0xff] %v1664
          %1697 = vst [vmem:[%s328 + $0x60] sm:$0xff] %v1665
          %1698 = vst [vmem:[%s328 + $0x68] sm:$0xff] %v1666
          %1699 = vst [vmem:[%s328 + $0x70] sm:$0xff] %v1667
          %1700 = vst [vmem:[%s328 + $0x78] sm:$0xff] %v1668
          %1701 = vst [vmem:[%s328 + $0x80] sm:$0xff] %v1669
          %1702 = vst [vmem:[%s328 + $0x88] sm:$0xff] %v1670
          %1703 = vst [vmem:[%s328 + $0x90] sm:$0xff] %v1671
          %1704 = vst [vmem:[%s328 + $0x98] sm:$0xff] %v1672
          %1705 = vst [vmem:[%s328 + $0xa0] sm:$0xff] %v1673
          %1706 = vst [vmem:[%s328 + $0xa8] sm:$0xff] %v1674
          %1707 = vst [vmem:[%s328 + $0xb0] sm:$0xff] %v1675
          %1708 = vst [vmem:[%s328 + $0xb8] sm:$0xff] %v1676
          %1709 = vst [vmem:[%s328 + $0xc0] sm:$0xff] %v1677
          %1710 = vst [vmem:[%s328 + $0xc8] sm:$0xff] %v1678
          %1711 = vst [vmem:[%s328 + $0xd0] sm:$0xff] %v1679
          %1712 = vst [vmem:[%s328 + $0xd8] sm:$0xff] %v1680
          %1713 = vst [vmem:[%s328 + $0xe0] sm:$0xff] %v1681
          %1714 = vst [vmem:[%s328 + $0xe8] sm:$0xff] %v1682
          %1715 = vst [vmem:[%s328 + $0xf0] sm:$0xff] %v1683
          %1716 = vst [vmem:[%s328 + $0xf8] sm:$0xff] %v1684
        $region64: #{tpu_custom_call.1} parent=39 // pred_fallthru
          _
        %s1717 = sand.u32 %s169, 1
        %s1718 = scalar_lea.sflag [#allocation5], %s1717
        %s1719 = sand.u32 %s169, 1
        %s1720 = smul.addr %s1719, 256
        %s1721 = scalar_lea.vmem [#allocation11], %s1720
        // Predicated region
        $region65: #{tpu_custom_call.1} parent=39 // pred_check
          %p1722 = pneg %p179
        $region66: #{tpu_custom_call.1} parent=39 // pred_check_branch
          %1724 = sbr.rel (%p1722) target = $region68
        $region67: #{tpu_custom_call.1} parent=39 // pred_region
          %s1725 = smul.u32 32, %s28
          %1727 = vsyncadd %s1718, 0
          %s1728 = smul.addr %s1725, 8
          %s1729 = scalar_lea.hbm %s5, %s1728
          %s1730 = sshll.u32 %s1721, 4
          %s1731 = int_to_ptr.vmem [resolvable:$true] %s1730
          %s1732 = sshll.u32 %s1729, 4
          %s1733 = int_to_ptr.hbm [resolvable:$true] %s1732
          %1738 = dma.vmem_to_hbm [thread:$0]  %s1731, 4096, %s1733, %s1718, 128, 128, 8
        $region68: #{tpu_custom_call.1} parent=39 // pred_fallthru
          _
      $region40: #{tpu_custom_call.1} parent=5 // pred_fallthru
        _
      %p1739 = scmp.le.s32.totalorder 2, %s19
      // Predicated region
      $region69: #{tpu_custom_call.1} parent=5 // pred_check
        %p1740 = pneg %p1739
      $region70: #{tpu_custom_call.1} parent=5 // pred_check_branch
        %1742 = sbr.rel (%p1740) target = $region72
      $region71: #{tpu_custom_call.1} parent=5 // pred_region
        %s1743 = ssub.s32 %s19, 2
        // Predicated region
        $region73: #{tpu_custom_call.1} parent=71 // pred_check
          %p1744 = pneg %p185
        $region74: #{tpu_custom_call.1} parent=71 // pred_check_branch
          %1746 = sbr.rel (%p1744) target = $region76
        $region75: #{tpu_custom_call.1} parent=71 // pred_region
          %s1747 = sand.u32 %s170, 1
          %s1748 = scalar_lea.sflag [#allocation5], %s1747
          %s1749 = sand.u32 %s170, 1
          %s1750 = smul.addr %s1749, 256
          %s1751 = scalar_lea.vmem [#allocation11], %s1750
          %1753 = dma.done %s1748, 4096
        $region76: #{tpu_custom_call.1} parent=71 // pred_fallthru
          _
      $region72: #{tpu_custom_call.1} parent=5 // pred_fallthru
        _
    $region6: #{tpu_custom_call.1} parent=1 // loop_footer
      %s23 = sadd.s32 1, %s19
    $region7: #{tpu_custom_call.1} parent=1 // loop_footer_branch
      %18 = sbr.rel target = $region3
    $region8: #{tpu_custom_call.1} parent=1 // loop_exit
      _
    %1754 = vsyncpa [#allocation4], 1
    %s1755 = scalar_lea.sflag [#allocation4], 1
    %1756 = vsyncpa %s1755, 1
    %1757 = vsyncpa [#allocation7], 1
    %1758 = vsyncpa [#allocation10], 1
    %1759 = vsyncpa [#allocation5], 1
    %s1760 = scalar_lea.sflag [#allocation5], 1
    %1761 = vsyncpa %s1760, 1

</llo_original>
